<compile_context>
chip_gen: v7x
topology: tpu7x:2x2x1
jax: 0.10.0
libtpu: 0.0.40
codegen_flags: <defaults>
</compile_context>

<pallas_src>
import functools
import math

import jax
import jax.numpy as jnp
from jax import lax
from jax.experimental import pallas as pl
from jax.experimental.pallas import tpu as pltpu

EPS = 1e-5
LANE = 128


def _round_up(x, m):
    return (x + m - 1) // m * m


def _vmem_limit_bytes():
    # Per-generation VMEM budget: ~3/4 of physical (v5e/v6e: 128 MiB -> 96 MiB,
    # v7x: 64 MiB -> 48 MiB), with a safe fallback if the query is unavailable.
    try:
        cap = int(pltpu.get_tpu_info().vmem_capacity_bytes)
    except Exception:
        cap = 64 * 1024 * 1024
    return max(32 * 1024 * 1024, min(cap * 3 // 4, 110 * 1024 * 1024))


def _pick_tile(total, unit_bytes, budget_bytes, align=1):
    """Largest divisor d of `total` with d*unit_bytes <= budget, preferring d % align == 0."""
    fallback = 1
    for d in range(total, 0, -1):
        if total % d:
            continue
        if d * unit_bytes <= budget_bytes:
            if d % align == 0 or d == total:
                return d
            fallback = max(fallback, d)
    return fallback


def conv_stats_kernel(x_ref, w_ref, y_ref, sum_ref, ssd_ref, *, kh, kw, rows_tile):
    """One (batch, row-tile) grid step: 3x3 conv via 9 accumulating matmuls + partial BN stats.

    x_ref:   (1, Hp, Wp, Cin)         whole zero-padded NHWC image (resident across row tiles)
    w_ref:   (KH*KW, Cin, Cout_pad)   per-tap weights, lane-dense Cout
    y_ref:   (1, rows_tile*W_out, Cout_pad)   conv output tile
    sum_ref: (1, 1, 1, Cout_pad)      per-tile channel sum
    ssd_ref: (1, 1, 1, Cout_pad)      per-tile channel sum of squared deviations from tile mean
    """
    _, hp, wp, cin = x_ref.shape
    w_out = wp - kw + 1
    cout_pad = y_ref.shape[-1]
    m_tile = rows_tile * w_out
    row0 = pl.program_id(1) * rows_tile

    # KH*KW accumulating MXU matmuls over shifted windows (no im2col scratch, no 9x VMEM
    # traffic).  Each window slice reads the rows_tile + (KH-1) halo from the resident image.
    acc = jnp.zeros((m_tile, cout_pad), jnp.float32)
    for i in range(kh):
        for j in range(kw):
            window = x_ref[0, pl.ds(row0 + i, rows_tile), pl.ds(j, w_out), :]
            window = window.reshape(m_tile, cin)
            acc = acc + jnp.dot(window, w_ref[i * kw + j],
                                preferred_element_type=jnp.float32)

    y_ref[0] = acc

    # Partial BN statistics: tile sum + sum of squared deviations from the tile mean.
    # Combined across tiles in the glue with Chan's parallel-variance formula, which avoids
    # the E[x^2] - E[x]^2 cancellation of the previous version.
    s = jnp.sum(acc, axis=0, keepdims=True)                      # (1, Cout_pad)
    mu = s * (1.0 / m_tile)
    d = acc - mu
    sum_ref[0, 0] = s
    ssd_ref[0, 0] = jnp.sum(d * d, axis=0, keepdims=True)


def bn_relu_kernel(y_ref, scale_ref, shift_ref, o_ref):
    # y_norm = conv * (gamma * inv_std) + (beta - mean * gamma * inv_std); then ReLU.
    o_ref[...] = jnp.maximum(y_ref[...] * scale_ref[...] + shift_ref[...], 0.0)


def conv_bn_relu(x_nchw, w_oihw, gamma, beta, padding=1):
    """Forward pass matching PyTorch ConvBNReLU on NCHW input (stride 1, no bias)."""
    n, cin, h, w = x_nchw.shape
    cout, cin_w, kh, kw = w_oihw.shape
    assert cin == cin_w

    h_out = h + 2 * padding - kh + 1
    w_out = w + 2 * padding - kw + 1
    m_img = h_out * w_out
    cout_pad = _round_up(cout, LANE)
    hp, wp = h + 2 * padding, w + 2 * padding

    # --- glue: NCHW -> NHWC + zero pad (1x HBM traffic; no im2col materialized) ---
    x_nhwc = jnp.transpose(x_nchw, (0, 2, 3, 1)).astype(jnp.float32)
    x_pad = jnp.pad(x_nhwc, ((0, 0), (padding, padding), (padding, padding), (0, 0)))

    # Per-tap weights (KH*KW, Cin, Cout_pad): taps as leading axis, lane-dense Cout.
    w_taps = jnp.transpose(w_oihw, (2, 3, 1, 0)).reshape(kh * kw, cin, cout).astype(jnp.float32)
    w_taps = jnp.pad(w_taps, ((0, 0), (0, 0), (0, cout_pad - cout)))

    cparams = pltpu.CompilerParams(
        dimension_semantics=("parallel", "parallel"),
        vmem_limit_bytes=_vmem_limit_bytes(),
    )

    # --- phase 1: conv + partial BN stats, grid over (batch, output-row tiles) ---
    # rows_tile sized so the conv output tile is <= ~2 MiB and rows_tile*W_out % 8 == 0.
    row_align = 8 // math.gcd(w_out, 8)
    rows_tile = _pick_tile(h_out, w_out * cout_pad * 4, 2 * 1024 * 1024, align=row_align)
    n_rt = h_out // rows_tile
    m_tile1 = rows_tile * w_out

    conv_out, sums, ssds = pl.pallas_call(
        functools.partial(conv_stats_kernel, kh=kh, kw=kw, rows_tile=rows_tile),
        out_shape=(
            jax.ShapeDtypeStruct((n, m_img, cout_pad), jnp.float32),
            jax.ShapeDtypeStruct((n, n_rt, 1, cout_pad), jnp.float32),
            jax.ShapeDtypeStruct((n, n_rt, 1, cout_pad), jnp.float32),
        ),
        grid=(n, n_rt),
        in_specs=[
            # Whole padded image per batch element; index_map constant along the row axis,
            # so Pallas keeps it resident (no re-DMA per row tile).
            pl.BlockSpec((1, hp, wp, cin), lambda b, r: (b, 0, 0, 0)),
            pl.BlockSpec((kh * kw, cin, cout_pad), lambda b, r: (0, 0, 0)),
        ],
        out_specs=(
            pl.BlockSpec((1, m_tile1, cout_pad), lambda b, r: (b, r, 0)),
            pl.BlockSpec((1, 1, 1, cout_pad), lambda b, r: (b, r, 0, 0)),
            pl.BlockSpec((1, 1, 1, cout_pad), lambda b, r: (b, r, 0, 0)),
        ),
        compiler_params=cparams,
    )(x_pad, w_taps)

    # --- glue: finalize global (training-mode, biased) BN statistics (Chan combine) ---
    count = n * m_img
    m_t = float(m_tile1)  # elements per tile (identical for every tile)
    sums2 = sums.reshape(n * n_rt, cout_pad)
    ssds2 = ssds.reshape(n * n_rt, cout_pad)
    total_sum = jnp.sum(sums2, axis=0, keepdims=True)            # (1, cout_pad)
    mean = total_sum / count
    tile_means = sums2 / m_t
    m2 = jnp.sum(ssds2, axis=0, keepdims=True) \
        + m_t * jnp.sum(jnp.square(tile_means - mean), axis=0, keepdims=True)
    var = jnp.maximum(m2 / count, 0.0)
    inv_std = lax.rsqrt(var + EPS)

    # Padded Cout lanes: gamma is zero-padded so scale = 0 there (keep it that way).
    gamma_p = jnp.pad(gamma.astype(jnp.float32), (0, cout_pad - cout)).reshape(1, 1, cout_pad)
    beta_p = jnp.pad(beta.astype(jnp.float32), (0, cout_pad - cout)).reshape(1, 1, cout_pad)
    scale = gamma_p * inv_std.reshape(1, 1, cout_pad)
    shift = beta_p - mean.reshape(1, 1, cout_pad) * scale

    # --- phase 2: normalize + ReLU, tiled over rows that exactly divide m_img (no padding
    #     pass), lane-dense (128-multiple) output, large tile for HBM roofline ---
    m_tile2 = _pick_tile(m_img, cout_pad * 4, 4 * 1024 * 1024, align=8)
    n_mt = m_img // m_tile2

    out_padded = pl.pallas_call(
        bn_relu_kernel,
        out_shape=jax.ShapeDtypeStruct((n, m_img, cout_pad), jnp.float32),
        grid=(n, n_mt),
        in_specs=[
            pl.BlockSpec((1, m_tile2, cout_pad), lambda b, t: (b, t, 0)),
            pl.BlockSpec((1, 1, cout_pad), lambda b, t: (0, 0, 0)),
            pl.BlockSpec((1, 1, cout_pad), lambda b, t: (0, 0, 0)),
        ],
        out_specs=pl.BlockSpec((1, m_tile2, cout_pad), lambda b, t: (b, t, 0)),
        compiler_params=cparams,
    )(conv_out, scale, shift)

    # --- glue: drop channel padding, back to NCHW (required by the PyTorch module contract;
    #     keep NHWC / padded Cout downstream if the consumer allows to save these passes) ---
    out = out_padded[:, :, :cout].reshape(n, h_out, w_out, cout)
    return jnp.transpose(out, (0, 3, 1, 2))


def reference_conv_bn_relu(x_nchw, w_oihw, gamma, beta, padding=1):
    """Pure-JAX reference (conv + training-mode BN + ReLU), NCHW."""
    y = lax.conv_general_dilated(
        x_nchw.astype(jnp.float32),
        w_oihw.astype(jnp.float32),
        window_strides=(1, 1),
        padding=((padding, padding), (padding, padding)),
        dimension_numbers=("NCHW", "OIHW", "NCHW"),
    )
    mean = jnp.mean(y, axis=(0, 2, 3), keepdims=True)
    var = jnp.mean(jnp.square(y - mean), axis=(0, 2, 3), keepdims=True)
    yn = (y - mean) * lax.rsqrt(var + EPS)
    yn = yn * gamma.reshape(1, -1, 1, 1) + beta.reshape(1, -1, 1, 1)
    return jnp.maximum(yn, 0.0)


if __name__ == "__main__":
    # Small shapes consistent with the module: NCHW input, 3x3 conv, pad=1.
    N, CIN, H, W = 2, 4, 16, 16
    COUT, KH, KW = 8, 3, 3

    key = jax.random.PRNGKey(0)
    kx, kw_ = jax.random.split(key)
    x = jax.random.normal(kx, (N, CIN, H, W), dtype=jnp.float32)
    conv_w = jax.random.normal(kw_, (COUT, CIN, KH, KW), dtype=jnp.float32) * 0.1
    gamma = jnp.ones((COUT,), dtype=jnp.float32)   # BatchNorm2d weight init
    beta = jnp.zeros((COUT,), dtype=jnp.float32)   # BatchNorm2d bias init

    out = conv_bn_relu(x, conv_w, gamma, beta, padding=1)
    out = jax.block_until_ready(out)

    ref = reference_conv_bn_relu(x, conv_w, gamma, beta, padding=1)
    assert out.shape == (N, COUT, H, W), out.shape
    assert jnp.allclose(out, ref, atol=1e-4, rtol=1e-4), float(jnp.max(jnp.abs(out - ref)))

    print("KERNEL_OK")
</pallas_src>

<mosaic_0001>
module attributes {stable_mosaic.version = 11 : i64} {
  func.func @conv_stats_kernel(%arg0: i32, %arg1: i32, %arg2: memref<1x18x18x4xf32, #tpu.memory_space<vmem>>, %arg3: memref<9x4x128xf32, #tpu.memory_space<vmem>>, %arg4: memref<1x256x128xf32, #tpu.memory_space<vmem>>, %arg5: memref<1x1x1x128xf32, #tpu.memory_space<vmem>>, %arg6: memref<1x1x1x128xf32, #tpu.memory_space<vmem>>) attributes {dimension_semantics = [#tpu.dimension_semantics<parallel>, #tpu.dimension_semantics<parallel>], iteration_bounds = array<i64: 2, 1>, scalar_prefetch = 0 : i64, scratch_operands = 0 : i64, tpu.core_type = #tpu.core_type<tc>, window_params = [{transform_indices = @transform_0, window_bounds = array<i64: 1, 18, 18, 4>}, {pipeline_mode = #tpu.pipeline_mode<synchronous>, transform_indices = @transform_1, window_bounds = array<i64: 9, 4, 128>}, {transform_indices = @transform_2, window_bounds = array<i64: 1, 256, 128>}, {transform_indices = @transform_3, window_bounds = array<i64: 1, 1, 1, 128>}, {transform_indices = @transform_4, window_bounds = array<i64: 1, 1, 1, 128>}]} {
    %c16_i32 = arith.constant 16 : i32
    %0 = arith.muli %arg1, %c16_i32 : i32
    %cst = arith.constant 0.000000e+00 : f32
    %1 = vector.broadcast %cst : f32 to vector<256x128xf32>
    %c0_i32 = arith.constant 0 : i32
    %2 = arith.addi %0, %c0_i32 : i32
    %c0 = arith.constant 0 : index
    %3 = arith.index_cast %2 : i32 to index
    %c0_0 = arith.constant 0 : index
    %c0_1 = arith.constant 0 : index
    %4 = vector.load %arg2[%c0, %3, %c0_0, %c0_1] : memref<1x18x18x4xf32, #tpu.memory_space<vmem>>, vector<1x16x16x4xf32>
    %5 = vector.shape_cast %4 : vector<1x16x16x4xf32> to vector<16x16x4xf32>
    %6 = vector.shape_cast %5 : vector<16x16x4xf32> to vector<256x4xf32>
    %c0_2 = arith.constant 0 : index
    %c0_3 = arith.constant 0 : index
    %c0_4 = arith.constant 0 : index
    %7 = vector.load %arg3[%c0_2, %c0_3, %c0_4] : memref<9x4x128xf32, #tpu.memory_space<vmem>>, vector<1x4x128xf32>
    %8 = vector.shape_cast %7 : vector<1x4x128xf32> to vector<4x128xf32>
    %cst_5 = arith.constant dense<0.000000e+00> : vector<256x128xf32>
    %9 = tpu.matmul %6, %8, %cst_5 {dimension_numbers = #tpu.dot_dimension_numbers<[1], [0], [0], [1], [0, 0, 1, 1], [], []>} : vector<256x4xf32>, vector<4x128xf32>, vector<256x128xf32> -> vector<256x128xf32>
    %10 = arith.addf %1, %9 : vector<256x128xf32>
    %c0_i32_6 = arith.constant 0 : i32
    %11 = arith.addi %0, %c0_i32_6 : i32
    %c0_7 = arith.constant 0 : index
    %12 = arith.index_cast %11 : i32 to index
    %c1 = arith.constant 1 : index
    %c0_8 = arith.constant 0 : index
    %13 = vector.load %arg2[%c0_7, %12, %c1, %c0_8] : memref<1x18x18x4xf32, #tpu.memory_space<vmem>>, vector<1x16x16x4xf32>
    %14 = vector.shape_cast %13 : vector<1x16x16x4xf32> to vector<16x16x4xf32>
    %15 = vector.shape_cast %14 : vector<16x16x4xf32> to vector<256x4xf32>
    %c1_9 = arith.constant 1 : index
    %c0_10 = arith.constant 0 : index
    %c0_11 = arith.constant 0 : index
    %16 = vector.load %arg3[%c1_9, %c0_10, %c0_11] : memref<9x4x128xf32, #tpu.memory_space<vmem>>, vector<1x4x128xf32>
    %17 = vector.shape_cast %16 : vector<1x4x128xf32> to vector<4x128xf32>
    %cst_12 = arith.constant dense<0.000000e+00> : vector<256x128xf32>
    %18 = tpu.matmul %15, %17, %cst_12 {dimension_numbers = #tpu.dot_dimension_numbers<[1], [0], [0], [1], [0, 0, 1, 1], [], []>} : vector<256x4xf32>, vector<4x128xf32>, vector<256x128xf32> -> vector<256x128xf32>
    %19 = arith.addf %10, %18 : vector<256x128xf32>
    %c0_i32_13 = arith.constant 0 : i32
    %20 = arith.addi %0, %c0_i32_13 : i32
    %c0_14 = arith.constant 0 : index
    %21 = arith.index_cast %20 : i32 to index
    %c2 = arith.constant 2 : index
    %c0_15 = arith.constant 0 : index
    %22 = vector.load %arg2[%c0_14, %21, %c2, %c0_15] : memref<1x18x18x4xf32, #tpu.memory_space<vmem>>, vector<1x16x16x4xf32>
    %23 = vector.shape_cast %22 : vector<1x16x16x4xf32> to vector<16x16x4xf32>
    %24 = vector.shape_cast %23 : vector<16x16x4xf32> to vector<256x4xf32>
    %c2_16 = arith.constant 2 : index
    %c0_17 = arith.constant 0 : index
    %c0_18 = arith.constant 0 : index
    %25 = vector.load %arg3[%c2_16, %c0_17, %c0_18] : memref<9x4x128xf32, #tpu.memory_space<vmem>>, vector<1x4x128xf32>
    %26 = vector.shape_cast %25 : vector<1x4x128xf32> to vector<4x128xf32>
    %cst_19 = arith.constant dense<0.000000e+00> : vector<256x128xf32>
    %27 = tpu.matmul %24, %26, %cst_19 {dimension_numbers = #tpu.dot_dimension_numbers<[1], [0], [0], [1], [0, 0, 1, 1], [], []>} : vector<256x4xf32>, vector<4x128xf32>, vector<256x128xf32> -> vector<256x128xf32>
    %28 = arith.addf %19, %27 : vector<256x128xf32>
    %c1_i32 = arith.constant 1 : i32
    %29 = arith.addi %0, %c1_i32 : i32
    %c0_20 = arith.constant 0 : index
    %30 = arith.index_cast %29 : i32 to index
    %c0_21 = arith.constant 0 : index
    %c0_22 = arith.constant 0 : index
    %31 = vector.load %arg2[%c0_20, %30, %c0_21, %c0_22] : memref<1x18x18x4xf32, #tpu.memory_space<vmem>>, vector<1x16x16x4xf32>
    %32 = vector.shape_cast %31 : vector<1x16x16x4xf32> to vector<16x16x4xf32>
    %33 = vector.shape_cast %32 : vector<16x16x4xf32> to vector<256x4xf32>
    %c3 = arith.constant 3 : index
    %c0_23 = arith.constant 0 : index
    %c0_24 = arith.constant 0 : index
    %34 = vector.load %arg3[%c3, %c0_23, %c0_24] : memref<9x4x128xf32, #tpu.memory_space<vmem>>, vector<1x4x128xf32>
    %35 = vector.shape_cast %34 : vector<1x4x128xf32> to vector<4x128xf32>
    %cst_25 = arith.constant dense<0.000000e+00> : vector<256x128xf32>
    %36 = tpu.matmul %33, %35, %cst_25 {dimension_numbers = #tpu.dot_dimension_numbers<[1], [0], [0], [1], [0, 0, 1, 1], [], []>} : vector<256x4xf32>, vector<4x128xf32>, vector<256x128xf32> -> vector<256x128xf32>
    %37 = arith.addf %28, %36 : vector<256x128xf32>
    %c1_i32_26 = arith.constant 1 : i32
    %38 = arith.addi %0, %c1_i32_26 : i32
    %c0_27 = arith.constant 0 : index
    %39 = arith.index_cast %38 : i32 to index
    %c1_28 = arith.constant 1 : index
    %c0_29 = arith.constant 0 : index
    %40 = vector.load %arg2[%c0_27, %39, %c1_28, %c0_29] : memref<1x18x18x4xf32, #tpu.memory_space<vmem>>, vector<1x16x16x4xf32>
    %41 = vector.shape_cast %40 : vector<1x16x16x4xf32> to vector<16x16x4xf32>
    %42 = vector.shape_cast %41 : vector<16x16x4xf32> to vector<256x4xf32>
    %c4 = arith.constant 4 : index
    %c0_30 = arith.constant 0 : index
    %c0_31 = arith.constant 0 : index
    %43 = vector.load %arg3[%c4, %c0_30, %c0_31] : memref<9x4x128xf32, #tpu.memory_space<vmem>>, vector<1x4x128xf32>
    %44 = vector.shape_cast %43 : vector<1x4x128xf32> to vector<4x128xf32>
    %cst_32 = arith.constant dense<0.000000e+00> : vector<256x128xf32>
    %45 = tpu.matmul %42, %44, %cst_32 {dimension_numbers = #tpu.dot_dimension_numbers<[1], [0], [0], [1], [0, 0, 1, 1], [], []>} : vector<256x4xf32>, vector<4x128xf32>, vector<256x128xf32> -> vector<256x128xf32>
    %46 = arith.addf %37, %45 : vector<256x128xf32>
    %c1_i32_33 = arith.constant 1 : i32
    %47 = arith.addi %0, %c1_i32_33 : i32
    %c0_34 = arith.constant 0 : index
    %48 = arith.index_cast %47 : i32 to index
    %c2_35 = arith.constant 2 : index
    %c0_36 = arith.constant 0 : index
    %49 = vector.load %arg2[%c0_34, %48, %c2_35, %c0_36] : memref<1x18x18x4xf32, #tpu.memory_space<vmem>>, vector<1x16x16x4xf32>
    %50 = vector.shape_cast %49 : vector<1x16x16x4xf32> to vector<16x16x4xf32>
    %51 = vector.shape_cast %50 : vector<16x16x4xf32> to vector<256x4xf32>
    %c5 = arith.constant 5 : index
    %c0_37 = arith.constant 0 : index
    %c0_38 = arith.constant 0 : index
    %52 = vector.load %arg3[%c5, %c0_37, %c0_38] : memref<9x4x128xf32, #tpu.memory_space<vmem>>, vector<1x4x128xf32>
    %53 = vector.shape_cast %52 : vector<1x4x128xf32> to vector<4x128xf32>
    %cst_39 = arith.constant dense<0.000000e+00> : vector<256x128xf32>
    %54 = tpu.matmul %51, %53, %cst_39 {dimension_numbers = #tpu.dot_dimension_numbers<[1], [0], [0], [1], [0, 0, 1, 1], [], []>} : vector<256x4xf32>, vector<4x128xf32>, vector<256x128xf32> -> vector<256x128xf32>
    %55 = arith.addf %46, %54 : vector<256x128xf32>
    %c2_i32 = arith.constant 2 : i32
    %56 = arith.addi %0, %c2_i32 : i32
    %c0_40 = arith.constant 0 : index
    %57 = arith.index_cast %56 : i32 to index
    %c0_41 = arith.constant 0 : index
    %c0_42 = arith.constant 0 : index
    %58 = vector.load %arg2[%c0_40, %57, %c0_41, %c0_42] : memref<1x18x18x4xf32, #tpu.memory_space<vmem>>, vector<1x16x16x4xf32>
    %59 = vector.shape_cast %58 : vector<1x16x16x4xf32> to vector<16x16x4xf32>
    %60 = vector.shape_cast %59 : vector<16x16x4xf32> to vector<256x4xf32>
    %c6 = arith.constant 6 : index
    %c0_43 = arith.constant 0 : index
    %c0_44 = arith.constant 0 : index
    %61 = vector.load %arg3[%c6, %c0_43, %c0_44] : memref<9x4x128xf32, #tpu.memory_space<vmem>>, vector<1x4x128xf32>
    %62 = vector.shape_cast %61 : vector<1x4x128xf32> to vector<4x128xf32>
    %cst_45 = arith.constant dense<0.000000e+00> : vector<256x128xf32>
    %63 = tpu.matmul %60, %62, %cst_45 {dimension_numbers = #tpu.dot_dimension_numbers<[1], [0], [0], [1], [0, 0, 1, 1], [], []>} : vector<256x4xf32>, vector<4x128xf32>, vector<256x128xf32> -> vector<256x128xf32>
    %64 = arith.addf %55, %63 : vector<256x128xf32>
    %c2_i32_46 = arith.constant 2 : i32
    %65 = arith.addi %0, %c2_i32_46 : i32
    %c0_47 = arith.constant 0 : index
    %66 = arith.index_cast %65 : i32 to index
    %c1_48 = arith.constant 1 : index
    %c0_49 = arith.constant 0 : index
    %67 = vector.load %arg2[%c0_47, %66, %c1_48, %c0_49] : memref<1x18x18x4xf32, #tpu.memory_space<vmem>>, vector<1x16x16x4xf32>
    %68 = vector.shape_cast %67 : vector<1x16x16x4xf32> to vector<16x16x4xf32>
    %69 = vector.shape_cast %68 : vector<16x16x4xf32> to vector<256x4xf32>
    %c7 = arith.constant 7 : index
    %c0_50 = arith.constant 0 : index
    %c0_51 = arith.constant 0 : index
    %70 = vector.load %arg3[%c7, %c0_50, %c0_51] : memref<9x4x128xf32, #tpu.memory_space<vmem>>, vector<1x4x128xf32>
    %71 = vector.shape_cast %70 : vector<1x4x128xf32> to vector<4x128xf32>
    %cst_52 = arith.constant dense<0.000000e+00> : vector<256x128xf32>
    %72 = tpu.matmul %69, %71, %cst_52 {dimension_numbers = #tpu.dot_dimension_numbers<[1], [0], [0], [1], [0, 0, 1, 1], [], []>} : vector<256x4xf32>, vector<4x128xf32>, vector<256x128xf32> -> vector<256x128xf32>
    %73 = arith.addf %64, %72 : vector<256x128xf32>
    %c2_i32_53 = arith.constant 2 : i32
    %74 = arith.addi %0, %c2_i32_53 : i32
    %c0_54 = arith.constant 0 : index
    %75 = arith.index_cast %74 : i32 to index
    %c2_55 = arith.constant 2 : index
    %c0_56 = arith.constant 0 : index
    %76 = vector.load %arg2[%c0_54, %75, %c2_55, %c0_56] : memref<1x18x18x4xf32, #tpu.memory_space<vmem>>, vector<1x16x16x4xf32>
    %77 = vector.shape_cast %76 : vector<1x16x16x4xf32> to vector<16x16x4xf32>
    %78 = vector.shape_cast %77 : vector<16x16x4xf32> to vector<256x4xf32>
    %c8 = arith.constant 8 : index
    %c0_57 = arith.constant 0 : index
    %c0_58 = arith.constant 0 : index
    %79 = vector.load %arg3[%c8, %c0_57, %c0_58] : memref<9x4x128xf32, #tpu.memory_space<vmem>>, vector<1x4x128xf32>
    %80 = vector.shape_cast %79 : vector<1x4x128xf32> to vector<4x128xf32>
    %cst_59 = arith.constant dense<0.000000e+00> : vector<256x128xf32>
    %81 = tpu.matmul %78, %80, %cst_59 {dimension_numbers = #tpu.dot_dimension_numbers<[1], [0], [0], [1], [0, 0, 1, 1], [], []>} : vector<256x4xf32>, vector<4x128xf32>, vector<256x128xf32> -> vector<256x128xf32>
    %82 = arith.addf %73, %81 : vector<256x128xf32>
    %c0_60 = arith.constant 0 : index
    %c0_61 = arith.constant 0 : index
    %c0_62 = arith.constant 0 : index
    %83 = vector.load %arg4[%c0_60, %c0_61, %c0_62] : memref<1x256x128xf32, #tpu.memory_space<vmem>>, vector<1x256x128xf32>
    %84 = vector.shape_cast %83 : vector<1x256x128xf32> to vector<256x128xf32>
    %85 = vector.shape_cast %82 : vector<256x128xf32> to vector<1x256x128xf32>
    tpu.vector_store %arg4[%c0_60, %c0_61, %c0_62], %85 {strides = array<i32>} : memref<1x256x128xf32, #tpu.memory_space<vmem>>, vector<1x256x128xf32>,
    %cst_63 = arith.constant dense<0.000000e+00> : vector<128xf32>
    %86 = vector.multi_reduction <add>, %82, %cst_63 [0] : vector<256x128xf32> to vector<128xf32>
    %87 = vector.shape_cast %86 : vector<128xf32> to vector<1x128xf32>
    %cst_64 = arith.constant 3.906250e-03 : f32
    %88 = vector.broadcast %cst_64 : f32 to vector<1x128xf32>
    %89 = arith.mulf %87, %88 : vector<1x128xf32>
    %90 = vector.broadcast %89 : vector<1x128xf32> to vector<256x128xf32>
    %91 = arith.subf %82, %90 : vector<256x128xf32>
    %c0_65 = arith.constant 0 : index
    %c0_66 = arith.constant 0 : index
    %c0_67 = arith.constant 0 : index
    %c0_68 = arith.constant 0 : index
    %92 = vector.load %arg5[%c0_65, %c0_66, %c0_67, %c0_68] : memref<1x1x1x128xf32, #tpu.memory_space<vmem>>, vector<1x1x1x128xf32>
    %93 = vector.shape_cast %92 : vector<1x1x1x128xf32> to vector<1x128xf32>
    %94 = vector.shape_cast %87 : vector<1x128xf32> to vector<1x1x1x128xf32>
    tpu.vector_store %arg5[%c0_65, %c0_66, %c0_67, %c0_68], %94 {strides = array<i32>} : memref<1x1x1x128xf32, #tpu.memory_space<vmem>>, vector<1x1x1x128xf32>,
    %95 = arith.mulf %91, %91 : vector<256x128xf32>
    %cst_69 = arith.constant dense<0.000000e+00> : vector<128xf32>
    %96 = vector.multi_reduction <add>, %95, %cst_69 [0] : vector<256x128xf32> to vector<128xf32>
    %97 = vector.shape_cast %96 : vector<128xf32> to vector<1x128xf32>
    %c0_70 = arith.constant 0 : index
    %c0_71 = arith.constant 0 : index
    %c0_72 = arith.constant 0 : index
    %c0_73 = arith.constant 0 : index
    %98 = vector.load %arg6[%c0_70, %c0_71, %c0_72, %c0_73] : memref<1x1x1x128xf32, #tpu.memory_space<vmem>>, vector<1x1x1x128xf32>
    %99 = vector.shape_cast %98 : vector<1x1x1x128xf32> to vector<1x128xf32>
    %100 = vector.shape_cast %97 : vector<1x128xf32> to vector<1x1x1x128xf32>
    tpu.vector_store %arg6[%c0_70, %c0_71, %c0_72, %c0_73], %100 {strides = array<i32>} : memref<1x1x1x128xf32, #tpu.memory_space<vmem>>, vector<1x1x1x128xf32>,
    return
  }
  func.func @transform_0(%arg0: i32, %arg1: i32) -> (i32, i32, i32, i32) {
    %c0_i32 = arith.constant 0 : i32
    %c0_i32_0 = arith.constant 0 : i32
    %c0_i32_1 = arith.constant 0 : i32
    %c0_i32_2 = arith.constant 0 : i32
    return %arg0, %c0_i32, %c0_i32_0, %c0_i32_1 : i32, i32, i32, i32
  }
  func.func @transform_1(%arg0: i32, %arg1: i32) -> (i32, i32, i32) {
    %c0_i32 = arith.constant 0 : i32
    %c0_i32_0 = arith.constant 0 : i32
    %c0_i32_1 = arith.constant 0 : i32
    %c0_i32_2 = arith.constant 0 : i32
    return %c0_i32, %c0_i32_0, %c0_i32_1 : i32, i32, i32
  }
  func.func @transform_2(%arg0: i32, %arg1: i32) -> (i32, i32, i32) {
    %c0_i32 = arith.constant 0 : i32
    %c0_i32_0 = arith.constant 0 : i32
    return %arg0, %arg1, %c0_i32 : i32, i32, i32
  }
  func.func @transform_3(%arg0: i32, %arg1: i32) -> (i32, i32, i32, i32) {
    %c0_i32 = arith.constant 0 : i32
    %c0_i32_0 = arith.constant 0 : i32
    %c0_i32_1 = arith.constant 0 : i32
    return %arg0, %arg1, %c0_i32, %c0_i32_0 : i32, i32, i32, i32
  }
  func.func @transform_4(%arg0: i32, %arg1: i32) -> (i32, i32, i32, i32) {
    %c0_i32 = arith.constant 0 : i32
    %c0_i32_0 = arith.constant 0 : i32
    %c0_i32_1 = arith.constant 0 : i32
    return %arg0, %arg1, %c0_i32, %c0_i32_0 : i32, i32, i32, i32
  }
}

</mosaic_0001>

<llo_original>
// kernel: tpu_custom_call.1
$region0: #{tpu_custom_call.1}
  #allocation0 [shape = 'u32[]', space=smem, size = 0x4, offset = 0x4, fixed_abs, tag = 'smem constant byte address 0x4 - core index']
  #allocation1 [shape = 'u32[144,128]{1,0:T(1,128)}', space=vmem, size = 0x12000, scoped, tag = 'internal scratch']
  %s0 = inlined_call_operand.vmem [shape: f32[2,18,18,4], index: 0, kind: input, shape index: {}]
  %s1 = inlined_call_operand.vmem [shape: f32[9,4,128], index: 1, kind: input, shape index: {}]
  %s2 = inlined_call_operand.hbm [shape: f32[2,256,128], index: 2, kind: output, shape index: {0}]
  %s3 = inlined_call_operand.hbm [shape: f32[2,1,1,128], index: 3, kind: output, shape index: {1}]
  %s4 = inlined_call_operand.hbm [shape: f32[2,1,1,128], index: 4, kind: output, shape index: {2}]
  %5 = xla_tuple %s2, %s3, %s4
  %s6 = sld [smem:[#allocation0]]
  $region57: #{tpu_custom_call.1} parent=0
    _
  %s8 = ssub.s32 1, %s6
  %s9 = scalar_select 0, %s8, %s6
  $region1: #{tpu_custom_call.1} parent=0
    #allocation2 [shape = 'u8[262144]{0}', space=vmem, size = 0x40000, scoped, tag = 'output window, operand 0']
    #allocation3 [shape = 's32[2]{0}', space=sflag, size = 0x8, scoped, tag = 'scoped memory for tpu_custom_call.1']
    #allocation4 [shape = 'u8[1024]{0}', space=vmem, size = 0x400, scoped, tag = 'output window, operand 1']
    #allocation5 [shape = 's32[2]{0}', space=sflag, size = 0x8, scoped, tag = 'scoped memory for tpu_custom_call.1']
    #allocation6 [shape = 'u8[1024]{0}', space=vmem, size = 0x400, scoped, tag = 'output window, operand 2']
    %10 = vsyncpa [#allocation3], 0
    %s11 = scalar_lea.sflag [#allocation3], 1
    %12 = vsyncpa %s11, 0
    %13 = vsyncpa [#allocation5], 0
    %s14 = scalar_lea.sflag [#allocation5], 1
    %15 = vsyncpa %s14, 0
    loop: start=0, step=1, limit=4
    $region2: #{tpu_custom_call.1} parent=1 // loop_pre_header
      _
    $region3: #{tpu_custom_call.1} parent=1 // loop_header
      %s17 = sphi 0, %s21
      %p18 = scmp.ge.s32.totalorder %s17, 4
      %s24 = sphi 0, %s36
      %s25 = sphi 0, %s32
      %s26 = sphi 0, %s24
      %s27 = sphi 0, %s25
      %s28 = sphi 0, %s26
      %s29 = sphi 0, %s27
      %s39 = sphi 0, %s41
      %s42 = sphi 0, %s39
      %s43 = sphi 0, %s42
      %s59 = sphi 0, %s43
      %s63 = sphi 0, %s63
      %s65 = sphi 0, %s63
      %s66 = sphi 0, %s65
      %s80 = sphi 0, %s66
      %s88 = sphi 0, %s90
      %s91 = sphi 0, %s88
      %s92 = sphi 0, %s91
      %s108 = sphi 0, %s92
      %s116 = sphi 0, %s118
      %s119 = sphi 0, %s116
      %s120 = sphi 0, %s119
      %s136 = sphi 0, %s120
      %s144 = sphi 0, %s146
      %s147 = sphi 0, %s144
      %s148 = sphi 0, %s147
      %s164 = sphi 0, %s148
    $region4: #{tpu_custom_call.1} parent=1 // loop_header_branch
      %20 = sbr.rel (%p18) target = $region8
    $region5: #{tpu_custom_call.1} parent=1 // loop_body
      %s22 = ssub.s32 %s17, 1
      %s23 = ssub.s32 %s17, 2
      %s30 = sadd.s32 1, %s25
      %p31 = scmp.ge.s32.totalorder %s30, 1
      %s32 = scalar_select %p31, 0, %s30
      %s33 = sadd.s32 1, %s24
      %s34 = scalar_select %p31, %s33, %s24
      %p35 = scmp.ge.s32.totalorder %s34, 2
      %s36 = scalar_select %p35, 0, %s34
      %s37 = ssub.s32 %s24, %s36
      %p38 = scmp.eq.s32.totalorder %s37, 0
      %s40 = sadd.s32 %s39, 1
      %s41 = scalar_select %p38, %s39, %s40
      %p44 = pneg %p38
      %p45 = scmp.eq.s32.totalorder %s17, 1
      %p46 = por %p44, %p45
      %p47 = scmp.ne.s32.totalorder %s39, %s42
      %p48 = scmp.eq.s32.totalorder %s17, 0
      %p49 = por %p47, %p48
      %p50 = scmp.ne.s32.totalorder %s39, %s42
      %p51 = scmp.eq.s32.totalorder %s22, 1
      %p52 = por %p50, %p51
      %p53 = scmp.ne.s32.totalorder %s42, %s43
      %p54 = scmp.eq.s32.totalorder %s22, 0
      %p55 = por %p53, %p54
      %p56 = scmp.ne.s32.totalorder %s42, %s43
      %p57 = scmp.eq.s32.totalorder %s23, 1
      %p58 = por %p56, %p57
      %p60 = scmp.ne.s32.totalorder %s43, %s59
      %p61 = scmp.eq.s32.totalorder %s23, 0
      %p62 = por %p60, %p61
      %s64 = sadd.s32 %s63, 1
      %p67 = scmp.eq.s32.totalorder %s17, 1
      %p68 = scmp.ne.s32.totalorder %s63, %s65
      %p69 = scmp.eq.s32.totalorder %s17, 0
      %p70 = por %p68, %p69
      %p71 = scmp.ne.s32.totalorder %s63, %s65
      %p72 = scmp.eq.s32.totalorder %s22, 1
      %p73 = por %p71, %p72
      %p74 = scmp.ne.s32.totalorder %s65, %s66
      %p75 = scmp.eq.s32.totalorder %s22, 0
      %p76 = por %p74, %p75
      %p77 = scmp.ne.s32.totalorder %s65, %s66
      %p78 = scmp.eq.s32.totalorder %s23, 1
      %p79 = por %p77, %p78
      %p81 = scmp.ne.s32.totalorder %s66, %s80
      %p82 = scmp.eq.s32.totalorder %s23, 0
      %p83 = por %p81, %p82
      %s84 = ssub.s32 %s24, %s36
      %s85 = ssub.s32 %s25, %s32
      %s86 = sor.u32 %s84, %s85
      %p87 = scmp.eq.s32.totalorder %s86, 0
      %s89 = sadd.s32 %s88, 1
      %s90 = scalar_select %p87, %s88, %s89
      %p93 = pneg %p87
      %p94 = scmp.eq.s32.totalorder %s17, 1
      %p95 = por %p93, %p94
      %p96 = scmp.ne.s32.totalorder %s88, %s91
      %p97 = scmp.eq.s32.totalorder %s17, 0
      %p98 = por %p96, %p97
      %p99 = scmp.ne.s32.totalorder %s88, %s91
      %p100 = scmp.eq.s32.totalorder %s22, 1
      %p101 = por %p99, %p100
      %p102 = scmp.ne.s32.totalorder %s91, %s92
      %p103 = scmp.eq.s32.totalorder %s22, 0
      %p104 = por %p102, %p103
      %p105 = scmp.ne.s32.totalorder %s91, %s92
      %p106 = scmp.eq.s32.totalorder %s23, 1
      %p107 = por %p105, %p106
      %p109 = scmp.ne.s32.totalorder %s92, %s108
      %p110 = scmp.eq.s32.totalorder %s23, 0
      %p111 = por %p109, %p110
      %s112 = ssub.s32 %s24, %s36
      %s113 = ssub.s32 %s25, %s32
      %s114 = sor.u32 %s112, %s113
      %p115 = scmp.eq.s32.totalorder %s114, 0
      %s117 = sadd.s32 %s116, 1
      %s118 = scalar_select %p115, %s116, %s117
      %p121 = pneg %p115
      %p122 = scmp.eq.s32.totalorder %s17, 1
      %p123 = por %p121, %p122
      %p124 = scmp.ne.s32.totalorder %s116, %s119
      %p125 = scmp.eq.s32.totalorder %s17, 0
      %p126 = por %p124, %p125
      %p127 = scmp.ne.s32.totalorder %s116, %s119
      %p128 = scmp.eq.s32.totalorder %s22, 1
      %p129 = por %p127, %p128
      %p130 = scmp.ne.s32.totalorder %s119, %s120
      %p131 = scmp.eq.s32.totalorder %s22, 0
      %p132 = por %p130, %p131
      %p133 = scmp.ne.s32.totalorder %s119, %s120
      %p134 = scmp.eq.s32.totalorder %s23, 1
      %p135 = por %p133, %p134
      %p137 = scmp.ne.s32.totalorder %s120, %s136
      %p138 = scmp.eq.s32.totalorder %s23, 0
      %p139 = por %p137, %p138
      %s140 = ssub.s32 %s24, %s36
      %s141 = ssub.s32 %s25, %s32
      %s142 = sor.u32 %s140, %s141
      %p143 = scmp.eq.s32.totalorder %s142, 0
      %s145 = sadd.s32 %s144, 1
      %s146 = scalar_select %p143, %s144, %s145
      %p149 = pneg %p143
      %p150 = scmp.eq.s32.totalorder %s17, 1
      %p151 = por %p149, %p150
      %p152 = scmp.ne.s32.totalorder %s144, %s147
      %p153 = scmp.eq.s32.totalorder %s17, 0
      %p154 = por %p152, %p153
      %p155 = scmp.ne.s32.totalorder %s144, %s147
      %p156 = scmp.eq.s32.totalorder %s22, 1
      %p157 = por %p155, %p156
      %p158 = scmp.ne.s32.totalorder %s147, %s148
      %p159 = scmp.eq.s32.totalorder %s22, 0
      %p160 = por %p158, %p159
      %p161 = scmp.ne.s32.totalorder %s147, %s148
      %p162 = scmp.eq.s32.totalorder %s23, 1
      %p163 = por %p161, %p162
      %p165 = scmp.ne.s32.totalorder %s148, %s164
      %p166 = scmp.eq.s32.totalorder %s23, 0
      %p167 = por %p165, %p166
      %p168 = scmp.le.s32.totalorder 1, %s17
      %p169 = scmp.lt.s32.totalorder %s17, 3
      %p170 = pnand %p168, %p169
      %p171 = pneg %p170
      // Predicated region
      $region9: #{tpu_custom_call.1} parent=5 // pred_check
        _
      $region10: #{tpu_custom_call.1} parent=5 // pred_check_branch
        %173 = sbr.rel (%p170) target = $region12
      $region11: #{tpu_custom_call.1} parent=5 // pred_region
        %s174 = ssub.s32 %s17, 1
        // Predicated region
        $region13: #{tpu_custom_call.1} parent=11 // pred_check
          %p175 = pneg %p76
        $region14: #{tpu_custom_call.1} parent=11 // pred_check_branch
          %177 = sbr.rel (%p175) target = $region16
        $region15: #{tpu_custom_call.1} parent=11 // pred_region
          _
        $region16: #{tpu_custom_call.1} parent=11 // pred_fallthru
          _
      $region12: #{tpu_custom_call.1} parent=5 // pred_fallthru
        _
      %p178 = scmp.lt.s32.totalorder %s17, 2
      // Predicated region
      $region17: #{tpu_custom_call.1} parent=5 // pred_check
        %p179 = pneg %p178
      $region18: #{tpu_custom_call.1} parent=5 // pred_check_branch
        %181 = sbr.rel (%p179) target = $region20
      $region19: #{tpu_custom_call.1} parent=5 // pred_region
        // Predicated region
        $region21: #{tpu_custom_call.1} parent=19 // pred_check
          %p182 = pneg %p49
        $region22: #{tpu_custom_call.1} parent=19 // pred_check_branch
          %184 = sbr.rel (%p182) target = $region24
        $region23: #{tpu_custom_call.1} parent=19 // pred_region
          %p185 = scmp.lt.s32.totalorder %s24, 1
          %s186 = scalar_select %p185, %s24, 1
          %s187 = smul.addr %s186, 54
          %s188 = smul.addr %s187, 8
          %s189 = scalar_lea.vmem %s0, %s188
        $region24: #{tpu_custom_call.1} parent=19 // pred_fallthru
          _
      $region20: #{tpu_custom_call.1} parent=5 // pred_fallthru
        _
      %p190 = scmp.le.s32.totalorder 1, %s17
      %p191 = scmp.lt.s32.totalorder %s17, 3
      %p192 = pnand %p190, %p191
      %p193 = pneg %p192
      // Predicated region
      $region25: #{tpu_custom_call.1} parent=5 // pred_check
        _
      $region26: #{tpu_custom_call.1} parent=5 // pred_check_branch
        %195 = sbr.rel (%p192) target = $region28
      $region27: #{tpu_custom_call.1} parent=5 // pred_region
        %s196 = ssub.s32 %s17, 1
        %p197 = scmp.lt.s32.totalorder %s26, 1
        %s198 = scalar_select %p197, %s26, 1
        %s199 = smul.addr %s198, 54
        %s200 = smul.addr %s199, 8
        %s201 = scalar_lea.vmem %s0, %s200
        %p202 = pneg %p55
        %p203 = pneg %p52
        %p204 = pneg %p76
        %p205 = pneg %p73
        %p206 = pneg %p104
        %p207 = pneg %p101
        %s208 = sand.u32 %s91, 1
        %s209 = scalar_lea.sflag [#allocation3], %s208
        %s210 = sand.u32 %s91, 1
        %s211 = smul.addr %s210, 256
        %s212 = scalar_lea.vmem [#allocation2], %s211
        %p213 = pneg %p132
        %p214 = pneg %p129
        %s215 = sand.u32 %s22, 1
        %s216 = scalar_lea.sflag [#allocation5], %s215
        %s217 = sand.u32 %s119, 1
        %s218 = scalar_lea.vmem [#allocation4], %s217
        %p219 = pneg %p160
        %p220 = pneg %p157
        %s221 = sand.u32 %s22, 1
        %s222 = scalar_lea.sflag [#allocation5], %s221
        %s223 = sand.u32 %s147, 1
        %s224 = scalar_lea.vmem [#allocation6], %s223
        %p225 = scmp.lt.s32.totalorder %s26, 1
        %s226 = scalar_select %p225, %s26, 1
        %s227 = smul.addr %s226, 54
        %s228 = smul.addr %s227, 8
        %s229 = scalar_lea.vmem %s0, %s228
        %s230 = smul.u32 32, %s27
        %s231 = smul.u32 %s27, 16
        %s232 = smul.u32 %s231, 24
        %s233 = scalar_lea.vmem %s229, %s232
        %v234 = vld [vmem:[%s233] sm:$0xff]
        %v235 = vld [vmem:[%s233 + $0x8] sm:$0xff]
        %v236 = vld [vmem:[%s233 + $0x18] sm:$0xff]
        %v237 = vld [vmem:[%s233 + $0x20] sm:$0xff]
        %v238 = vld [vmem:[%s233 + $0x30] sm:$0xff]
        %v239 = vld [vmem:[%s233 + $0x38] sm:$0xff]
        %v240 = vld [vmem:[%s233 + $0x48] sm:$0xff]
        %v241 = vld [vmem:[%s233 + $0x50] sm:$0xff]
        %v242 = vld [vmem:[%s233 + $0x60] sm:$0xff]
        %v243 = vld [vmem:[%s233 + $0x68] sm:$0xff]
        %v244 = vld [vmem:[%s233 + $0x78] sm:$0xff]
        %v245 = vld [vmem:[%s233 + $0x80] sm:$0xff]
        %v246 = vld [vmem:[%s233 + $0x90] sm:$0xff]
        %v247 = vld [vmem:[%s233 + $0x98] sm:$0xff]
        %v248 = vld [vmem:[%s233 + $0xa8] sm:$0xff]
        %v249 = vld [vmem:[%s233 + $0xb0] sm:$0xff]
        %v250 = vld [vmem:[%s233 + $0xc0] sm:$0xff]
        %v251 = vld [vmem:[%s233 + $0xc8] sm:$0xff]
        %v252 = vld [vmem:[%s233 + $0xd8] sm:$0xff]
        %v253 = vld [vmem:[%s233 + $0xe0] sm:$0xff]
        %v254 = vld [vmem:[%s233 + $0xf0] sm:$0xff]
        %v255 = vld [vmem:[%s233 + $0xf8] sm:$0xff]
        %v256 = vld [vmem:[%s233 + $0x108] sm:$0xff]
        %v257 = vld [vmem:[%s233 + $0x110] sm:$0xff]
        %v258 = vld [vmem:[%s233 + $0x120] sm:$0xff]
        %v259 = vld [vmem:[%s233 + $0x128] sm:$0xff]
        %v260 = vld [vmem:[%s233 + $0x138] sm:$0xff]
        %v261 = vld [vmem:[%s233 + $0x140] sm:$0xff]
        %v262 = vld [vmem:[%s233 + $0x150] sm:$0xff]
        %v263 = vld [vmem:[%s233 + $0x158] sm:$0xff]
        %v264 = vld [vmem:[%s233 + $0x168] sm:$0xff]
        %v265 = vld [vmem:[%s233 + $0x170] sm:$0xff]
        %v266 = vld [vmem:[%s1] sm:$0xf]
        %v267 = vld [vmem:[%s233 + $0x1] sm:$0xff]
        %v268 = vld [vmem:[%s233 + $0x9] sm:$0xff]
        %v269 = vld [vmem:[%s233 + $0x19] sm:$0xff]
        %v270 = vld [vmem:[%s233 + $0x21] sm:$0xff]
        %v271 = vld [vmem:[%s233 + $0x31] sm:$0xff]
        %v272 = vld [vmem:[%s233 + $0x39] sm:$0xff]
        %v273 = vld [vmem:[%s233 + $0x49] sm:$0xff]
        %v274 = vld [vmem:[%s233 + $0x51] sm:$0xff]
        %v275 = vld [vmem:[%s233 + $0x61] sm:$0xff]
        %v276 = vld [vmem:[%s233 + $0x69] sm:$0xff]
        %v277 = vld [vmem:[%s233 + $0x79] sm:$0xff]
        %v278 = vld [vmem:[%s233 + $0x81] sm:$0xff]
        %v279 = vld [vmem:[%s233 + $0x91] sm:$0xff]
        %v280 = vld [vmem:[%s233 + $0x99] sm:$0xff]
        %v281 = vld [vmem:[%s233 + $0xa9] sm:$0xff]
        %v282 = vld [vmem:[%s233 + $0xb1] sm:$0xff]
        %v283 = vld [vmem:[%s233 + $0xc1] sm:$0xff]
        %v284 = vld [vmem:[%s233 + $0xc9] sm:$0xff]
        %v285 = vld [vmem:[%s233 + $0xd9] sm:$0xff]
        %v286 = vld [vmem:[%s233 + $0xe1] sm:$0xff]
        %v287 = vld [vmem:[%s233 + $0xf1] sm:$0xff]
        %v288 = vld [vmem:[%s233 + $0xf9] sm:$0xff]
        %v289 = vld [vmem:[%s233 + $0x109] sm:$0xff]
        %v290 = vld [vmem:[%s233 + $0x111] sm:$0xff]
        %v291 = vld [vmem:[%s233 + $0x121] sm:$0xff]
        %v292 = vld [vmem:[%s233 + $0x129] sm:$0xff]
        %v293 = vld [vmem:[%s233 + $0x139] sm:$0xff]
        %v294 = vld [vmem:[%s233 + $0x141] sm:$0xff]
        %v295 = vld [vmem:[%s233 + $0x151] sm:$0xff]
        %v296 = vld [vmem:[%s233 + $0x159] sm:$0xff]
        %v297 = vld [vmem:[%s233 + $0x169] sm:$0xff]
        %v298 = vld [vmem:[%s233 + $0x171] sm:$0xff]
        %s299 = scalar_lea.vmem %s1, 4
        %v300 = vld [vmem:[%s299] sm:$0xf]
        %vm301 = vcmask 31744
        %v303 = vsel %vm301, %v267, 0
        %v306 = vsel %vm301, %v268, 0
        %v309 = vsel %vm301, %v269, 0
        %v312 = vsel %vm301, %v270, 0
        %v315 = vsel %vm301, %v271, 0
        %v318 = vsel %vm301, %v272, 0
        %v321 = vsel %vm301, %v273, 0
        %v324 = vsel %vm301, %v274, 0
        %v327 = vsel %vm301, %v275, 0
        %v330 = vsel %vm301, %v276, 0
        %v333 = vsel %vm301, %v277, 0
        %v336 = vsel %vm301, %v278, 0
        %v339 = vsel %vm301, %v279, 0
        %v342 = vsel %vm301, %v280, 0
        %v345 = vsel %vm301, %v281, 0
        %v348 = vsel %vm301, %v282, 0
        %v351 = vsel %vm301, %v283, 0
        %v354 = vsel %vm301, %v284, 0
        %v357 = vsel %vm301, %v285, 0
        %v360 = vsel %vm301, %v286, 0
        %v363 = vsel %vm301, %v287, 0
        %v366 = vsel %vm301, %v288, 0
        %v369 = vsel %vm301, %v289, 0
        %v372 = vsel %vm301, %v290, 0
        %v375 = vsel %vm301, %v291, 0
        %v378 = vsel %vm301, %v292, 0
        %v381 = vsel %vm301, %v293, 0
        %v384 = vsel %vm301, %v294, 0
        %v387 = vsel %vm301, %v295, 0
        %v390 = vsel %vm301, %v296, 0
        %v393 = vsel %vm301, %v297, 0
        %v396 = vsel %vm301, %v298, 0
        %vm398 = vcmask 1043456
        %v400 = vsel %vm398, %v300, 0
        %402 = vmatprep.subr.mxu0 0.0
        %403 = vmatpush1.msra.mxu0 %v400
        %404 = vmatprep.subr.mxu0 0.0
        %405 = vmatpush1.msra.mxu0 0.0
        %406 = vmatprep.subr.mxu0 0.0
        %407 = vmatpush1.msra.mxu0 0.0
        %408 = vmatprep.subr.mxu0 0.0
        %409 = vmatpush1.msra.mxu0 0.0
        %410 = vmatprep.subr.mxu0 0.0
        %411 = vmatpush1.msra.mxu0 0.0
        %412 = vmatprep.subr.mxu0 0.0
        %413 = vmatpush1.msra.mxu0 0.0
        %414 = vmatprep.subr.mxu0 0.0
        %415 = vmatpush1.msra.mxu0 0.0
        %416 = vmatprep.subr.mxu0 0.0
        %417 = vmatpush1.msra.mxu0 0.0
        %418 = vmatprep.subr.mxu0 0.0
        %419 = vmatpush1.msra.mxu0 0.0
        %420 = vmatprep.subr.mxu0 0.0
        %421 = vmatpush1.msra.mxu0 0.0
        %422 = vmatprep.subr.mxu0 0.0
        %423 = vmatpush1.msra.mxu0 0.0
        %424 = vmatprep.subr.mxu0 0.0
        %425 = vmatpush1.msra.mxu0 0.0
        %426 = vmatprep.subr.mxu0 0.0
        %427 = vmatpush1.msra.mxu0 0.0
        %428 = vmatprep.subr.mxu0 0.0
        %429 = vmatpush1.msra.mxu0 0.0
        %430 = vmatprep.subr.mxu0 0.0
        %431 = vmatpush1.msra.mxu0 0.0
        %432 = vmatprep.subr.mxu0 0.0
        %433 = vmatpush1.msra.mxu0 0.0
        %434 = vmatprep.subr.mxu0 0.0
        %435 = vmatpush1.msra.mxu0 0.0
        %436 = vmatprep.subr.mxu0 0.0
        %437 = vmatpush1.msra.mxu0 0.0
        %438 = vmatprep.subr.mxu0 0.0
        %439 = vmatpush1.msra.mxu0 0.0
        %440 = vmatprep.subr.mxu0 0.0
        %441 = vmatpush1.msra.mxu0 0.0
        %442 = vmatprep.subr.mxu0 0.0
        %443 = vmatpush1.msra.mxu0 0.0
        %444 = vmatprep.subr.mxu0 0.0
        %445 = vmatpush1.msra.mxu0 0.0
        %446 = vmatprep.subr.mxu0 0.0
        %447 = vmatpush1.msra.mxu0 0.0
        %448 = vmatprep.subr.mxu0 0.0
        %449 = vmatpush1.msra.mxu0 0.0
        %450 = vmatprep.subr.mxu0 0.0
        %451 = vmatpush1.msra.mxu0 0.0
        %452 = vmatprep.subr.mxu0 0.0
        %453 = vmatpush1.msra.mxu0 0.0
        %454 = vmatprep.subr.mxu0 0.0
        %455 = vmatpush1.msra.mxu0 0.0
        %456 = vmatprep.subr.mxu0 0.0
        %457 = vmatpush1.msra.mxu0 0.0
        %458 = vmatprep.subr.mxu0 0.0
        %459 = vmatpush1.msra.mxu0 0.0
        %460 = vmatprep.subr.mxu0 0.0
        %461 = vmatpush1.msra.mxu0 0.0
        %462 = vmatprep.subr.mxu0 0.0
        %463 = vmatpush1.msra.mxu0 0.0
        %464 = vmatprep.subr.mxu0 0.0
        %465 = vmatpush1.msra.mxu0 0.0
        %466 = vmatprep.mubr.f32.mxu0 0.0
        %467 = vmatmul.mubr.f32.gmra.mrb[0].mxu0 %v303
        %v468 = vpop.f32.mrb[0].mxu0
        %v469 = vadd.f32 0.0, %v468
        %v470 = vpop.f32.mrb[0].mxu0
        %471 = vmatprep.mubr.f32.mxu0 0.0
        %472 = vmatmul.mubr.f32.gmra.mrb[0].mxu0 %v306
        %v473 = vpop.f32.mrb[0].mxu0
        %v474 = vadd.f32 0.0, %v473
        %v475 = vpop.f32.mrb[0].mxu0
        %476 = vmatprep.mubr.f32.mxu0 0.0
        %477 = vmatmul.mubr.f32.gmra.mrb[0].mxu0 %v309
        %v478 = vpop.f32.mrb[0].mxu0
        %v479 = vadd.f32 0.0, %v478
        %v480 = vpop.f32.mrb[0].mxu0
        %481 = vmatprep.mubr.f32.mxu0 0.0
        %482 = vmatmul.mubr.f32.gmra.mrb[0].mxu0 %v312
        %v483 = vpop.f32.mrb[0].mxu0
        %v484 = vadd.f32 0.0, %v483
        %v485 = vpop.f32.mrb[0].mxu0
        %486 = vmatprep.mubr.f32.mxu0 0.0
        %487 = vmatmul.mubr.f32.gmra.mrb[0].mxu0 %v315
        %v488 = vpop.f32.mrb[0].mxu0
        %v489 = vadd.f32 0.0, %v488
        %v490 = vpop.f32.mrb[0].mxu0
        %491 = vmatprep.mubr.f32.mxu0 0.0
        %492 = vmatmul.mubr.f32.gmra.mrb[0].mxu0 %v318
        %v493 = vpop.f32.mrb[0].mxu0
        %v494 = vadd.f32 0.0, %v493
        %v495 = vpop.f32.mrb[0].mxu0
        %496 = vmatprep.mubr.f32.mxu0 0.0
        %497 = vmatmul.mubr.f32.gmra.mrb[0].mxu0 %v321
        %v498 = vpop.f32.mrb[0].mxu0
        %v499 = vadd.f32 0.0, %v498
        %v500 = vpop.f32.mrb[0].mxu0
        %501 = vmatprep.mubr.f32.mxu0 0.0
        %502 = vmatmul.mubr.f32.gmra.mrb[0].mxu0 %v324
        %v503 = vpop.f32.mrb[0].mxu0
        %v504 = vadd.f32 0.0, %v503
        %v505 = vpop.f32.mrb[0].mxu0
        %506 = vmatprep.mubr.f32.mxu0 0.0
        %507 = vmatmul.mubr.f32.gmra.mrb[0].mxu0 %v327
        %v508 = vpop.f32.mrb[0].mxu0
        %v509 = vadd.f32 0.0, %v508
        %v510 = vpop.f32.mrb[0].mxu0
        %511 = vmatprep.mubr.f32.mxu0 0.0
        %512 = vmatmul.mubr.f32.gmra.mrb[0].mxu0 %v330
        %v513 = vpop.f32.mrb[0].mxu0
        %v514 = vadd.f32 0.0, %v513
        %v515 = vpop.f32.mrb[0].mxu0
        %516 = vmatprep.mubr.f32.mxu0 0.0
        %517 = vmatmul.mubr.f32.gmra.mrb[0].mxu0 %v333
        %v518 = vpop.f32.mrb[0].mxu0
        %v519 = vadd.f32 0.0, %v518
        %v520 = vpop.f32.mrb[0].mxu0
        %521 = vmatprep.mubr.f32.mxu0 0.0
        %522 = vmatmul.mubr.f32.gmra.mrb[0].mxu0 %v336
        %v523 = vpop.f32.mrb[0].mxu0
        %v524 = vadd.f32 0.0, %v523
        %v525 = vpop.f32.mrb[0].mxu0
        %526 = vmatprep.mubr.f32.mxu0 0.0
        %527 = vmatmul.mubr.f32.gmra.mrb[0].mxu0 %v339
        %v528 = vpop.f32.mrb[0].mxu0
        %v529 = vadd.f32 0.0, %v528
        %v530 = vpop.f32.mrb[0].mxu0
        %531 = vmatprep.mubr.f32.mxu0 0.0
        %532 = vmatmul.mubr.f32.gmra.mrb[0].mxu0 %v342
        %v533 = vpop.f32.mrb[0].mxu0
        %v534 = vadd.f32 0.0, %v533
        %v535 = vpop.f32.mrb[0].mxu0
        %536 = vmatprep.mubr.f32.mxu0 0.0
        %537 = vmatmul.mubr.f32.gmra.mrb[0].mxu0 %v345
        %v538 = vpop.f32.mrb[0].mxu0
        %v539 = vadd.f32 0.0, %v538
        %v540 = vpop.f32.mrb[0].mxu0
        %541 = vmatprep.mubr.f32.mxu0 0.0
        %542 = vmatmul.mubr.f32.gmra.mrb[0].mxu0 %v348
        %v543 = vpop.f32.mrb[0].mxu0
        %v544 = vadd.f32 0.0, %v543
        %v545 = vpop.f32.mrb[0].mxu0
        %546 = vmatprep.mubr.f32.mxu0 0.0
        %547 = vmatmul.mubr.f32.gmra.mrb[0].mxu0 %v351
        %v548 = vpop.f32.mrb[0].mxu0
        %v549 = vadd.f32 0.0, %v548
        %v550 = vpop.f32.mrb[0].mxu0
        %551 = vmatprep.mubr.f32.mxu0 0.0
        %552 = vmatmul.mubr.f32.gmra.mrb[0].mxu0 %v354
        %v553 = vpop.f32.mrb[0].mxu0
        %v554 = vadd.f32 0.0, %v553
        %v555 = vpop.f32.mrb[0].mxu0
        %556 = vmatprep.mubr.f32.mxu0 0.0
        %557 = vmatmul.mubr.f32.gmra.mrb[0].mxu0 %v357
        %v558 = vpop.f32.mrb[0].mxu0
        %v559 = vadd.f32 0.0, %v558
        %v560 = vpop.f32.mrb[0].mxu0
        %561 = vmatprep.mubr.f32.mxu0 0.0
        %562 = vmatmul.mubr.f32.gmra.mrb[0].mxu0 %v360
        %v563 = vpop.f32.mrb[0].mxu0
        %v564 = vadd.f32 0.0, %v563
        %v565 = vpop.f32.mrb[0].mxu0
        %566 = vmatprep.mubr.f32.mxu0 0.0
        %567 = vmatmul.mubr.f32.gmra.mrb[0].mxu0 %v363
        %v568 = vpop.f32.mrb[0].mxu0
        %v569 = vadd.f32 0.0, %v568
        %v570 = vpop.f32.mrb[0].mxu0
        %571 = vmatprep.mubr.f32.mxu0 0.0
        %572 = vmatmul.mubr.f32.gmra.mrb[0].mxu0 %v366
        %v573 = vpop.f32.mrb[0].mxu0
        %v574 = vadd.f32 0.0, %v573
        %v575 = vpop.f32.mrb[0].mxu0
        %576 = vmatprep.mubr.f32.mxu0 0.0
        %577 = vmatmul.mubr.f32.gmra.mrb[0].mxu0 %v369
        %v578 = vpop.f32.mrb[0].mxu0
        %v579 = vadd.f32 0.0, %v578
        %v580 = vpop.f32.mrb[0].mxu0
        %581 = vmatprep.mubr.f32.mxu0 0.0
        %582 = vmatmul.mubr.f32.gmra.mrb[0].mxu0 %v372
        %v583 = vpop.f32.mrb[0].mxu0
        %v584 = vadd.f32 0.0, %v583
        %v585 = vpop.f32.mrb[0].mxu0
        %586 = vmatprep.mubr.f32.mxu0 0.0
        %587 = vmatmul.mubr.f32.gmra.mrb[0].mxu0 %v375
        %v588 = vpop.f32.mrb[0].mxu0
        %v589 = vadd.f32 0.0, %v588
        %v590 = vpop.f32.mrb[0].mxu0
        %591 = vmatprep.mubr.f32.mxu0 0.0
        %592 = vmatmul.mubr.f32.gmra.mrb[0].mxu0 %v378
        %v593 = vpop.f32.mrb[0].mxu0
        %v594 = vadd.f32 0.0, %v593
        %v595 = vpop.f32.mrb[0].mxu0
        %596 = vmatprep.mubr.f32.mxu0 0.0
        %597 = vmatmul.mubr.f32.gmra.mrb[0].mxu0 %v381
        %v598 = vpop.f32.mrb[0].mxu0
        %v599 = vadd.f32 0.0, %v598
        %v600 = vpop.f32.mrb[0].mxu0
        %601 = vmatprep.mubr.f32.mxu0 0.0
        %602 = vmatmul.mubr.f32.gmra.mrb[0].mxu0 %v384
        %v603 = vpop.f32.mrb[0].mxu0
        %v604 = vadd.f32 0.0, %v603
        %v605 = vpop.f32.mrb[0].mxu0
        %606 = vmatprep.mubr.f32.mxu0 0.0
        %607 = vmatmul.mubr.f32.gmra.mrb[0].mxu0 %v387
        %v608 = vpop.f32.mrb[0].mxu0
        %v609 = vadd.f32 0.0, %v608
        %v610 = vpop.f32.mrb[0].mxu0
        %611 = vmatprep.mubr.f32.mxu0 0.0
        %612 = vmatmul.mubr.f32.gmra.mrb[0].mxu0 %v390
        %v613 = vpop.f32.mrb[0].mxu0
        %v614 = vadd.f32 0.0, %v613
        %v615 = vpop.f32.mrb[0].mxu0
        %616 = vmatprep.mubr.f32.mxu0 0.0
        %617 = vmatmul.mubr.f32.gmra.mrb[0].mxu0 %v393
        %v618 = vpop.f32.mrb[0].mxu0
        %v619 = vadd.f32 0.0, %v618
        %v620 = vpop.f32.mrb[0].mxu0
        %621 = vmatprep.mubr.f32.mxu0 0.0
        %622 = vmatmul.mubr.f32.gmra.mrb[0].mxu0 %v396
        %v623 = vpop.f32.mrb[0].mxu0
        %v624 = vadd.f32 0.0, %v623
        %v625 = vpop.f32.mrb[0].mxu0
        %626 = vdwg.mxu0
        %v628 = vsel %vm301, %v234, 0
        %v631 = vsel %vm301, %v235, 0
        %v634 = vsel %vm301, %v236, 0
        %v637 = vsel %vm301, %v237, 0
        %v640 = vsel %vm301, %v238, 0
        %v643 = vsel %vm301, %v239, 0
        %v646 = vsel %vm301, %v240, 0
        %v649 = vsel %vm301, %v241, 0
        %v652 = vsel %vm301, %v242, 0
        %v655 = vsel %vm301, %v243, 0
        %v658 = vsel %vm301, %v244, 0
        %v661 = vsel %vm301, %v245, 0
        %v664 = vsel %vm301, %v246, 0
        %v667 = vsel %vm301, %v247, 0
        %v670 = vsel %vm301, %v248, 0
        %v673 = vsel %vm301, %v249, 0
        %v676 = vsel %vm301, %v250, 0
        %v679 = vsel %vm301, %v251, 0
        %v682 = vsel %vm301, %v252, 0
        %v685 = vsel %vm301, %v253, 0
        %v688 = vsel %vm301, %v254, 0
        %v691 = vsel %vm301, %v255, 0
        %v694 = vsel %vm301, %v256, 0
        %v697 = vsel %vm301, %v257, 0
        %v700 = vsel %vm301, %v258, 0
        %v703 = vsel %vm301, %v259, 0
        %v706 = vsel %vm301, %v260, 0
        %v709 = vsel %vm301, %v261, 0
        %v712 = vsel %vm301, %v262, 0
        %v715 = vsel %vm301, %v263, 0
        %v718 = vsel %vm301, %v264, 0
        %v721 = vsel %vm301, %v265, 0
        %v724 = vsel %vm398, %v266, 0
        %726 = vmatprep.subr.mxu0 0.0
        %727 = vmatpush1.msra.mxu0 %v724
        %728 = vmatprep.subr.mxu0 0.0
        %729 = vmatpush1.msra.mxu0 0.0
        %730 = vmatprep.subr.mxu0 0.0
        %731 = vmatpush1.msra.mxu0 0.0
        %732 = vmatprep.subr.mxu0 0.0
        %733 = vmatpush1.msra.mxu0 0.0
        %734 = vmatprep.subr.mxu0 0.0
        %735 = vmatpush1.msra.mxu0 0.0
        %736 = vmatprep.subr.mxu0 0.0
        %737 = vmatpush1.msra.mxu0 0.0
        %738 = vmatprep.subr.mxu0 0.0
        %739 = vmatpush1.msra.mxu0 0.0
        %740 = vmatprep.subr.mxu0 0.0
        %741 = vmatpush1.msra.mxu0 0.0
        %742 = vmatprep.subr.mxu0 0.0
        %743 = vmatpush1.msra.mxu0 0.0
        %744 = vmatprep.subr.mxu0 0.0
        %745 = vmatpush1.msra.mxu0 0.0
        %746 = vmatprep.subr.mxu0 0.0
        %747 = vmatpush1.msra.mxu0 0.0
        %748 = vmatprep.subr.mxu0 0.0
        %749 = vmatpush1.msra.mxu0 0.0
        %750 = vmatprep.subr.mxu0 0.0
        %751 = vmatpush1.msra.mxu0 0.0
        %752 = vmatprep.subr.mxu0 0.0
        %753 = vmatpush1.msra.mxu0 0.0
        %754 = vmatprep.subr.mxu0 0.0
        %755 = vmatpush1.msra.mxu0 0.0
        %756 = vmatprep.subr.mxu0 0.0
        %757 = vmatpush1.msra.mxu0 0.0
        %758 = vmatprep.subr.mxu0 0.0
        %759 = vmatpush1.msra.mxu0 0.0
        %760 = vmatprep.subr.mxu0 0.0
        %761 = vmatpush1.msra.mxu0 0.0
        %762 = vmatprep.subr.mxu0 0.0
        %763 = vmatpush1.msra.mxu0 0.0
        %764 = vmatprep.subr.mxu0 0.0
        %765 = vmatpush1.msra.mxu0 0.0
        %766 = vmatprep.subr.mxu0 0.0
        %767 = vmatpush1.msra.mxu0 0.0
        %768 = vmatprep.subr.mxu0 0.0
        %769 = vmatpush1.msra.mxu0 0.0
        %770 = vmatprep.subr.mxu0 0.0
        %771 = vmatpush1.msra.mxu0 0.0
        %772 = vmatprep.subr.mxu0 0.0
        %773 = vmatpush1.msra.mxu0 0.0
        %774 = vmatprep.subr.mxu0 0.0
        %775 = vmatpush1.msra.mxu0 0.0
        %776 = vmatprep.subr.mxu0 0.0
        %777 = vmatpush1.msra.mxu0 0.0
        %778 = vmatprep.subr.mxu0 0.0
        %779 = vmatpush1.msra.mxu0 0.0
        %780 = vmatprep.subr.mxu0 0.0
        %781 = vmatpush1.msra.mxu0 0.0
        %782 = vmatprep.subr.mxu0 0.0
        %783 = vmatpush1.msra.mxu0 0.0
        %784 = vmatprep.subr.mxu0 0.0
        %785 = vmatpush1.msra.mxu0 0.0
        %786 = vmatprep.subr.mxu0 0.0
        %787 = vmatpush1.msra.mxu0 0.0
        %788 = vmatprep.subr.mxu0 0.0
        %789 = vmatpush1.msra.mxu0 0.0
        %790 = vmatprep.mubr.f32.mxu0 0.0
        %791 = vmatmul.mubr.f32.gmra.mrb[0].mxu0 %v628
        %v792 = vpop.f32.mrb[0].mxu0
        %v793 = vadd.f32 %v469, %v792
        %v794 = vpop.f32.mrb[0].mxu0
        %795 = vmatprep.mubr.f32.mxu0 0.0
        %796 = vmatmul.mubr.f32.gmra.mrb[0].mxu0 %v631
        %v797 = vpop.f32.mrb[0].mxu0
        %v798 = vadd.f32 %v474, %v797
        %v799 = vpop.f32.mrb[0].mxu0
        %800 = vmatprep.mubr.f32.mxu0 0.0
        %801 = vmatmul.mubr.f32.gmra.mrb[0].mxu0 %v634
        %v802 = vpop.f32.mrb[0].mxu0
        %v803 = vadd.f32 %v479, %v802
        %v804 = vpop.f32.mrb[0].mxu0
        %805 = vmatprep.mubr.f32.mxu0 0.0
        %806 = vmatmul.mubr.f32.gmra.mrb[0].mxu0 %v637
        %v807 = vpop.f32.mrb[0].mxu0
        %v808 = vadd.f32 %v484, %v807
        %v809 = vpop.f32.mrb[0].mxu0
        %810 = vmatprep.mubr.f32.mxu0 0.0
        %811 = vmatmul.mubr.f32.gmra.mrb[0].mxu0 %v640
        %v812 = vpop.f32.mrb[0].mxu0
        %v813 = vadd.f32 %v489, %v812
        %v814 = vpop.f32.mrb[0].mxu0
        %815 = vmatprep.mubr.f32.mxu0 0.0
        %816 = vmatmul.mubr.f32.gmra.mrb[0].mxu0 %v643
        %v817 = vpop.f32.mrb[0].mxu0
        %v818 = vadd.f32 %v494, %v817
        %v819 = vpop.f32.mrb[0].mxu0
        %820 = vmatprep.mubr.f32.mxu0 0.0
        %821 = vmatmul.mubr.f32.gmra.mrb[0].mxu0 %v646
        %v822 = vpop.f32.mrb[0].mxu0
        %v823 = vadd.f32 %v499, %v822
        %v824 = vpop.f32.mrb[0].mxu0
        %825 = vmatprep.mubr.f32.mxu0 0.0
        %826 = vmatmul.mubr.f32.gmra.mrb[0].mxu0 %v649
        %v827 = vpop.f32.mrb[0].mxu0
        %v828 = vadd.f32 %v504, %v827
        %v829 = vpop.f32.mrb[0].mxu0
        %830 = vmatprep.mubr.f32.mxu0 0.0
        %831 = vmatmul.mubr.f32.gmra.mrb[0].mxu0 %v652
        %v832 = vpop.f32.mrb[0].mxu0
        %v833 = vadd.f32 %v509, %v832
        %v834 = vpop.f32.mrb[0].mxu0
        %835 = vmatprep.mubr.f32.mxu0 0.0
        %836 = vmatmul.mubr.f32.gmra.mrb[0].mxu0 %v655
        %v837 = vpop.f32.mrb[0].mxu0
        %v838 = vadd.f32 %v514, %v837
        %v839 = vpop.f32.mrb[0].mxu0
        %840 = vmatprep.mubr.f32.mxu0 0.0
        %841 = vmatmul.mubr.f32.gmra.mrb[0].mxu0 %v658
        %v842 = vpop.f32.mrb[0].mxu0
        %v843 = vadd.f32 %v519, %v842
        %v844 = vpop.f32.mrb[0].mxu0
        %845 = vmatprep.mubr.f32.mxu0 0.0
        %846 = vmatmul.mubr.f32.gmra.mrb[0].mxu0 %v661
        %v847 = vpop.f32.mrb[0].mxu0
        %v848 = vadd.f32 %v524, %v847
        %v849 = vpop.f32.mrb[0].mxu0
        %850 = vmatprep.mubr.f32.mxu0 0.0
        %851 = vmatmul.mubr.f32.gmra.mrb[0].mxu0 %v664
        %v852 = vpop.f32.mrb[0].mxu0
        %v853 = vadd.f32 %v529, %v852
        %v854 = vpop.f32.mrb[0].mxu0
        %855 = vmatprep.mubr.f32.mxu0 0.0
        %856 = vmatmul.mubr.f32.gmra.mrb[0].mxu0 %v667
        %v857 = vpop.f32.mrb[0].mxu0
        %v858 = vadd.f32 %v534, %v857
        %v859 = vpop.f32.mrb[0].mxu0
        %860 = vmatprep.mubr.f32.mxu0 0.0
        %861 = vmatmul.mubr.f32.gmra.mrb[0].mxu0 %v670
        %v862 = vpop.f32.mrb[0].mxu0
        %v863 = vadd.f32 %v539, %v862
        %v864 = vpop.f32.mrb[0].mxu0
        %865 = vmatprep.mubr.f32.mxu0 0.0
        %866 = vmatmul.mubr.f32.gmra.mrb[0].mxu0 %v673
        %v867 = vpop.f32.mrb[0].mxu0
        %v868 = vadd.f32 %v544, %v867
        %v869 = vpop.f32.mrb[0].mxu0
        %870 = vmatprep.mubr.f32.mxu0 0.0
        %871 = vmatmul.mubr.f32.gmra.mrb[0].mxu0 %v676
        %v872 = vpop.f32.mrb[0].mxu0
        %v873 = vadd.f32 %v549, %v872
        %v874 = vpop.f32.mrb[0].mxu0
        %875 = vmatprep.mubr.f32.mxu0 0.0
        %876 = vmatmul.mubr.f32.gmra.mrb[0].mxu0 %v679
        %v877 = vpop.f32.mrb[0].mxu0
        %v878 = vadd.f32 %v554, %v877
        %v879 = vpop.f32.mrb[0].mxu0
        %880 = vmatprep.mubr.f32.mxu0 0.0
        %881 = vmatmul.mubr.f32.gmra.mrb[0].mxu0 %v682
        %v882 = vpop.f32.mrb[0].mxu0
        %v883 = vadd.f32 %v559, %v882
        %v884 = vpop.f32.mrb[0].mxu0
        %885 = vmatprep.mubr.f32.mxu0 0.0
        %886 = vmatmul.mubr.f32.gmra.mrb[0].mxu0 %v685
        %v887 = vpop.f32.mrb[0].mxu0
        %v888 = vadd.f32 %v564, %v887
        %v889 = vpop.f32.mrb[0].mxu0
        %890 = vmatprep.mubr.f32.mxu0 0.0
        %891 = vmatmul.mubr.f32.gmra.mrb[0].mxu0 %v688
        %v892 = vpop.f32.mrb[0].mxu0
        %v893 = vadd.f32 %v569, %v892
        %v894 = vpop.f32.mrb[0].mxu0
        %895 = vmatprep.mubr.f32.mxu0 0.0
        %896 = vmatmul.mubr.f32.gmra.mrb[0].mxu0 %v691
        %v897 = vpop.f32.mrb[0].mxu0
        %v898 = vadd.f32 %v574, %v897
        %v899 = vpop.f32.mrb[0].mxu0
        %900 = vmatprep.mubr.f32.mxu0 0.0
        %901 = vmatmul.mubr.f32.gmra.mrb[0].mxu0 %v694
        %v902 = vpop.f32.mrb[0].mxu0
        %v903 = vadd.f32 %v579, %v902
        %v904 = vpop.f32.mrb[0].mxu0
        %905 = vmatprep.mubr.f32.mxu0 0.0
        %906 = vmatmul.mubr.f32.gmra.mrb[0].mxu0 %v697
        %v907 = vpop.f32.mrb[0].mxu0
        %v908 = vadd.f32 %v584, %v907
        %v909 = vpop.f32.mrb[0].mxu0
        %910 = vmatprep.mubr.f32.mxu0 0.0
        %911 = vmatmul.mubr.f32.gmra.mrb[0].mxu0 %v700
        %v912 = vpop.f32.mrb[0].mxu0
        %v913 = vadd.f32 %v589, %v912
        %v914 = vpop.f32.mrb[0].mxu0
        %915 = vmatprep.mubr.f32.mxu0 0.0
        %916 = vmatmul.mubr.f32.gmra.mrb[0].mxu0 %v703
        %v917 = vpop.f32.mrb[0].mxu0
        %v918 = vadd.f32 %v594, %v917
        %v919 = vpop.f32.mrb[0].mxu0
        %920 = vmatprep.mubr.f32.mxu0 0.0
        %921 = vmatmul.mubr.f32.gmra.mrb[0].mxu0 %v706
        %v922 = vpop.f32.mrb[0].mxu0
        %v923 = vadd.f32 %v599, %v922
        %v924 = vpop.f32.mrb[0].mxu0
        %925 = vmatprep.mubr.f32.mxu0 0.0
        %926 = vmatmul.mubr.f32.gmra.mrb[0].mxu0 %v709
        %v927 = vpop.f32.mrb[0].mxu0
        %v928 = vadd.f32 %v604, %v927
        %v929 = vpop.f32.mrb[0].mxu0
        %930 = vmatprep.mubr.f32.mxu0 0.0
        %931 = vmatmul.mubr.f32.gmra.mrb[0].mxu0 %v712
        %v932 = vpop.f32.mrb[0].mxu0
        %v933 = vadd.f32 %v609, %v932
        %v934 = vpop.f32.mrb[0].mxu0
        %935 = vmatprep.mubr.f32.mxu0 0.0
        %936 = vmatmul.mubr.f32.gmra.mrb[0].mxu0 %v715
        %v937 = vpop.f32.mrb[0].mxu0
        %v938 = vadd.f32 %v614, %v937
        %v939 = vpop.f32.mrb[0].mxu0
        %940 = vmatprep.mubr.f32.mxu0 0.0
        %941 = vmatmul.mubr.f32.gmra.mrb[0].mxu0 %v718
        %v942 = vpop.f32.mrb[0].mxu0
        %v943 = vadd.f32 %v619, %v942
        %v944 = vpop.f32.mrb[0].mxu0
        %945 = vmatprep.mubr.f32.mxu0 0.0
        %946 = vmatmul.mubr.f32.gmra.mrb[0].mxu0 %v721
        %v947 = vpop.f32.mrb[0].mxu0
        %v948 = vadd.f32 %v624, %v947
        %v949 = vpop.f32.mrb[0].mxu0
        %950 = vdwg.mxu0
        %v951 = vld [vmem:[%s233 + $0x2] sm:$0xff]
        %v952 = vld [vmem:[%s233 + $0xa] sm:$0xff]
        %v953 = vld [vmem:[%s233 + $0x1a] sm:$0xff]
        %v954 = vld [vmem:[%s233 + $0x22] sm:$0xff]
        %v955 = vld [vmem:[%s233 + $0x32] sm:$0xff]
        %v956 = vld [vmem:[%s233 + $0x3a] sm:$0xff]
        %v957 = vld [vmem:[%s233 + $0x4a] sm:$0xff]
        %v958 = vld [vmem:[%s233 + $0x52] sm:$0xff]
        %v959 = vld [vmem:[%s233 + $0x62] sm:$0xff]
        %v960 = vld [vmem:[%s233 + $0x6a] sm:$0xff]
        %v961 = vld [vmem:[%s233 + $0x7a] sm:$0xff]
        %v962 = vld [vmem:[%s233 + $0x82] sm:$0xff]
        %v963 = vld [vmem:[%s233 + $0x92] sm:$0xff]
        %v964 = vld [vmem:[%s233 + $0x9a] sm:$0xff]
        %v965 = vld [vmem:[%s233 + $0xaa] sm:$0xff]
        %v966 = vld [vmem:[%s233 + $0xb2] sm:$0xff]
        %v967 = vld [vmem:[%s233 + $0xc2] sm:$0xff]
        %v968 = vld [vmem:[%s233 + $0xca] sm:$0xff]
        %v969 = vld [vmem:[%s233 + $0xda] sm:$0xff]
        %v970 = vld [vmem:[%s233 + $0xe2] sm:$0xff]
        %v971 = vld [vmem:[%s233 + $0xf2] sm:$0xff]
        %v972 = vld [vmem:[%s233 + $0xfa] sm:$0xff]
        %v973 = vld [vmem:[%s233 + $0x10a] sm:$0xff]
        %v974 = vld [vmem:[%s233 + $0x112] sm:$0xff]
        %v975 = vld [vmem:[%s233 + $0x122] sm:$0xff]
        %v976 = vld [vmem:[%s233 + $0x12a] sm:$0xff]
        %v977 = vld [vmem:[%s233 + $0x13a] sm:$0xff]
        %v978 = vld [vmem:[%s233 + $0x142] sm:$0xff]
        %v979 = vld [vmem:[%s233 + $0x152] sm:$0xff]
        %v980 = vld [vmem:[%s233 + $0x15a] sm:$0xff]
        %v981 = vld [vmem:[%s233 + $0x16a] sm:$0xff]
        %v982 = vld [vmem:[%s233 + $0x172] sm:$0xff]
        %s983 = scalar_lea.vmem %s1, 8
        %v984 = vld [vmem:[%s983] sm:$0xf]
        %v986 = vsel %vm301, %v951, 0
        %v989 = vsel %vm301, %v952, 0
        %v992 = vsel %vm301, %v953, 0
        %v995 = vsel %vm301, %v954, 0
        %v998 = vsel %vm301, %v955, 0
        %v1001 = vsel %vm301, %v956, 0
        %v1004 = vsel %vm301, %v957, 0
        %v1007 = vsel %vm301, %v958, 0
        %v1010 = vsel %vm301, %v959, 0
        %v1013 = vsel %vm301, %v960, 0
        %v1016 = vsel %vm301, %v961, 0
        %v1019 = vsel %vm301, %v962, 0
        %v1022 = vsel %vm301, %v963, 0
        %v1025 = vsel %vm301, %v964, 0
        %v1028 = vsel %vm301, %v965, 0
        %v1031 = vsel %vm301, %v966, 0
        %v1034 = vsel %vm301, %v967, 0
        %v1037 = vsel %vm301, %v968, 0
        %v1040 = vsel %vm301, %v969, 0
        %v1043 = vsel %vm301, %v970, 0
        %v1046 = vsel %vm301, %v971, 0
        %v1049 = vsel %vm301, %v972, 0
        %v1052 = vsel %vm301, %v973, 0
        %v1055 = vsel %vm301, %v974, 0
        %v1058 = vsel %vm301, %v975, 0
        %v1061 = vsel %vm301, %v976, 0
        %v1064 = vsel %vm301, %v977, 0
        %v1067 = vsel %vm301, %v978, 0
        %v1070 = vsel %vm301, %v979, 0
        %v1073 = vsel %vm301, %v980, 0
        %v1076 = vsel %vm301, %v981, 0
        %v1079 = vsel %vm301, %v982, 0
        %v1082 = vsel %vm398, %v984, 0
        %1084 = vmatprep.subr.mxu0 0.0
        %1085 = vmatpush1.msra.mxu0 %v1082
        %1086 = vmatprep.subr.mxu0 0.0
        %1087 = vmatpush1.msra.mxu0 0.0
        %1088 = vmatprep.subr.mxu0 0.0
        %1089 = vmatpush1.msra.mxu0 0.0
        %1090 = vmatprep.subr.mxu0 0.0
        %1091 = vmatpush1.msra.mxu0 0.0
        %1092 = vmatprep.subr.mxu0 0.0
        %1093 = vmatpush1.msra.mxu0 0.0
        %1094 = vmatprep.subr.mxu0 0.0
        %1095 = vmatpush1.msra.mxu0 0.0
        %1096 = vmatprep.subr.mxu0 0.0
        %1097 = vmatpush1.msra.mxu0 0.0
        %1098 = vmatprep.subr.mxu0 0.0
        %1099 = vmatpush1.msra.mxu0 0.0
        %1100 = vmatprep.subr.mxu0 0.0
        %1101 = vmatpush1.msra.mxu0 0.0
        %1102 = vmatprep.subr.mxu0 0.0
        %1103 = vmatpush1.msra.mxu0 0.0
        %1104 = vmatprep.subr.mxu0 0.0
        %1105 = vmatpush1.msra.mxu0 0.0
        %1106 = vmatprep.subr.mxu0 0.0
        %1107 = vmatpush1.msra.mxu0 0.0
        %1108 = vmatprep.subr.mxu0 0.0
        %1109 = vmatpush1.msra.mxu0 0.0
        %1110 = vmatprep.subr.mxu0 0.0
        %1111 = vmatpush1.msra.mxu0 0.0
        %1112 = vmatprep.subr.mxu0 0.0
        %1113 = vmatpush1.msra.mxu0 0.0
        %1114 = vmatprep.subr.mxu0 0.0
        %1115 = vmatpush1.msra.mxu0 0.0
        %1116 = vmatprep.subr.mxu0 0.0
        %1117 = vmatpush1.msra.mxu0 0.0
        %1118 = vmatprep.subr.mxu0 0.0
        %1119 = vmatpush1.msra.mxu0 0.0
        %1120 = vmatprep.subr.mxu0 0.0
        %1121 = vmatpush1.msra.mxu0 0.0
        %1122 = vmatprep.subr.mxu0 0.0
        %1123 = vmatpush1.msra.mxu0 0.0
        %1124 = vmatprep.subr.mxu0 0.0
        %1125 = vmatpush1.msra.mxu0 0.0
        %1126 = vmatprep.subr.mxu0 0.0
        %1127 = vmatpush1.msra.mxu0 0.0
        %1128 = vmatprep.subr.mxu0 0.0
        %1129 = vmatpush1.msra.mxu0 0.0
        %1130 = vmatprep.subr.mxu0 0.0
        %1131 = vmatpush1.msra.mxu0 0.0
        %1132 = vmatprep.subr.mxu0 0.0
        %1133 = vmatpush1.msra.mxu0 0.0
        %1134 = vmatprep.subr.mxu0 0.0
        %1135 = vmatpush1.msra.mxu0 0.0
        %1136 = vmatprep.subr.mxu0 0.0
        %1137 = vmatpush1.msra.mxu0 0.0
        %1138 = vmatprep.subr.mxu0 0.0
        %1139 = vmatpush1.msra.mxu0 0.0
        %1140 = vmatprep.subr.mxu0 0.0
        %1141 = vmatpush1.msra.mxu0 0.0
        %1142 = vmatprep.subr.mxu0 0.0
        %1143 = vmatpush1.msra.mxu0 0.0
        %1144 = vmatprep.subr.mxu0 0.0
        %1145 = vmatpush1.msra.mxu0 0.0
        %1146 = vmatprep.subr.mxu0 0.0
        %1147 = vmatpush1.msra.mxu0 0.0
        %1148 = vmatprep.mubr.f32.mxu0 0.0
        %1149 = vmatmul.mubr.f32.gmra.mrb[0].mxu0 %v986
        %v1150 = vpop.f32.mrb[0].mxu0
        %v1151 = vadd.f32 0.0, %v1150
        %v1152 = vpop.f32.mrb[0].mxu0
        %1153 = vmatprep.mubr.f32.mxu0 0.0
        %1154 = vmatmul.mubr.f32.gmra.mrb[0].mxu0 %v989
        %v1155 = vpop.f32.mrb[0].mxu0
        %v1156 = vadd.f32 0.0, %v1155
        %v1157 = vpop.f32.mrb[0].mxu0
        %1158 = vmatprep.mubr.f32.mxu0 0.0
        %1159 = vmatmul.mubr.f32.gmra.mrb[0].mxu0 %v992
        %v1160 = vpop.f32.mrb[0].mxu0
        %v1161 = vadd.f32 0.0, %v1160
        %v1162 = vpop.f32.mrb[0].mxu0
        %1163 = vmatprep.mubr.f32.mxu0 0.0
        %1164 = vmatmul.mubr.f32.gmra.mrb[0].mxu0 %v995
        %v1165 = vpop.f32.mrb[0].mxu0
        %v1166 = vadd.f32 0.0, %v1165
        %v1167 = vpop.f32.mrb[0].mxu0
        %1168 = vmatprep.mubr.f32.mxu0 0.0
        %1169 = vmatmul.mubr.f32.gmra.mrb[0].mxu0 %v998
        %v1170 = vpop.f32.mrb[0].mxu0
        %v1171 = vadd.f32 0.0, %v1170
        %v1172 = vpop.f32.mrb[0].mxu0
        %1173 = vmatprep.mubr.f32.mxu0 0.0
        %1174 = vmatmul.mubr.f32.gmra.mrb[0].mxu0 %v1001
        %v1175 = vpop.f32.mrb[0].mxu0
        %v1176 = vadd.f32 0.0, %v1175
        %v1177 = vpop.f32.mrb[0].mxu0
        %1178 = vmatprep.mubr.f32.mxu0 0.0
        %1179 = vmatmul.mubr.f32.gmra.mrb[0].mxu0 %v1004
        %v1180 = vpop.f32.mrb[0].mxu0
        %v1181 = vadd.f32 0.0, %v1180
        %v1182 = vpop.f32.mrb[0].mxu0
        %1183 = vmatprep.mubr.f32.mxu0 0.0
        %1184 = vmatmul.mubr.f32.gmra.mrb[0].mxu0 %v1007
        %v1185 = vpop.f32.mrb[0].mxu0
        %v1186 = vadd.f32 0.0, %v1185
        %v1187 = vpop.f32.mrb[0].mxu0
        %1188 = vmatprep.mubr.f32.mxu0 0.0
        %1189 = vmatmul.mubr.f32.gmra.mrb[0].mxu0 %v1010
        %v1190 = vpop.f32.mrb[0].mxu0
        %v1191 = vadd.f32 0.0, %v1190
        %v1192 = vpop.f32.mrb[0].mxu0
        %1193 = vmatprep.mubr.f32.mxu0 0.0
        %1194 = vmatmul.mubr.f32.gmra.mrb[0].mxu0 %v1013
        %v1195 = vpop.f32.mrb[0].mxu0
        %v1196 = vadd.f32 0.0, %v1195
        %v1197 = vpop.f32.mrb[0].mxu0
        %1198 = vmatprep.mubr.f32.mxu0 0.0
        %1199 = vmatmul.mubr.f32.gmra.mrb[0].mxu0 %v1016
        %v1200 = vpop.f32.mrb[0].mxu0
        %v1201 = vadd.f32 0.0, %v1200
        %v1202 = vpop.f32.mrb[0].mxu0
        %1203 = vmatprep.mubr.f32.mxu0 0.0
        %1204 = vmatmul.mubr.f32.gmra.mrb[0].mxu0 %v1019
        %v1205 = vpop.f32.mrb[0].mxu0
        %v1206 = vadd.f32 0.0, %v1205
        %v1207 = vpop.f32.mrb[0].mxu0
        %1208 = vmatprep.mubr.f32.mxu0 0.0
        %1209 = vmatmul.mubr.f32.gmra.mrb[0].mxu0 %v1022
        %v1210 = vpop.f32.mrb[0].mxu0
        %v1211 = vadd.f32 0.0, %v1210
        %v1212 = vpop.f32.mrb[0].mxu0
        %1213 = vmatprep.mubr.f32.mxu0 0.0
        %1214 = vmatmul.mubr.f32.gmra.mrb[0].mxu0 %v1025
        %v1215 = vpop.f32.mrb[0].mxu0
        %v1216 = vadd.f32 0.0, %v1215
        %v1217 = vpop.f32.mrb[0].mxu0
        %1218 = vmatprep.mubr.f32.mxu0 0.0
        %1219 = vmatmul.mubr.f32.gmra.mrb[0].mxu0 %v1028
        %v1220 = vpop.f32.mrb[0].mxu0
        %v1221 = vadd.f32 0.0, %v1220
        %v1222 = vpop.f32.mrb[0].mxu0
        %1223 = vmatprep.mubr.f32.mxu0 0.0
        %1224 = vmatmul.mubr.f32.gmra.mrb[0].mxu0 %v1031
        %v1225 = vpop.f32.mrb[0].mxu0
        %v1226 = vadd.f32 0.0, %v1225
        %v1227 = vpop.f32.mrb[0].mxu0
        %1228 = vmatprep.mubr.f32.mxu0 0.0
        %1229 = vmatmul.mubr.f32.gmra.mrb[0].mxu0 %v1034
        %v1230 = vpop.f32.mrb[0].mxu0
        %v1231 = vadd.f32 0.0, %v1230
        %v1232 = vpop.f32.mrb[0].mxu0
        %1233 = vmatprep.mubr.f32.mxu0 0.0
        %1234 = vmatmul.mubr.f32.gmra.mrb[0].mxu0 %v1037
        %v1235 = vpop.f32.mrb[0].mxu0
        %v1236 = vadd.f32 0.0, %v1235
        %v1237 = vpop.f32.mrb[0].mxu0
        %1238 = vmatprep.mubr.f32.mxu0 0.0
        %1239 = vmatmul.mubr.f32.gmra.mrb[0].mxu0 %v1040
        %v1240 = vpop.f32.mrb[0].mxu0
        %v1241 = vadd.f32 0.0, %v1240
        %v1242 = vpop.f32.mrb[0].mxu0
        %1243 = vmatprep.mubr.f32.mxu0 0.0
        %1244 = vmatmul.mubr.f32.gmra.mrb[0].mxu0 %v1043
        %v1245 = vpop.f32.mrb[0].mxu0
        %v1246 = vadd.f32 0.0, %v1245
        %v1247 = vpop.f32.mrb[0].mxu0
        %1248 = vmatprep.mubr.f32.mxu0 0.0
        %1249 = vmatmul.mubr.f32.gmra.mrb[0].mxu0 %v1046
        %v1250 = vpop.f32.mrb[0].mxu0
        %v1251 = vadd.f32 0.0, %v1250
        %v1252 = vpop.f32.mrb[0].mxu0
        %1253 = vmatprep.mubr.f32.mxu0 0.0
        %1254 = vmatmul.mubr.f32.gmra.mrb[0].mxu0 %v1049
        %v1255 = vpop.f32.mrb[0].mxu0
        %v1256 = vadd.f32 0.0, %v1255
        %v1257 = vpop.f32.mrb[0].mxu0
        %1258 = vmatprep.mubr.f32.mxu0 0.0
        %1259 = vmatmul.mubr.f32.gmra.mrb[0].mxu0 %v1052
        %v1260 = vpop.f32.mrb[0].mxu0
        %v1261 = vadd.f32 0.0, %v1260
        %v1262 = vpop.f32.mrb[0].mxu0
        %1263 = vmatprep.mubr.f32.mxu0 0.0
        %1264 = vmatmul.mubr.f32.gmra.mrb[0].mxu0 %v1055
        %v1265 = vpop.f32.mrb[0].mxu0
        %v1266 = vadd.f32 0.0, %v1265
        %v1267 = vpop.f32.mrb[0].mxu0
        %1268 = vmatprep.mubr.f32.mxu0 0.0
        %1269 = vmatmul.mubr.f32.gmra.mrb[0].mxu0 %v1058
        %v1270 = vpop.f32.mrb[0].mxu0
        %v1271 = vadd.f32 0.0, %v1270
        %v1272 = vpop.f32.mrb[0].mxu0
        %1273 = vmatprep.mubr.f32.mxu0 0.0
        %1274 = vmatmul.mubr.f32.gmra.mrb[0].mxu0 %v1061
        %v1275 = vpop.f32.mrb[0].mxu0
        %v1276 = vadd.f32 0.0, %v1275
        %v1277 = vpop.f32.mrb[0].mxu0
        %1278 = vmatprep.mubr.f32.mxu0 0.0
        %1279 = vmatmul.mubr.f32.gmra.mrb[0].mxu0 %v1064
        %v1280 = vpop.f32.mrb[0].mxu0
        %v1281 = vadd.f32 0.0, %v1280
        %v1282 = vpop.f32.mrb[0].mxu0
        %1283 = vmatprep.mubr.f32.mxu0 0.0
        %1284 = vmatmul.mubr.f32.gmra.mrb[0].mxu0 %v1067
        %v1285 = vpop.f32.mrb[0].mxu0
        %v1286 = vadd.f32 0.0, %v1285
        %v1287 = vpop.f32.mrb[0].mxu0
        %1288 = vmatprep.mubr.f32.mxu0 0.0
        %1289 = vmatmul.mubr.f32.gmra.mrb[0].mxu0 %v1070
        %v1290 = vpop.f32.mrb[0].mxu0
        %v1291 = vadd.f32 0.0, %v1290
        %v1292 = vpop.f32.mrb[0].mxu0
        %1293 = vmatprep.mubr.f32.mxu0 0.0
        %1294 = vmatmul.mubr.f32.gmra.mrb[0].mxu0 %v1073
        %v1295 = vpop.f32.mrb[0].mxu0
        %v1296 = vadd.f32 0.0, %v1295
        %v1297 = vpop.f32.mrb[0].mxu0
        %1298 = vmatprep.mubr.f32.mxu0 0.0
        %1299 = vmatmul.mubr.f32.gmra.mrb[0].mxu0 %v1076
        %v1300 = vpop.f32.mrb[0].mxu0
        %v1301 = vadd.f32 0.0, %v1300
        %v1302 = vpop.f32.mrb[0].mxu0
        %1303 = vmatprep.mubr.f32.mxu0 0.0
        %1304 = vmatmul.mubr.f32.gmra.mrb[0].mxu0 %v1079
        %v1305 = vpop.f32.mrb[0].mxu0
        %v1306 = vadd.f32 0.0, %v1305
        %v1307 = vpop.f32.mrb[0].mxu0
        %1308 = vdwg.mxu0
        %v1309 = vadd.f32 %v793, %v1151
        %v1310 = vadd.f32 %v798, %v1156
        %v1311 = vadd.f32 %v803, %v1161
        %v1312 = vadd.f32 %v808, %v1166
        %v1313 = vadd.f32 %v813, %v1171
        %v1314 = vadd.f32 %v818, %v1176
        %v1315 = vadd.f32 %v823, %v1181
        %v1316 = vadd.f32 %v828, %v1186
        %v1317 = vadd.f32 %v833, %v1191
        %v1318 = vadd.f32 %v838, %v1196
        %v1319 = vadd.f32 %v843, %v1201
        %v1320 = vadd.f32 %v848, %v1206
        %v1321 = vadd.f32 %v853, %v1211
        %v1322 = vadd.f32 %v858, %v1216
        %v1323 = vadd.f32 %v863, %v1221
        %v1324 = vadd.f32 %v868, %v1226
        %v1325 = vadd.f32 %v873, %v1231
        %v1326 = vadd.f32 %v878, %v1236
        %v1327 = vadd.f32 %v883, %v1241
        %v1328 = vadd.f32 %v888, %v1246
        %v1329 = vadd.f32 %v893, %v1251
        %v1330 = vadd.f32 %v898, %v1256
        %v1331 = vadd.f32 %v903, %v1261
        %v1332 = vadd.f32 %v908, %v1266
        %v1333 = vadd.f32 %v913, %v1271
        %v1334 = vadd.f32 %v918, %v1276
        %v1335 = vadd.f32 %v923, %v1281
        %v1336 = vadd.f32 %v928, %v1286
        %v1337 = vadd.f32 %v933, %v1291
        %v1338 = vadd.f32 %v938, %v1296
        %v1339 = vadd.f32 %v943, %v1301
        %v1340 = vadd.f32 %v948, %v1306
        %s1341 = sadd.s32 %s231, 1
        %s1342 = smul.u32 %s1341, 24
        %s1343 = scalar_lea.vmem %s229, %s1342
        %v1344 = vld [vmem:[%s1343] sm:$0xff]
        %v1345 = vld [vmem:[%s1343 + $0x8] sm:$0xff]
        %v1346 = vld [vmem:[%s1343 + $0x18] sm:$0xff]
        %v1347 = vld [vmem:[%s1343 + $0x20] sm:$0xff]
        %v1348 = vld [vmem:[%s1343 + $0x30] sm:$0xff]
        %v1349 = vld [vmem:[%s1343 + $0x38] sm:$0xff]
        %v1350 = vld [vmem:[%s1343 + $0x48] sm:$0xff]
        %v1351 = vld [vmem:[%s1343 + $0x50] sm:$0xff]
        %v1352 = vld [vmem:[%s1343 + $0x60] sm:$0xff]
        %v1353 = vld [vmem:[%s1343 + $0x68] sm:$0xff]
        %v1354 = vld [vmem:[%s1343 + $0x78] sm:$0xff]
        %v1355 = vld [vmem:[%s1343 + $0x80] sm:$0xff]
        %v1356 = vld [vmem:[%s1343 + $0x90] sm:$0xff]
        %v1357 = vld [vmem:[%s1343 + $0x98] sm:$0xff]
        %v1358 = vld [vmem:[%s1343 + $0xa8] sm:$0xff]
        %v1359 = vld [vmem:[%s1343 + $0xb0] sm:$0xff]
        %v1360 = vld [vmem:[%s1343 + $0xc0] sm:$0xff]
        %v1361 = vld [vmem:[%s1343 + $0xc8] sm:$0xff]
        %v1362 = vld [vmem:[%s1343 + $0xd8] sm:$0xff]
        %v1363 = vld [vmem:[%s1343 + $0xe0] sm:$0xff]
        %v1364 = vld [vmem:[%s1343 + $0xf0] sm:$0xff]
        %v1365 = vld [vmem:[%s1343 + $0xf8] sm:$0xff]
        %v1366 = vld [vmem:[%s1343 + $0x108] sm:$0xff]
        %v1367 = vld [vmem:[%s1343 + $0x110] sm:$0xff]
        %v1368 = vld [vmem:[%s1343 + $0x120] sm:$0xff]
        %v1369 = vld [vmem:[%s1343 + $0x128] sm:$0xff]
        %v1370 = vld [vmem:[%s1343 + $0x138] sm:$0xff]
        %v1371 = vld [vmem:[%s1343 + $0x140] sm:$0xff]
        %v1372 = vld [vmem:[%s1343 + $0x150] sm:$0xff]
        %v1373 = vld [vmem:[%s1343 + $0x158] sm:$0xff]
        %v1374 = vld [vmem:[%s1343 + $0x168] sm:$0xff]
        %v1375 = vld [vmem:[%s1343 + $0x170] sm:$0xff]
        %s1376 = scalar_lea.vmem %s1, 12
        %v1377 = vld [vmem:[%s1376] sm:$0xf]
        %v1379 = vsel %vm301, %v1344, 0
        %v1382 = vsel %vm301, %v1345, 0
        %v1385 = vsel %vm301, %v1346, 0
        %v1388 = vsel %vm301, %v1347, 0
        %v1391 = vsel %vm301, %v1348, 0
        %v1394 = vsel %vm301, %v1349, 0
        %v1397 = vsel %vm301, %v1350, 0
        %v1400 = vsel %vm301, %v1351, 0
        %v1403 = vsel %vm301, %v1352, 0
        %v1406 = vsel %vm301, %v1353, 0
        %v1409 = vsel %vm301, %v1354, 0
        %v1412 = vsel %vm301, %v1355, 0
        %v1415 = vsel %vm301, %v1356, 0
        %v1418 = vsel %vm301, %v1357, 0
        %v1421 = vsel %vm301, %v1358, 0
        %v1424 = vsel %vm301, %v1359, 0
        %v1427 = vsel %vm301, %v1360, 0
        %v1430 = vsel %vm301, %v1361, 0
        %v1433 = vsel %vm301, %v1362, 0
        %v1436 = vsel %vm301, %v1363, 0
        %v1439 = vsel %vm301, %v1364, 0
        %v1442 = vsel %vm301, %v1365, 0
        %v1445 = vsel %vm301, %v1366, 0
        %v1448 = vsel %vm301, %v1367, 0
        %v1451 = vsel %vm301, %v1368, 0
        %v1454 = vsel %vm301, %v1369, 0
        %v1457 = vsel %vm301, %v1370, 0
        %v1460 = vsel %vm301, %v1371, 0
        %v1463 = vsel %vm301, %v1372, 0
        %v1466 = vsel %vm301, %v1373, 0
        %v1469 = vsel %vm301, %v1374, 0
        %v1472 = vsel %vm301, %v1375, 0
        %v1475 = vsel %vm398, %v1377, 0
        %1477 = vmatprep.subr.mxu0 0.0
        %1478 = vmatpush1.msra.mxu0 %v1475
        %1479 = vmatprep.subr.mxu0 0.0
        %1480 = vmatpush1.msra.mxu0 0.0
        %1481 = vmatprep.subr.mxu0 0.0
        %1482 = vmatpush1.msra.mxu0 0.0
        %1483 = vmatprep.subr.mxu0 0.0
        %1484 = vmatpush1.msra.mxu0 0.0
        %1485 = vmatprep.subr.mxu0 0.0
        %1486 = vmatpush1.msra.mxu0 0.0
        %1487 = vmatprep.subr.mxu0 0.0
        %1488 = vmatpush1.msra.mxu0 0.0
        %1489 = vmatprep.subr.mxu0 0.0
        %1490 = vmatpush1.msra.mxu0 0.0
        %1491 = vmatprep.subr.mxu0 0.0
        %1492 = vmatpush1.msra.mxu0 0.0
        %1493 = vmatprep.subr.mxu0 0.0
        %1494 = vmatpush1.msra.mxu0 0.0
        %1495 = vmatprep.subr.mxu0 0.0
        %1496 = vmatpush1.msra.mxu0 0.0
        %1497 = vmatprep.subr.mxu0 0.0
        %1498 = vmatpush1.msra.mxu0 0.0
        %1499 = vmatprep.subr.mxu0 0.0
        %1500 = vmatpush1.msra.mxu0 0.0
        %1501 = vmatprep.subr.mxu0 0.0
        %1502 = vmatpush1.msra.mxu0 0.0
        %1503 = vmatprep.subr.mxu0 0.0
        %1504 = vmatpush1.msra.mxu0 0.0
        %1505 = vmatprep.subr.mxu0 0.0
        %1506 = vmatpush1.msra.mxu0 0.0
        %1507 = vmatprep.subr.mxu0 0.0
        %1508 = vmatpush1.msra.mxu0 0.0
        %1509 = vmatprep.subr.mxu0 0.0
        %1510 = vmatpush1.msra.mxu0 0.0
        %1511 = vmatprep.subr.mxu0 0.0
        %1512 = vmatpush1.msra.mxu0 0.0
        %1513 = vmatprep.subr.mxu0 0.0
        %1514 = vmatpush1.msra.mxu0 0.0
        %1515 = vmatprep.subr.mxu0 0.0
        %1516 = vmatpush1.msra.mxu0 0.0
        %1517 = vmatprep.subr.mxu0 0.0
        %1518 = vmatpush1.msra.mxu0 0.0
        %1519 = vmatprep.subr.mxu0 0.0
        %1520 = vmatpush1.msra.mxu0 0.0
        %1521 = vmatprep.subr.mxu0 0.0
        %1522 = vmatpush1.msra.mxu0 0.0
        %1523 = vmatprep.subr.mxu0 0.0
        %1524 = vmatpush1.msra.mxu0 0.0
        %1525 = vmatprep.subr.mxu0 0.0
        %1526 = vmatpush1.msra.mxu0 0.0
        %1527 = vmatprep.subr.mxu0 0.0
        %1528 = vmatpush1.msra.mxu0 0.0
        %1529 = vmatprep.subr.mxu0 0.0
        %1530 = vmatpush1.msra.mxu0 0.0
        %1531 = vmatprep.subr.mxu0 0.0
        %1532 = vmatpush1.msra.mxu0 0.0
        %1533 = vmatprep.subr.mxu0 0.0
        %1534 = vmatpush1.msra.mxu0 0.0
        %1535 = vmatprep.subr.mxu0 0.0
        %1536 = vmatpush1.msra.mxu0 0.0
        %1537 = vmatprep.subr.mxu0 0.0
        %1538 = vmatpush1.msra.mxu0 0.0
        %1539 = vmatprep.subr.mxu0 0.0
        %1540 = vmatpush1.msra.mxu0 0.0
        %1541 = vmatprep.mubr.f32.mxu0 0.0
        %1542 = vmatmul.mubr.f32.gmra.mrb[0].mxu0 %v1379
        %v1543 = vpop.f32.mrb[0].mxu0
        %v1544 = vadd.f32 0.0, %v1543
        %v1545 = vpop.f32.mrb[0].mxu0
        %1546 = vmatprep.mubr.f32.mxu0 0.0
        %1547 = vmatmul.mubr.f32.gmra.mrb[0].mxu0 %v1382
        %v1548 = vpop.f32.mrb[0].mxu0
        %v1549 = vadd.f32 0.0, %v1548
        %v1550 = vpop.f32.mrb[0].mxu0
        %1551 = vmatprep.mubr.f32.mxu0 0.0
        %1552 = vmatmul.mubr.f32.gmra.mrb[0].mxu0 %v1385
        %v1553 = vpop.f32.mrb[0].mxu0
        %v1554 = vadd.f32 0.0, %v1553
        %v1555 = vpop.f32.mrb[0].mxu0
        %1556 = vmatprep.mubr.f32.mxu0 0.0
        %1557 = vmatmul.mubr.f32.gmra.mrb[0].mxu0 %v1388
        %v1558 = vpop.f32.mrb[0].mxu0
        %v1559 = vadd.f32 0.0, %v1558
        %v1560 = vpop.f32.mrb[0].mxu0
        %1561 = vmatprep.mubr.f32.mxu0 0.0
        %1562 = vmatmul.mubr.f32.gmra.mrb[0].mxu0 %v1391
        %v1563 = vpop.f32.mrb[0].mxu0
        %v1564 = vadd.f32 0.0, %v1563
        %v1565 = vpop.f32.mrb[0].mxu0
        %1566 = vmatprep.mubr.f32.mxu0 0.0
        %1567 = vmatmul.mubr.f32.gmra.mrb[0].mxu0 %v1394
        %v1568 = vpop.f32.mrb[0].mxu0
        %v1569 = vadd.f32 0.0, %v1568
        %v1570 = vpop.f32.mrb[0].mxu0
        %1571 = vmatprep.mubr.f32.mxu0 0.0
        %1572 = vmatmul.mubr.f32.gmra.mrb[0].mxu0 %v1397
        %v1573 = vpop.f32.mrb[0].mxu0
        %v1574 = vadd.f32 0.0, %v1573
        %v1575 = vpop.f32.mrb[0].mxu0
        %1576 = vmatprep.mubr.f32.mxu0 0.0
        %1577 = vmatmul.mubr.f32.gmra.mrb[0].mxu0 %v1400
        %v1578 = vpop.f32.mrb[0].mxu0
        %v1579 = vadd.f32 0.0, %v1578
        %v1580 = vpop.f32.mrb[0].mxu0
        %1581 = vmatprep.mubr.f32.mxu0 0.0
        %1582 = vmatmul.mubr.f32.gmra.mrb[0].mxu0 %v1403
        %v1583 = vpop.f32.mrb[0].mxu0
        %v1584 = vadd.f32 0.0, %v1583
        %v1585 = vpop.f32.mrb[0].mxu0
        %1586 = vmatprep.mubr.f32.mxu0 0.0
        %1587 = vmatmul.mubr.f32.gmra.mrb[0].mxu0 %v1406
        %v1588 = vpop.f32.mrb[0].mxu0
        %v1589 = vadd.f32 0.0, %v1588
        %v1590 = vpop.f32.mrb[0].mxu0
        %1591 = vmatprep.mubr.f32.mxu0 0.0
        %1592 = vmatmul.mubr.f32.gmra.mrb[0].mxu0 %v1409
        %v1593 = vpop.f32.mrb[0].mxu0
        %v1594 = vadd.f32 0.0, %v1593
        %v1595 = vpop.f32.mrb[0].mxu0
        %1596 = vmatprep.mubr.f32.mxu0 0.0
        %1597 = vmatmul.mubr.f32.gmra.mrb[0].mxu0 %v1412
        %v1598 = vpop.f32.mrb[0].mxu0
        %v1599 = vadd.f32 0.0, %v1598
        %v1600 = vpop.f32.mrb[0].mxu0
        %1601 = vmatprep.mubr.f32.mxu0 0.0
        %1602 = vmatmul.mubr.f32.gmra.mrb[0].mxu0 %v1415
        %v1603 = vpop.f32.mrb[0].mxu0
        %v1604 = vadd.f32 0.0, %v1603
        %v1605 = vpop.f32.mrb[0].mxu0
        %1606 = vmatprep.mubr.f32.mxu0 0.0
        %1607 = vmatmul.mubr.f32.gmra.mrb[0].mxu0 %v1418
        %v1608 = vpop.f32.mrb[0].mxu0
        %v1609 = vadd.f32 0.0, %v1608
        %v1610 = vpop.f32.mrb[0].mxu0
        %1611 = vmatprep.mubr.f32.mxu0 0.0
        %1612 = vmatmul.mubr.f32.gmra.mrb[0].mxu0 %v1421
        %v1613 = vpop.f32.mrb[0].mxu0
        %v1614 = vadd.f32 0.0, %v1613
        %v1615 = vpop.f32.mrb[0].mxu0
        %1616 = vmatprep.mubr.f32.mxu0 0.0
        %1617 = vmatmul.mubr.f32.gmra.mrb[0].mxu0 %v1424
        %v1618 = vpop.f32.mrb[0].mxu0
        %v1619 = vadd.f32 0.0, %v1618
        %v1620 = vpop.f32.mrb[0].mxu0
        %1621 = vmatprep.mubr.f32.mxu0 0.0
        %1622 = vmatmul.mubr.f32.gmra.mrb[0].mxu0 %v1427
        %v1623 = vpop.f32.mrb[0].mxu0
        %v1624 = vadd.f32 0.0, %v1623
        %v1625 = vpop.f32.mrb[0].mxu0
        %1626 = vmatprep.mubr.f32.mxu0 0.0
        %1627 = vmatmul.mubr.f32.gmra.mrb[0].mxu0 %v1430
        %v1628 = vpop.f32.mrb[0].mxu0
        %v1629 = vadd.f32 0.0, %v1628
        %v1630 = vpop.f32.mrb[0].mxu0
        %1631 = vmatprep.mubr.f32.mxu0 0.0
        %1632 = vmatmul.mubr.f32.gmra.mrb[0].mxu0 %v1433
        %v1633 = vpop.f32.mrb[0].mxu0
        %v1634 = vadd.f32 0.0, %v1633
        %v1635 = vpop.f32.mrb[0].mxu0
        %1636 = vmatprep.mubr.f32.mxu0 0.0
        %1637 = vmatmul.mubr.f32.gmra.mrb[0].mxu0 %v1436
        %v1638 = vpop.f32.mrb[0].mxu0
        %v1639 = vadd.f32 0.0, %v1638
        %v1640 = vpop.f32.mrb[0].mxu0
        %1641 = vmatprep.mubr.f32.mxu0 0.0
        %1642 = vmatmul.mubr.f32.gmra.mrb[0].mxu0 %v1439
        %v1643 = vpop.f32.mrb[0].mxu0
        %v1644 = vadd.f32 0.0, %v1643
        %v1645 = vpop.f32.mrb[0].mxu0
        %1646 = vmatprep.mubr.f32.mxu0 0.0
        %1647 = vmatmul.mubr.f32.gmra.mrb[0].mxu0 %v1442
        %v1648 = vpop.f32.mrb[0].mxu0
        %v1649 = vadd.f32 0.0, %v1648
        %v1650 = vpop.f32.mrb[0].mxu0
        %1651 = vmatprep.mubr.f32.mxu0 0.0
        %1652 = vmatmul.mubr.f32.gmra.mrb[0].mxu0 %v1445
        %v1653 = vpop.f32.mrb[0].mxu0
        %v1654 = vadd.f32 0.0, %v1653
        %v1655 = vpop.f32.mrb[0].mxu0
        %1656 = vmatprep.mubr.f32.mxu0 0.0
        %1657 = vmatmul.mubr.f32.gmra.mrb[0].mxu0 %v1448
        %v1658 = vpop.f32.mrb[0].mxu0
        %v1659 = vadd.f32 0.0, %v1658
        %v1660 = vpop.f32.mrb[0].mxu0
        %1661 = vmatprep.mubr.f32.mxu0 0.0
        %1662 = vmatmul.mubr.f32.gmra.mrb[0].mxu0 %v1451
        %v1663 = vpop.f32.mrb[0].mxu0
        %v1664 = vadd.f32 0.0, %v1663
        %v1665 = vpop.f32.mrb[0].mxu0
        %1666 = vmatprep.mubr.f32.mxu0 0.0
        %1667 = vmatmul.mubr.f32.gmra.mrb[0].mxu0 %v1454
        %v1668 = vpop.f32.mrb[0].mxu0
        %v1669 = vadd.f32 0.0, %v1668
        %v1670 = vpop.f32.mrb[0].mxu0
        %1671 = vmatprep.mubr.f32.mxu0 0.0
        %1672 = vmatmul.mubr.f32.gmra.mrb[0].mxu0 %v1457
        %v1673 = vpop.f32.mrb[0].mxu0
        %v1674 = vadd.f32 0.0, %v1673
        %v1675 = vpop.f32.mrb[0].mxu0
        %1676 = vmatprep.mubr.f32.mxu0 0.0
        %1677 = vmatmul.mubr.f32.gmra.mrb[0].mxu0 %v1460
        %v1678 = vpop.f32.mrb[0].mxu0
        %v1679 = vadd.f32 0.0, %v1678
        %v1680 = vpop.f32.mrb[0].mxu0
        %1681 = vmatprep.mubr.f32.mxu0 0.0
        %1682 = vmatmul.mubr.f32.gmra.mrb[0].mxu0 %v1463
        %v1683 = vpop.f32.mrb[0].mxu0
        %v1684 = vadd.f32 0.0, %v1683
        %v1685 = vpop.f32.mrb[0].mxu0
        %1686 = vmatprep.mubr.f32.mxu0 0.0
        %1687 = vmatmul.mubr.f32.gmra.mrb[0].mxu0 %v1466
        %v1688 = vpop.f32.mrb[0].mxu0
        %v1689 = vadd.f32 0.0, %v1688
        %v1690 = vpop.f32.mrb[0].mxu0
        %1691 = vmatprep.mubr.f32.mxu0 0.0
        %1692 = vmatmul.mubr.f32.gmra.mrb[0].mxu0 %v1469
        %v1693 = vpop.f32.mrb[0].mxu0
        %v1694 = vadd.f32 0.0, %v1693
        %v1695 = vpop.f32.mrb[0].mxu0
        %1696 = vmatprep.mubr.f32.mxu0 0.0
        %1697 = vmatmul.mubr.f32.gmra.mrb[0].mxu0 %v1472
        %v1698 = vpop.f32.mrb[0].mxu0
        %v1699 = vadd.f32 0.0, %v1698
        %v1700 = vpop.f32.mrb[0].mxu0
        %1701 = vdwg.mxu0
        %v1702 = vadd.f32 %v1309, %v1544
        %v1703 = vadd.f32 %v1310, %v1549
        %v1704 = vadd.f32 %v1311, %v1554
        %v1705 = vadd.f32 %v1312, %v1559
        %v1706 = vadd.f32 %v1313, %v1564
        %v1707 = vadd.f32 %v1314, %v1569
        %v1708 = vadd.f32 %v1315, %v1574
        %v1709 = vadd.f32 %v1316, %v1579
        %v1710 = vadd.f32 %v1317, %v1584
        %v1711 = vadd.f32 %v1318, %v1589
        %v1712 = vadd.f32 %v1319, %v1594
        %v1713 = vadd.f32 %v1320, %v1599
        %v1714 = vadd.f32 %v1321, %v1604
        %v1715 = vadd.f32 %v1322, %v1609
        %v1716 = vadd.f32 %v1323, %v1614
        %v1717 = vadd.f32 %v1324, %v1619
        %v1718 = vadd.f32 %v1325, %v1624
        %v1719 = vadd.f32 %v1326, %v1629
        %v1720 = vadd.f32 %v1327, %v1634
        %v1721 = vadd.f32 %v1328, %v1639
        %v1722 = vadd.f32 %v1329, %v1644
        %v1723 = vadd.f32 %v1330, %v1649
        %v1724 = vadd.f32 %v1331, %v1654
        %v1725 = vadd.f32 %v1332, %v1659
        %v1726 = vadd.f32 %v1333, %v1664
        %v1727 = vadd.f32 %v1334, %v1669
        %v1728 = vadd.f32 %v1335, %v1674
        %v1729 = vadd.f32 %v1336, %v1679
        %v1730 = vadd.f32 %v1337, %v1684
        %v1731 = vadd.f32 %v1338, %v1689
        %v1732 = vadd.f32 %v1339, %v1694
        %v1733 = vadd.f32 %v1340, %v1699
        %v1734 = vld [vmem:[%s1343 + $0x1] sm:$0xff]
        %v1735 = vld [vmem:[%s1343 + $0x9] sm:$0xff]
        %v1736 = vld [vmem:[%s1343 + $0x19] sm:$0xff]
        %v1737 = vld [vmem:[%s1343 + $0x21] sm:$0xff]
        %v1738 = vld [vmem:[%s1343 + $0x31] sm:$0xff]
        %v1739 = vld [vmem:[%s1343 + $0x39] sm:$0xff]
        %v1740 = vld [vmem:[%s1343 + $0x49] sm:$0xff]
        %v1741 = vld [vmem:[%s1343 + $0x51] sm:$0xff]
        %v1742 = vld [vmem:[%s1343 + $0x61] sm:$0xff]
        %v1743 = vld [vmem:[%s1343 + $0x69] sm:$0xff]
        %v1744 = vld [vmem:[%s1343 + $0x79] sm:$0xff]
        %v1745 = vld [vmem:[%s1343 + $0x81] sm:$0xff]
        %v1746 = vld [vmem:[%s1343 + $0x91] sm:$0xff]
        %v1747 = vld [vmem:[%s1343 + $0x99] sm:$0xff]
        %v1748 = vld [vmem:[%s1343 + $0xa9] sm:$0xff]
        %v1749 = vld [vmem:[%s1343 + $0xb1] sm:$0xff]
        %v1750 = vld [vmem:[%s1343 + $0xc1] sm:$0xff]
        %v1751 = vld [vmem:[%s1343 + $0xc9] sm:$0xff]
        %v1752 = vld [vmem:[%s1343 + $0xd9] sm:$0xff]
        %v1753 = vld [vmem:[%s1343 + $0xe1] sm:$0xff]
        %v1754 = vld [vmem:[%s1343 + $0xf1] sm:$0xff]
        %v1755 = vld [vmem:[%s1343 + $0xf9] sm:$0xff]
        %v1756 = vld [vmem:[%s1343 + $0x109] sm:$0xff]
        %v1757 = vld [vmem:[%s1343 + $0x111] sm:$0xff]
        %v1758 = vld [vmem:[%s1343 + $0x121] sm:$0xff]
        %v1759 = vld [vmem:[%s1343 + $0x129] sm:$0xff]
        %v1760 = vld [vmem:[%s1343 + $0x139] sm:$0xff]
        %v1761 = vld [vmem:[%s1343 + $0x141] sm:$0xff]
        %v1762 = vld [vmem:[%s1343 + $0x151] sm:$0xff]
        %v1763 = vld [vmem:[%s1343 + $0x159] sm:$0xff]
        %v1764 = vld [vmem:[%s1343 + $0x169] sm:$0xff]
        %v1765 = vld [vmem:[%s1343 + $0x171] sm:$0xff]
        %s1766 = scalar_lea.vmem %s1, 16
        %v1767 = vld [vmem:[%s1766] sm:$0xf]
        %v1769 = vsel %vm301, %v1734, 0
        %v1772 = vsel %vm301, %v1735, 0
        %v1775 = vsel %vm301, %v1736, 0
        %v1778 = vsel %vm301, %v1737, 0
        %v1781 = vsel %vm301, %v1738, 0
        %v1784 = vsel %vm301, %v1739, 0
        %v1787 = vsel %vm301, %v1740, 0
        %v1790 = vsel %vm301, %v1741, 0
        %v1793 = vsel %vm301, %v1742, 0
        %v1796 = vsel %vm301, %v1743, 0
        %v1799 = vsel %vm301, %v1744, 0
        %v1802 = vsel %vm301, %v1745, 0
        %v1805 = vsel %vm301, %v1746, 0
        %v1808 = vsel %vm301, %v1747, 0
        %v1811 = vsel %vm301, %v1748, 0
        %v1814 = vsel %vm301, %v1749, 0
        %v1817 = vsel %vm301, %v1750, 0
        %v1820 = vsel %vm301, %v1751, 0
        %v1823 = vsel %vm301, %v1752, 0
        %v1826 = vsel %vm301, %v1753, 0
        %v1829 = vsel %vm301, %v1754, 0
        %v1832 = vsel %vm301, %v1755, 0
        %v1835 = vsel %vm301, %v1756, 0
        %v1838 = vsel %vm301, %v1757, 0
        %v1841 = vsel %vm301, %v1758, 0
        %v1844 = vsel %vm301, %v1759, 0
        %v1847 = vsel %vm301, %v1760, 0
        %v1850 = vsel %vm301, %v1761, 0
        %v1853 = vsel %vm301, %v1762, 0
        %v1856 = vsel %vm301, %v1763, 0
        %v1859 = vsel %vm301, %v1764, 0
        %v1862 = vsel %vm301, %v1765, 0
        %v1865 = vsel %vm398, %v1767, 0
        %1867 = vmatprep.subr.mxu0 0.0
        %1868 = vmatpush1.msra.mxu0 %v1865
        %1869 = vmatprep.subr.mxu0 0.0
        %1870 = vmatpush1.msra.mxu0 0.0
        %1871 = vmatprep.subr.mxu0 0.0
        %1872 = vmatpush1.msra.mxu0 0.0
        %1873 = vmatprep.subr.mxu0 0.0
        %1874 = vmatpush1.msra.mxu0 0.0
        %1875 = vmatprep.subr.mxu0 0.0
        %1876 = vmatpush1.msra.mxu0 0.0
        %1877 = vmatprep.subr.mxu0 0.0
        %1878 = vmatpush1.msra.mxu0 0.0
        %1879 = vmatprep.subr.mxu0 0.0
        %1880 = vmatpush1.msra.mxu0 0.0
        %1881 = vmatprep.subr.mxu0 0.0
        %1882 = vmatpush1.msra.mxu0 0.0
        %1883 = vmatprep.subr.mxu0 0.0
        %1884 = vmatpush1.msra.mxu0 0.0
        %1885 = vmatprep.subr.mxu0 0.0
        %1886 = vmatpush1.msra.mxu0 0.0
        %1887 = vmatprep.subr.mxu0 0.0
        %1888 = vmatpush1.msra.mxu0 0.0
        %1889 = vmatprep.subr.mxu0 0.0
        %1890 = vmatpush1.msra.mxu0 0.0
        %1891 = vmatprep.subr.mxu0 0.0
        %1892 = vmatpush1.msra.mxu0 0.0
        %1893 = vmatprep.subr.mxu0 0.0
        %1894 = vmatpush1.msra.mxu0 0.0
        %1895 = vmatprep.subr.mxu0 0.0
        %1896 = vmatpush1.msra.mxu0 0.0
        %1897 = vmatprep.subr.mxu0 0.0
        %1898 = vmatpush1.msra.mxu0 0.0
        %1899 = vmatprep.subr.mxu0 0.0
        %1900 = vmatpush1.msra.mxu0 0.0
        %1901 = vmatprep.subr.mxu0 0.0
        %1902 = vmatpush1.msra.mxu0 0.0
        %1903 = vmatprep.subr.mxu0 0.0
        %1904 = vmatpush1.msra.mxu0 0.0
        %1905 = vmatprep.subr.mxu0 0.0
        %1906 = vmatpush1.msra.mxu0 0.0
        %1907 = vmatprep.subr.mxu0 0.0
        %1908 = vmatpush1.msra.mxu0 0.0
        %1909 = vmatprep.subr.mxu0 0.0
        %1910 = vmatpush1.msra.mxu0 0.0
        %1911 = vmatprep.subr.mxu0 0.0
        %1912 = vmatpush1.msra.mxu0 0.0
        %1913 = vmatprep.subr.mxu0 0.0
        %1914 = vmatpush1.msra.mxu0 0.0
        %1915 = vmatprep.subr.mxu0 0.0
        %1916 = vmatpush1.msra.mxu0 0.0
        %1917 = vmatprep.subr.mxu0 0.0
        %1918 = vmatpush1.msra.mxu0 0.0
        %1919 = vmatprep.subr.mxu0 0.0
        %1920 = vmatpush1.msra.mxu0 0.0
        %1921 = vmatprep.subr.mxu0 0.0
        %1922 = vmatpush1.msra.mxu0 0.0
        %1923 = vmatprep.subr.mxu0 0.0
        %1924 = vmatpush1.msra.mxu0 0.0
        %1925 = vmatprep.subr.mxu0 0.0
        %1926 = vmatpush1.msra.mxu0 0.0
        %1927 = vmatprep.subr.mxu0 0.0
        %1928 = vmatpush1.msra.mxu0 0.0
        %1929 = vmatprep.subr.mxu0 0.0
        %1930 = vmatpush1.msra.mxu0 0.0
        %1931 = vmatprep.mubr.f32.mxu0 0.0
        %1932 = vmatmul.mubr.f32.gmra.mrb[0].mxu0 %v1769
        %v1933 = vpop.f32.mrb[0].mxu0
        %v1934 = vadd.f32 0.0, %v1933
        %v1935 = vpop.f32.mrb[0].mxu0
        %1936 = vmatprep.mubr.f32.mxu0 0.0
        %1937 = vmatmul.mubr.f32.gmra.mrb[0].mxu0 %v1772
        %v1938 = vpop.f32.mrb[0].mxu0
        %v1939 = vadd.f32 0.0, %v1938
        %v1940 = vpop.f32.mrb[0].mxu0
        %1941 = vmatprep.mubr.f32.mxu0 0.0
        %1942 = vmatmul.mubr.f32.gmra.mrb[0].mxu0 %v1775
        %v1943 = vpop.f32.mrb[0].mxu0
        %v1944 = vadd.f32 0.0, %v1943
        %v1945 = vpop.f32.mrb[0].mxu0
        %1946 = vmatprep.mubr.f32.mxu0 0.0
        %1947 = vmatmul.mubr.f32.gmra.mrb[0].mxu0 %v1778
        %v1948 = vpop.f32.mrb[0].mxu0
        %v1949 = vadd.f32 0.0, %v1948
        %v1950 = vpop.f32.mrb[0].mxu0
        %1951 = vmatprep.mubr.f32.mxu0 0.0
        %1952 = vmatmul.mubr.f32.gmra.mrb[0].mxu0 %v1781
        %v1953 = vpop.f32.mrb[0].mxu0
        %v1954 = vadd.f32 0.0, %v1953
        %v1955 = vpop.f32.mrb[0].mxu0
        %1956 = vmatprep.mubr.f32.mxu0 0.0
        %1957 = vmatmul.mubr.f32.gmra.mrb[0].mxu0 %v1784
        %v1958 = vpop.f32.mrb[0].mxu0
        %v1959 = vadd.f32 0.0, %v1958
        %v1960 = vpop.f32.mrb[0].mxu0
        %1961 = vmatprep.mubr.f32.mxu0 0.0
        %1962 = vmatmul.mubr.f32.gmra.mrb[0].mxu0 %v1787
        %v1963 = vpop.f32.mrb[0].mxu0
        %v1964 = vadd.f32 0.0, %v1963
        %v1965 = vpop.f32.mrb[0].mxu0
        %1966 = vmatprep.mubr.f32.mxu0 0.0
        %1967 = vmatmul.mubr.f32.gmra.mrb[0].mxu0 %v1790
        %v1968 = vpop.f32.mrb[0].mxu0
        %v1969 = vadd.f32 0.0, %v1968
        %v1970 = vpop.f32.mrb[0].mxu0
        %1971 = vmatprep.mubr.f32.mxu0 0.0
        %1972 = vmatmul.mubr.f32.gmra.mrb[0].mxu0 %v1793
        %v1973 = vpop.f32.mrb[0].mxu0
        %v1974 = vadd.f32 0.0, %v1973
        %v1975 = vpop.f32.mrb[0].mxu0
        %1976 = vmatprep.mubr.f32.mxu0 0.0
        %1977 = vmatmul.mubr.f32.gmra.mrb[0].mxu0 %v1796
        %v1978 = vpop.f32.mrb[0].mxu0
        %v1979 = vadd.f32 0.0, %v1978
        %v1980 = vpop.f32.mrb[0].mxu0
        %1981 = vmatprep.mubr.f32.mxu0 0.0
        %1982 = vmatmul.mubr.f32.gmra.mrb[0].mxu0 %v1799
        %v1983 = vpop.f32.mrb[0].mxu0
        %v1984 = vadd.f32 0.0, %v1983
        %v1985 = vpop.f32.mrb[0].mxu0
        %1986 = vmatprep.mubr.f32.mxu0 0.0
        %1987 = vmatmul.mubr.f32.gmra.mrb[0].mxu0 %v1802
        %v1988 = vpop.f32.mrb[0].mxu0
        %v1989 = vadd.f32 0.0, %v1988
        %v1990 = vpop.f32.mrb[0].mxu0
        %1991 = vmatprep.mubr.f32.mxu0 0.0
        %1992 = vmatmul.mubr.f32.gmra.mrb[0].mxu0 %v1805
        %v1993 = vpop.f32.mrb[0].mxu0
        %v1994 = vadd.f32 0.0, %v1993
        %v1995 = vpop.f32.mrb[0].mxu0
        %1996 = vmatprep.mubr.f32.mxu0 0.0
        %1997 = vmatmul.mubr.f32.gmra.mrb[0].mxu0 %v1808
        %v1998 = vpop.f32.mrb[0].mxu0
        %v1999 = vadd.f32 0.0, %v1998
        %v2000 = vpop.f32.mrb[0].mxu0
        %2001 = vmatprep.mubr.f32.mxu0 0.0
        %2002 = vmatmul.mubr.f32.gmra.mrb[0].mxu0 %v1811
        %v2003 = vpop.f32.mrb[0].mxu0
        %v2004 = vadd.f32 0.0, %v2003
        %v2005 = vpop.f32.mrb[0].mxu0
        %2006 = vmatprep.mubr.f32.mxu0 0.0
        %2007 = vmatmul.mubr.f32.gmra.mrb[0].mxu0 %v1814
        %v2008 = vpop.f32.mrb[0].mxu0
        %v2009 = vadd.f32 0.0, %v2008
        %v2010 = vpop.f32.mrb[0].mxu0
        %2011 = vmatprep.mubr.f32.mxu0 0.0
        %2012 = vmatmul.mubr.f32.gmra.mrb[0].mxu0 %v1817
        %v2013 = vpop.f32.mrb[0].mxu0
        %v2014 = vadd.f32 0.0, %v2013
        %v2015 = vpop.f32.mrb[0].mxu0
        %2016 = vmatprep.mubr.f32.mxu0 0.0
        %2017 = vmatmul.mubr.f32.gmra.mrb[0].mxu0 %v1820
        %v2018 = vpop.f32.mrb[0].mxu0
        %v2019 = vadd.f32 0.0, %v2018
        %v2020 = vpop.f32.mrb[0].mxu0
        %2021 = vmatprep.mubr.f32.mxu0 0.0
        %2022 = vmatmul.mubr.f32.gmra.mrb[0].mxu0 %v1823
        %v2023 = vpop.f32.mrb[0].mxu0
        %v2024 = vadd.f32 0.0, %v2023
        %v2025 = vpop.f32.mrb[0].mxu0
        %2026 = vmatprep.mubr.f32.mxu0 0.0
        %2027 = vmatmul.mubr.f32.gmra.mrb[0].mxu0 %v1826
        %v2028 = vpop.f32.mrb[0].mxu0
        %v2029 = vadd.f32 0.0, %v2028
        %v2030 = vpop.f32.mrb[0].mxu0
        %2031 = vmatprep.mubr.f32.mxu0 0.0
        %2032 = vmatmul.mubr.f32.gmra.mrb[0].mxu0 %v1829
        %v2033 = vpop.f32.mrb[0].mxu0
        %v2034 = vadd.f32 0.0, %v2033
        %v2035 = vpop.f32.mrb[0].mxu0
        %2036 = vmatprep.mubr.f32.mxu0 0.0
        %2037 = vmatmul.mubr.f32.gmra.mrb[0].mxu0 %v1832
        %v2038 = vpop.f32.mrb[0].mxu0
        %v2039 = vadd.f32 0.0, %v2038
        %v2040 = vpop.f32.mrb[0].mxu0
        %2041 = vmatprep.mubr.f32.mxu0 0.0
        %2042 = vmatmul.mubr.f32.gmra.mrb[0].mxu0 %v1835
        %v2043 = vpop.f32.mrb[0].mxu0
        %v2044 = vadd.f32 0.0, %v2043
        %v2045 = vpop.f32.mrb[0].mxu0
        %2046 = vmatprep.mubr.f32.mxu0 0.0
        %2047 = vmatmul.mubr.f32.gmra.mrb[0].mxu0 %v1838
        %v2048 = vpop.f32.mrb[0].mxu0
        %v2049 = vadd.f32 0.0, %v2048
        %v2050 = vpop.f32.mrb[0].mxu0
        %2051 = vmatprep.mubr.f32.mxu0 0.0
        %2052 = vmatmul.mubr.f32.gmra.mrb[0].mxu0 %v1841
        %v2053 = vpop.f32.mrb[0].mxu0
        %v2054 = vadd.f32 0.0, %v2053
        %v2055 = vpop.f32.mrb[0].mxu0
        %2056 = vmatprep.mubr.f32.mxu0 0.0
        %2057 = vmatmul.mubr.f32.gmra.mrb[0].mxu0 %v1844
        %v2058 = vpop.f32.mrb[0].mxu0
        %v2059 = vadd.f32 0.0, %v2058
        %v2060 = vpop.f32.mrb[0].mxu0
        %2061 = vmatprep.mubr.f32.mxu0 0.0
        %2062 = vmatmul.mubr.f32.gmra.mrb[0].mxu0 %v1847
        %v2063 = vpop.f32.mrb[0].mxu0
        %v2064 = vadd.f32 0.0, %v2063
        %v2065 = vpop.f32.mrb[0].mxu0
        %2066 = vmatprep.mubr.f32.mxu0 0.0
        %2067 = vmatmul.mubr.f32.gmra.mrb[0].mxu0 %v1850
        %v2068 = vpop.f32.mrb[0].mxu0
        %v2069 = vadd.f32 0.0, %v2068
        %v2070 = vpop.f32.mrb[0].mxu0
        %2071 = vmatprep.mubr.f32.mxu0 0.0
        %2072 = vmatmul.mubr.f32.gmra.mrb[0].mxu0 %v1853
        %v2073 = vpop.f32.mrb[0].mxu0
        %v2074 = vadd.f32 0.0, %v2073
        %v2075 = vpop.f32.mrb[0].mxu0
        %2076 = vmatprep.mubr.f32.mxu0 0.0
        %2077 = vmatmul.mubr.f32.gmra.mrb[0].mxu0 %v1856
        %v2078 = vpop.f32.mrb[0].mxu0
        %v2079 = vadd.f32 0.0, %v2078
        %v2080 = vpop.f32.mrb[0].mxu0
        %2081 = vmatprep.mubr.f32.mxu0 0.0
        %2082 = vmatmul.mubr.f32.gmra.mrb[0].mxu0 %v1859
        %v2083 = vpop.f32.mrb[0].mxu0
        %v2084 = vadd.f32 0.0, %v2083
        %v2085 = vpop.f32.mrb[0].mxu0
        %2086 = vmatprep.mubr.f32.mxu0 0.0
        %2087 = vmatmul.mubr.f32.gmra.mrb[0].mxu0 %v1862
        %v2088 = vpop.f32.mrb[0].mxu0
        %v2089 = vadd.f32 0.0, %v2088
        %v2090 = vpop.f32.mrb[0].mxu0
        %2091 = vdwg.mxu0
        %v2092 = vadd.f32 %v1702, %v1934
        %v2093 = vadd.f32 %v1703, %v1939
        %v2094 = vadd.f32 %v1704, %v1944
        %v2095 = vadd.f32 %v1705, %v1949
        %v2096 = vadd.f32 %v1706, %v1954
        %v2097 = vadd.f32 %v1707, %v1959
        %v2098 = vadd.f32 %v1708, %v1964
        %v2099 = vadd.f32 %v1709, %v1969
        %v2100 = vadd.f32 %v1710, %v1974
        %v2101 = vadd.f32 %v1711, %v1979
        %v2102 = vadd.f32 %v1712, %v1984
        %v2103 = vadd.f32 %v1713, %v1989
        %v2104 = vadd.f32 %v1714, %v1994
        %v2105 = vadd.f32 %v1715, %v1999
        %v2106 = vadd.f32 %v1716, %v2004
        %v2107 = vadd.f32 %v1717, %v2009
        %v2108 = vadd.f32 %v1718, %v2014
        %v2109 = vadd.f32 %v1719, %v2019
        %v2110 = vadd.f32 %v1720, %v2024
        %v2111 = vadd.f32 %v1721, %v2029
        %v2112 = vadd.f32 %v1722, %v2034
        %v2113 = vadd.f32 %v1723, %v2039
        %v2114 = vadd.f32 %v1724, %v2044
        %v2115 = vadd.f32 %v1725, %v2049
        %v2116 = vadd.f32 %v1726, %v2054
        %v2117 = vadd.f32 %v1727, %v2059
        %v2118 = vadd.f32 %v1728, %v2064
        %v2119 = vadd.f32 %v1729, %v2069
        %v2120 = vadd.f32 %v1730, %v2074
        %v2121 = vadd.f32 %v1731, %v2079
        %v2122 = vadd.f32 %v1732, %v2084
        %v2123 = vadd.f32 %v1733, %v2089
        %v2124 = vld [vmem:[%s1343 + $0x2] sm:$0xff]
        %v2125 = vld [vmem:[%s1343 + $0xa] sm:$0xff]
        %v2126 = vld [vmem:[%s1343 + $0x1a] sm:$0xff]
        %v2127 = vld [vmem:[%s1343 + $0x22] sm:$0xff]
        %v2128 = vld [vmem:[%s1343 + $0x32] sm:$0xff]
        %v2129 = vld [vmem:[%s1343 + $0x3a] sm:$0xff]
        %v2130 = vld [vmem:[%s1343 + $0x4a] sm:$0xff]
        %v2131 = vld [vmem:[%s1343 + $0x52] sm:$0xff]
        %v2132 = vld [vmem:[%s1343 + $0x62] sm:$0xff]
        %v2133 = vld [vmem:[%s1343 + $0x6a] sm:$0xff]
        %v2134 = vld [vmem:[%s1343 + $0x7a] sm:$0xff]
        %v2135 = vld [vmem:[%s1343 + $0x82] sm:$0xff]
        %v2136 = vld [vmem:[%s1343 + $0x92] sm:$0xff]
        %v2137 = vld [vmem:[%s1343 + $0x9a] sm:$0xff]
        %v2138 = vld [vmem:[%s1343 + $0xaa] sm:$0xff]
        %v2139 = vld [vmem:[%s1343 + $0xb2] sm:$0xff]
        %v2140 = vld [vmem:[%s1343 + $0xc2] sm:$0xff]
        %v2141 = vld [vmem:[%s1343 + $0xca] sm:$0xff]
        %v2142 = vld [vmem:[%s1343 + $0xda] sm:$0xff]
        %v2143 = vld [vmem:[%s1343 + $0xe2] sm:$0xff]
        %v2144 = vld [vmem:[%s1343 + $0xf2] sm:$0xff]
        %v2145 = vld [vmem:[%s1343 + $0xfa] sm:$0xff]
        %v2146 = vld [vmem:[%s1343 + $0x10a] sm:$0xff]
        %v2147 = vld [vmem:[%s1343 + $0x112] sm:$0xff]
        %v2148 = vld [vmem:[%s1343 + $0x122] sm:$0xff]
        %v2149 = vld [vmem:[%s1343 + $0x12a] sm:$0xff]
        %v2150 = vld [vmem:[%s1343 + $0x13a] sm:$0xff]
        %v2151 = vld [vmem:[%s1343 + $0x142] sm:$0xff]
        %v2152 = vld [vmem:[%s1343 + $0x152] sm:$0xff]
        %v2153 = vld [vmem:[%s1343 + $0x15a] sm:$0xff]
        %v2154 = vld [vmem:[%s1343 + $0x16a] sm:$0xff]
        %v2155 = vld [vmem:[%s1343 + $0x172] sm:$0xff]
        %s2156 = scalar_lea.vmem %s1, 20
        %v2157 = vld [vmem:[%s2156] sm:$0xf]
        %v2159 = vsel %vm301, %v2124, 0
        %v2162 = vsel %vm301, %v2125, 0
        %v2165 = vsel %vm301, %v2126, 0
        %v2168 = vsel %vm301, %v2127, 0
        %v2171 = vsel %vm301, %v2128, 0
        %v2174 = vsel %vm301, %v2129, 0
        %v2177 = vsel %vm301, %v2130, 0
        %v2180 = vsel %vm301, %v2131, 0
        %v2183 = vsel %vm301, %v2132, 0
        %v2186 = vsel %vm301, %v2133, 0
        %v2189 = vsel %vm301, %v2134, 0
        %v2192 = vsel %vm301, %v2135, 0
        %v2195 = vsel %vm301, %v2136, 0
        %v2198 = vsel %vm301, %v2137, 0
        %v2201 = vsel %vm301, %v2138, 0
        %v2204 = vsel %vm301, %v2139, 0
        %v2207 = vsel %vm301, %v2140, 0
        %v2210 = vsel %vm301, %v2141, 0
        %v2213 = vsel %vm301, %v2142, 0
        %v2216 = vsel %vm301, %v2143, 0
        %v2219 = vsel %vm301, %v2144, 0
        %v2222 = vsel %vm301, %v2145, 0
        %v2225 = vsel %vm301, %v2146, 0
        %v2228 = vsel %vm301, %v2147, 0
        %v2231 = vsel %vm301, %v2148, 0
        %v2234 = vsel %vm301, %v2149, 0
        %v2237 = vsel %vm301, %v2150, 0
        %v2240 = vsel %vm301, %v2151, 0
        %v2243 = vsel %vm301, %v2152, 0
        %v2246 = vsel %vm301, %v2153, 0
        %v2249 = vsel %vm301, %v2154, 0
        %v2252 = vsel %vm301, %v2155, 0
        %v2255 = vsel %vm398, %v2157, 0
        %2257 = vmatprep.subr.mxu0 0.0
        %2258 = vmatpush1.msra.mxu0 %v2255
        %2259 = vmatprep.subr.mxu0 0.0
        %2260 = vmatpush1.msra.mxu0 0.0
        %2261 = vmatprep.subr.mxu0 0.0
        %2262 = vmatpush1.msra.mxu0 0.0
        %2263 = vmatprep.subr.mxu0 0.0
        %2264 = vmatpush1.msra.mxu0 0.0
        %2265 = vmatprep.subr.mxu0 0.0
        %2266 = vmatpush1.msra.mxu0 0.0
        %2267 = vmatprep.subr.mxu0 0.0
        %2268 = vmatpush1.msra.mxu0 0.0
        %2269 = vmatprep.subr.mxu0 0.0
        %2270 = vmatpush1.msra.mxu0 0.0
        %2271 = vmatprep.subr.mxu0 0.0
        %2272 = vmatpush1.msra.mxu0 0.0
        %2273 = vmatprep.subr.mxu0 0.0
        %2274 = vmatpush1.msra.mxu0 0.0
        %2275 = vmatprep.subr.mxu0 0.0
        %2276 = vmatpush1.msra.mxu0 0.0
        %2277 = vmatprep.subr.mxu0 0.0
        %2278 = vmatpush1.msra.mxu0 0.0
        %2279 = vmatprep.subr.mxu0 0.0
        %2280 = vmatpush1.msra.mxu0 0.0
        %2281 = vmatprep.subr.mxu0 0.0
        %2282 = vmatpush1.msra.mxu0 0.0
        %2283 = vmatprep.subr.mxu0 0.0
        %2284 = vmatpush1.msra.mxu0 0.0
        %2285 = vmatprep.subr.mxu0 0.0
        %2286 = vmatpush1.msra.mxu0 0.0
        %2287 = vmatprep.subr.mxu0 0.0
        %2288 = vmatpush1.msra.mxu0 0.0
        %2289 = vmatprep.subr.mxu0 0.0
        %2290 = vmatpush1.msra.mxu0 0.0
        %2291 = vmatprep.subr.mxu0 0.0
        %2292 = vmatpush1.msra.mxu0 0.0
        %2293 = vmatprep.subr.mxu0 0.0
        %2294 = vmatpush1.msra.mxu0 0.0
        %2295 = vmatprep.subr.mxu0 0.0
        %2296 = vmatpush1.msra.mxu0 0.0
        %2297 = vmatprep.subr.mxu0 0.0
        %2298 = vmatpush1.msra.mxu0 0.0
        %2299 = vmatprep.subr.mxu0 0.0
        %2300 = vmatpush1.msra.mxu0 0.0
        %2301 = vmatprep.subr.mxu0 0.0
        %2302 = vmatpush1.msra.mxu0 0.0
        %2303 = vmatprep.subr.mxu0 0.0
        %2304 = vmatpush1.msra.mxu0 0.0
        %2305 = vmatprep.subr.mxu0 0.0
        %2306 = vmatpush1.msra.mxu0 0.0
        %2307 = vmatprep.subr.mxu0 0.0
        %2308 = vmatpush1.msra.mxu0 0.0
        %2309 = vmatprep.subr.mxu0 0.0
        %2310 = vmatpush1.msra.mxu0 0.0
        %2311 = vmatprep.subr.mxu0 0.0
        %2312 = vmatpush1.msra.mxu0 0.0
        %2313 = vmatprep.subr.mxu0 0.0
        %2314 = vmatpush1.msra.mxu0 0.0
        %2315 = vmatprep.subr.mxu0 0.0
        %2316 = vmatpush1.msra.mxu0 0.0
        %2317 = vmatprep.subr.mxu0 0.0
        %2318 = vmatpush1.msra.mxu0 0.0
        %2319 = vmatprep.subr.mxu0 0.0
        %2320 = vmatpush1.msra.mxu0 0.0
        %2321 = vmatprep.mubr.f32.mxu0 0.0
        %2322 = vmatmul.mubr.f32.gmra.mrb[0].mxu0 %v2159
        %v2323 = vpop.f32.mrb[0].mxu0
        %v2324 = vadd.f32 0.0, %v2323
        %v2325 = vpop.f32.mrb[0].mxu0
        %2326 = vmatprep.mubr.f32.mxu0 0.0
        %2327 = vmatmul.mubr.f32.gmra.mrb[0].mxu0 %v2162
        %v2328 = vpop.f32.mrb[0].mxu0
        %v2329 = vadd.f32 0.0, %v2328
        %v2330 = vpop.f32.mrb[0].mxu0
        %2331 = vmatprep.mubr.f32.mxu0 0.0
        %2332 = vmatmul.mubr.f32.gmra.mrb[0].mxu0 %v2165
        %v2333 = vpop.f32.mrb[0].mxu0
        %v2334 = vadd.f32 0.0, %v2333
        %v2335 = vpop.f32.mrb[0].mxu0
        %2336 = vmatprep.mubr.f32.mxu0 0.0
        %2337 = vmatmul.mubr.f32.gmra.mrb[0].mxu0 %v2168
        %v2338 = vpop.f32.mrb[0].mxu0
        %v2339 = vadd.f32 0.0, %v2338
        %v2340 = vpop.f32.mrb[0].mxu0
        %2341 = vmatprep.mubr.f32.mxu0 0.0
        %2342 = vmatmul.mubr.f32.gmra.mrb[0].mxu0 %v2171
        %v2343 = vpop.f32.mrb[0].mxu0
        %v2344 = vadd.f32 0.0, %v2343
        %v2345 = vpop.f32.mrb[0].mxu0
        %2346 = vmatprep.mubr.f32.mxu0 0.0
        %2347 = vmatmul.mubr.f32.gmra.mrb[0].mxu0 %v2174
        %v2348 = vpop.f32.mrb[0].mxu0
        %v2349 = vadd.f32 0.0, %v2348
        %v2350 = vpop.f32.mrb[0].mxu0
        %2351 = vmatprep.mubr.f32.mxu0 0.0
        %2352 = vmatmul.mubr.f32.gmra.mrb[0].mxu0 %v2177
        %v2353 = vpop.f32.mrb[0].mxu0
        %v2354 = vadd.f32 0.0, %v2353
        %v2355 = vpop.f32.mrb[0].mxu0
        %2356 = vmatprep.mubr.f32.mxu0 0.0
        %2357 = vmatmul.mubr.f32.gmra.mrb[0].mxu0 %v2180
        %v2358 = vpop.f32.mrb[0].mxu0
        %v2359 = vadd.f32 0.0, %v2358
        %v2360 = vpop.f32.mrb[0].mxu0
        %2361 = vmatprep.mubr.f32.mxu0 0.0
        %2362 = vmatmul.mubr.f32.gmra.mrb[0].mxu0 %v2183
        %v2363 = vpop.f32.mrb[0].mxu0
        %v2364 = vadd.f32 0.0, %v2363
        %v2365 = vpop.f32.mrb[0].mxu0
        %2366 = vmatprep.mubr.f32.mxu0 0.0
        %2367 = vmatmul.mubr.f32.gmra.mrb[0].mxu0 %v2186
        %v2368 = vpop.f32.mrb[0].mxu0
        %v2369 = vadd.f32 0.0, %v2368
        %v2370 = vpop.f32.mrb[0].mxu0
        %2371 = vmatprep.mubr.f32.mxu0 0.0
        %2372 = vmatmul.mubr.f32.gmra.mrb[0].mxu0 %v2189
        %v2373 = vpop.f32.mrb[0].mxu0
        %v2374 = vadd.f32 0.0, %v2373
        %v2375 = vpop.f32.mrb[0].mxu0
        %2376 = vmatprep.mubr.f32.mxu0 0.0
        %2377 = vmatmul.mubr.f32.gmra.mrb[0].mxu0 %v2192
        %v2378 = vpop.f32.mrb[0].mxu0
        %v2379 = vadd.f32 0.0, %v2378
        %v2380 = vpop.f32.mrb[0].mxu0
        %2381 = vmatprep.mubr.f32.mxu0 0.0
        %2382 = vmatmul.mubr.f32.gmra.mrb[0].mxu0 %v2195
        %v2383 = vpop.f32.mrb[0].mxu0
        %v2384 = vadd.f32 0.0, %v2383
        %v2385 = vpop.f32.mrb[0].mxu0
        %2386 = vmatprep.mubr.f32.mxu0 0.0
        %2387 = vmatmul.mubr.f32.gmra.mrb[0].mxu0 %v2198
        %v2388 = vpop.f32.mrb[0].mxu0
        %v2389 = vadd.f32 0.0, %v2388
        %v2390 = vpop.f32.mrb[0].mxu0
        %2391 = vmatprep.mubr.f32.mxu0 0.0
        %2392 = vmatmul.mubr.f32.gmra.mrb[0].mxu0 %v2201
        %v2393 = vpop.f32.mrb[0].mxu0
        %v2394 = vadd.f32 0.0, %v2393
        %v2395 = vpop.f32.mrb[0].mxu0
        %2396 = vmatprep.mubr.f32.mxu0 0.0
        %2397 = vmatmul.mubr.f32.gmra.mrb[0].mxu0 %v2204
        %v2398 = vpop.f32.mrb[0].mxu0
        %v2399 = vadd.f32 0.0, %v2398
        %v2400 = vpop.f32.mrb[0].mxu0
        %2401 = vmatprep.mubr.f32.mxu0 0.0
        %2402 = vmatmul.mubr.f32.gmra.mrb[0].mxu0 %v2207
        %v2403 = vpop.f32.mrb[0].mxu0
        %v2404 = vadd.f32 0.0, %v2403
        %v2405 = vpop.f32.mrb[0].mxu0
        %2406 = vmatprep.mubr.f32.mxu0 0.0
        %2407 = vmatmul.mubr.f32.gmra.mrb[0].mxu0 %v2210
        %v2408 = vpop.f32.mrb[0].mxu0
        %v2409 = vadd.f32 0.0, %v2408
        %v2410 = vpop.f32.mrb[0].mxu0
        %2411 = vmatprep.mubr.f32.mxu0 0.0
        %2412 = vmatmul.mubr.f32.gmra.mrb[0].mxu0 %v2213
        %v2413 = vpop.f32.mrb[0].mxu0
        %v2414 = vadd.f32 0.0, %v2413
        %v2415 = vpop.f32.mrb[0].mxu0
        %2416 = vmatprep.mubr.f32.mxu0 0.0
        %2417 = vmatmul.mubr.f32.gmra.mrb[0].mxu0 %v2216
        %v2418 = vpop.f32.mrb[0].mxu0
        %v2419 = vadd.f32 0.0, %v2418
        %v2420 = vpop.f32.mrb[0].mxu0
        %2421 = vmatprep.mubr.f32.mxu0 0.0
        %2422 = vmatmul.mubr.f32.gmra.mrb[0].mxu0 %v2219
        %v2423 = vpop.f32.mrb[0].mxu0
        %v2424 = vadd.f32 0.0, %v2423
        %v2425 = vpop.f32.mrb[0].mxu0
        %2426 = vmatprep.mubr.f32.mxu0 0.0
        %2427 = vmatmul.mubr.f32.gmra.mrb[0].mxu0 %v2222
        %v2428 = vpop.f32.mrb[0].mxu0
        %v2429 = vadd.f32 0.0, %v2428
        %v2430 = vpop.f32.mrb[0].mxu0
        %2431 = vmatprep.mubr.f32.mxu0 0.0
        %2432 = vmatmul.mubr.f32.gmra.mrb[0].mxu0 %v2225
        %v2433 = vpop.f32.mrb[0].mxu0
        %v2434 = vadd.f32 0.0, %v2433
        %v2435 = vpop.f32.mrb[0].mxu0
        %2436 = vmatprep.mubr.f32.mxu0 0.0
        %2437 = vmatmul.mubr.f32.gmra.mrb[0].mxu0 %v2228
        %v2438 = vpop.f32.mrb[0].mxu0
        %v2439 = vadd.f32 0.0, %v2438
        %v2440 = vpop.f32.mrb[0].mxu0
        %2441 = vmatprep.mubr.f32.mxu0 0.0
        %2442 = vmatmul.mubr.f32.gmra.mrb[0].mxu0 %v2231
        %v2443 = vpop.f32.mrb[0].mxu0
        %v2444 = vadd.f32 0.0, %v2443
        %v2445 = vpop.f32.mrb[0].mxu0
        %2446 = vmatprep.mubr.f32.mxu0 0.0
        %2447 = vmatmul.mubr.f32.gmra.mrb[0].mxu0 %v2234
        %v2448 = vpop.f32.mrb[0].mxu0
        %v2449 = vadd.f32 0.0, %v2448
        %v2450 = vpop.f32.mrb[0].mxu0
        %2451 = vmatprep.mubr.f32.mxu0 0.0
        %2452 = vmatmul.mubr.f32.gmra.mrb[0].mxu0 %v2237
        %v2453 = vpop.f32.mrb[0].mxu0
        %v2454 = vadd.f32 0.0, %v2453
        %v2455 = vpop.f32.mrb[0].mxu0
        %2456 = vmatprep.mubr.f32.mxu0 0.0
        %2457 = vmatmul.mubr.f32.gmra.mrb[0].mxu0 %v2240
        %v2458 = vpop.f32.mrb[0].mxu0
        %v2459 = vadd.f32 0.0, %v2458
        %v2460 = vpop.f32.mrb[0].mxu0
        %2461 = vmatprep.mubr.f32.mxu0 0.0
        %2462 = vmatmul.mubr.f32.gmra.mrb[0].mxu0 %v2243
        %v2463 = vpop.f32.mrb[0].mxu0
        %v2464 = vadd.f32 0.0, %v2463
        %v2465 = vpop.f32.mrb[0].mxu0
        %2466 = vmatprep.mubr.f32.mxu0 0.0
        %2467 = vmatmul.mubr.f32.gmra.mrb[0].mxu0 %v2246
        %v2468 = vpop.f32.mrb[0].mxu0
        %v2469 = vadd.f32 0.0, %v2468
        %v2470 = vpop.f32.mrb[0].mxu0
        %2471 = vmatprep.mubr.f32.mxu0 0.0
        %2472 = vmatmul.mubr.f32.gmra.mrb[0].mxu0 %v2249
        %v2473 = vpop.f32.mrb[0].mxu0
        %v2474 = vadd.f32 0.0, %v2473
        %v2475 = vpop.f32.mrb[0].mxu0
        %2476 = vmatprep.mubr.f32.mxu0 0.0
        %2477 = vmatmul.mubr.f32.gmra.mrb[0].mxu0 %v2252
        %v2478 = vpop.f32.mrb[0].mxu0
        %v2479 = vadd.f32 0.0, %v2478
        %v2480 = vpop.f32.mrb[0].mxu0
        %2481 = vdwg.mxu0
        %v2482 = vadd.f32 %v2092, %v2324
        %v2483 = vadd.f32 %v2093, %v2329
        %v2484 = vadd.f32 %v2094, %v2334
        %v2485 = vadd.f32 %v2095, %v2339
        %v2486 = vadd.f32 %v2096, %v2344
        %v2487 = vadd.f32 %v2097, %v2349
        %v2488 = vadd.f32 %v2098, %v2354
        %v2489 = vadd.f32 %v2099, %v2359
        %v2490 = vadd.f32 %v2100, %v2364
        %v2491 = vadd.f32 %v2101, %v2369
        %v2492 = vadd.f32 %v2102, %v2374
        %v2493 = vadd.f32 %v2103, %v2379
        %v2494 = vadd.f32 %v2104, %v2384
        %v2495 = vadd.f32 %v2105, %v2389
        %v2496 = vadd.f32 %v2106, %v2394
        %v2497 = vadd.f32 %v2107, %v2399
        %v2498 = vadd.f32 %v2108, %v2404
        %v2499 = vadd.f32 %v2109, %v2409
        %v2500 = vadd.f32 %v2110, %v2414
        %v2501 = vadd.f32 %v2111, %v2419
        %v2502 = vadd.f32 %v2112, %v2424
        %v2503 = vadd.f32 %v2113, %v2429
        %v2504 = vadd.f32 %v2114, %v2434
        %v2505 = vadd.f32 %v2115, %v2439
        %v2506 = vadd.f32 %v2116, %v2444
        %v2507 = vadd.f32 %v2117, %v2449
        %v2508 = vadd.f32 %v2118, %v2454
        %v2509 = vadd.f32 %v2119, %v2459
        %v2510 = vadd.f32 %v2120, %v2464
        %v2511 = vadd.f32 %v2121, %v2469
        %v2512 = vadd.f32 %v2122, %v2474
        %v2513 = vadd.f32 %v2123, %v2479
        %s2514 = sadd.s32 %s231, 2
        %s2515 = smul.u32 %s2514, 24
        %s2516 = scalar_lea.vmem %s229, %s2515
        %v2517 = vld [vmem:[%s2516] sm:$0xff]
        %v2518 = vld [vmem:[%s2516 + $0x8] sm:$0xff]
        %v2519 = vld [vmem:[%s2516 + $0x18] sm:$0xff]
        %v2520 = vld [vmem:[%s2516 + $0x20] sm:$0xff]
        %v2521 = vld [vmem:[%s2516 + $0x30] sm:$0xff]
        %v2522 = vld [vmem:[%s2516 + $0x38] sm:$0xff]
        %v2523 = vld [vmem:[%s2516 + $0x48] sm:$0xff]
        %v2524 = vld [vmem:[%s2516 + $0x50] sm:$0xff]
        %v2525 = vld [vmem:[%s2516 + $0x60] sm:$0xff]
        %v2526 = vld [vmem:[%s2516 + $0x68] sm:$0xff]
        %v2527 = vld [vmem:[%s2516 + $0x78] sm:$0xff]
        %v2528 = vld [vmem:[%s2516 + $0x80] sm:$0xff]
        %v2529 = vld [vmem:[%s2516 + $0x90] sm:$0xff]
        %v2530 = vld [vmem:[%s2516 + $0x98] sm:$0xff]
        %v2531 = vld [vmem:[%s2516 + $0xa8] sm:$0xff]
        %v2532 = vld [vmem:[%s2516 + $0xb0] sm:$0xff]
        %v2533 = vld [vmem:[%s2516 + $0xc0] sm:$0xff]
        %v2534 = vld [vmem:[%s2516 + $0xc8] sm:$0xff]
        %v2535 = vld [vmem:[%s2516 + $0xd8] sm:$0xff]
        %v2536 = vld [vmem:[%s2516 + $0xe0] sm:$0xff]
        %v2537 = vld [vmem:[%s2516 + $0xf0] sm:$0xff]
        %v2538 = vld [vmem:[%s2516 + $0xf8] sm:$0xff]
        %v2539 = vld [vmem:[%s2516 + $0x108] sm:$0xff]
        %v2540 = vld [vmem:[%s2516 + $0x110] sm:$0xff]
        %v2541 = vld [vmem:[%s2516 + $0x120] sm:$0xff]
        %v2542 = vld [vmem:[%s2516 + $0x128] sm:$0xff]
        %v2543 = vld [vmem:[%s2516 + $0x138] sm:$0xff]
        %v2544 = vld [vmem:[%s2516 + $0x140] sm:$0xff]
        %v2545 = vld [vmem:[%s2516 + $0x150] sm:$0xff]
        %v2546 = vld [vmem:[%s2516 + $0x158] sm:$0xff]
        %v2547 = vld [vmem:[%s2516 + $0x168] sm:$0xff]
        %v2548 = vld [vmem:[%s2516 + $0x170] sm:$0xff]
        %s2549 = scalar_lea.vmem %s1, 24
        %v2550 = vld [vmem:[%s2549] sm:$0xf]
        %v2552 = vsel %vm301, %v2517, 0
        %v2555 = vsel %vm301, %v2518, 0
        %v2558 = vsel %vm301, %v2519, 0
        %v2561 = vsel %vm301, %v2520, 0
        %v2564 = vsel %vm301, %v2521, 0
        %v2567 = vsel %vm301, %v2522, 0
        %v2570 = vsel %vm301, %v2523, 0
        %v2573 = vsel %vm301, %v2524, 0
        %v2576 = vsel %vm301, %v2525, 0
        %v2579 = vsel %vm301, %v2526, 0
        %v2582 = vsel %vm301, %v2527, 0
        %v2585 = vsel %vm301, %v2528, 0
        %v2588 = vsel %vm301, %v2529, 0
        %v2591 = vsel %vm301, %v2530, 0
        %v2594 = vsel %vm301, %v2531, 0
        %v2597 = vsel %vm301, %v2532, 0
        %v2600 = vsel %vm301, %v2533, 0
        %v2603 = vsel %vm301, %v2534, 0
        %v2606 = vsel %vm301, %v2535, 0
        %v2609 = vsel %vm301, %v2536, 0
        %v2612 = vsel %vm301, %v2537, 0
        %v2615 = vsel %vm301, %v2538, 0
        %v2618 = vsel %vm301, %v2539, 0
        %v2621 = vsel %vm301, %v2540, 0
        %v2624 = vsel %vm301, %v2541, 0
        %v2627 = vsel %vm301, %v2542, 0
        %v2630 = vsel %vm301, %v2543, 0
        %v2633 = vsel %vm301, %v2544, 0
        %v2636 = vsel %vm301, %v2545, 0
        %v2639 = vsel %vm301, %v2546, 0
        %v2642 = vsel %vm301, %v2547, 0
        %v2645 = vsel %vm301, %v2548, 0
        %v2648 = vsel %vm398, %v2550, 0
        %2650 = vmatprep.subr.mxu0 0.0
        %2651 = vmatpush1.msra.mxu0 %v2648
        %2652 = vmatprep.subr.mxu0 0.0
        %2653 = vmatpush1.msra.mxu0 0.0
        %2654 = vmatprep.subr.mxu0 0.0
        %2655 = vmatpush1.msra.mxu0 0.0
        %2656 = vmatprep.subr.mxu0 0.0
        %2657 = vmatpush1.msra.mxu0 0.0
        %2658 = vmatprep.subr.mxu0 0.0
        %2659 = vmatpush1.msra.mxu0 0.0
        %2660 = vmatprep.subr.mxu0 0.0
        %2661 = vmatpush1.msra.mxu0 0.0
        %2662 = vmatprep.subr.mxu0 0.0
        %2663 = vmatpush1.msra.mxu0 0.0
        %2664 = vmatprep.subr.mxu0 0.0
        %2665 = vmatpush1.msra.mxu0 0.0
        %2666 = vmatprep.subr.mxu0 0.0
        %2667 = vmatpush1.msra.mxu0 0.0
        %2668 = vmatprep.subr.mxu0 0.0
        %2669 = vmatpush1.msra.mxu0 0.0
        %2670 = vmatprep.subr.mxu0 0.0
        %2671 = vmatpush1.msra.mxu0 0.0
        %2672 = vmatprep.subr.mxu0 0.0
        %2673 = vmatpush1.msra.mxu0 0.0
        %2674 = vmatprep.subr.mxu0 0.0
        %2675 = vmatpush1.msra.mxu0 0.0
        %2676 = vmatprep.subr.mxu0 0.0
        %2677 = vmatpush1.msra.mxu0 0.0
        %2678 = vmatprep.subr.mxu0 0.0
        %2679 = vmatpush1.msra.mxu0 0.0
        %2680 = vmatprep.subr.mxu0 0.0
        %2681 = vmatpush1.msra.mxu0 0.0
        %2682 = vmatprep.subr.mxu0 0.0
        %2683 = vmatpush1.msra.mxu0 0.0
        %2684 = vmatprep.subr.mxu0 0.0
        %2685 = vmatpush1.msra.mxu0 0.0
        %2686 = vmatprep.subr.mxu0 0.0
        %2687 = vmatpush1.msra.mxu0 0.0
        %2688 = vmatprep.subr.mxu0 0.0
        %2689 = vmatpush1.msra.mxu0 0.0
        %2690 = vmatprep.subr.mxu0 0.0
        %2691 = vmatpush1.msra.mxu0 0.0
        %2692 = vmatprep.subr.mxu0 0.0
        %2693 = vmatpush1.msra.mxu0 0.0
        %2694 = vmatprep.subr.mxu0 0.0
        %2695 = vmatpush1.msra.mxu0 0.0
        %2696 = vmatprep.subr.mxu0 0.0
        %2697 = vmatpush1.msra.mxu0 0.0
        %2698 = vmatprep.subr.mxu0 0.0
        %2699 = vmatpush1.msra.mxu0 0.0
        %2700 = vmatprep.subr.mxu0 0.0
        %2701 = vmatpush1.msra.mxu0 0.0
        %2702 = vmatprep.subr.mxu0 0.0
        %2703 = vmatpush1.msra.mxu0 0.0
        %2704 = vmatprep.subr.mxu0 0.0
        %2705 = vmatpush1.msra.mxu0 0.0
        %2706 = vmatprep.subr.mxu0 0.0
        %2707 = vmatpush1.msra.mxu0 0.0
        %2708 = vmatprep.subr.mxu0 0.0
        %2709 = vmatpush1.msra.mxu0 0.0
        %2710 = vmatprep.subr.mxu0 0.0
        %2711 = vmatpush1.msra.mxu0 0.0
        %2712 = vmatprep.subr.mxu0 0.0
        %2713 = vmatpush1.msra.mxu0 0.0
        %2714 = vmatprep.mubr.f32.mxu0 0.0
        %2715 = vmatmul.mubr.f32.gmra.mrb[0].mxu0 %v2552
        %v2716 = vpop.f32.mrb[0].mxu0
        %v2717 = vadd.f32 0.0, %v2716
        %v2718 = vpop.f32.mrb[0].mxu0
        %2719 = vmatprep.mubr.f32.mxu0 0.0
        %2720 = vmatmul.mubr.f32.gmra.mrb[0].mxu0 %v2555
        %v2721 = vpop.f32.mrb[0].mxu0
        %v2722 = vadd.f32 0.0, %v2721
        %v2723 = vpop.f32.mrb[0].mxu0
        %2724 = vmatprep.mubr.f32.mxu0 0.0
        %2725 = vmatmul.mubr.f32.gmra.mrb[0].mxu0 %v2558
        %v2726 = vpop.f32.mrb[0].mxu0
        %v2727 = vadd.f32 0.0, %v2726
        %v2728 = vpop.f32.mrb[0].mxu0
        %2729 = vmatprep.mubr.f32.mxu0 0.0
        %2730 = vmatmul.mubr.f32.gmra.mrb[0].mxu0 %v2561
        %v2731 = vpop.f32.mrb[0].mxu0
        %v2732 = vadd.f32 0.0, %v2731
        %v2733 = vpop.f32.mrb[0].mxu0
        %2734 = vmatprep.mubr.f32.mxu0 0.0
        %2735 = vmatmul.mubr.f32.gmra.mrb[0].mxu0 %v2564
        %v2736 = vpop.f32.mrb[0].mxu0
        %v2737 = vadd.f32 0.0, %v2736
        %v2738 = vpop.f32.mrb[0].mxu0
        %2739 = vmatprep.mubr.f32.mxu0 0.0
        %2740 = vmatmul.mubr.f32.gmra.mrb[0].mxu0 %v2567
        %v2741 = vpop.f32.mrb[0].mxu0
        %v2742 = vadd.f32 0.0, %v2741
        %v2743 = vpop.f32.mrb[0].mxu0
        %2744 = vmatprep.mubr.f32.mxu0 0.0
        %2745 = vmatmul.mubr.f32.gmra.mrb[0].mxu0 %v2570
        %v2746 = vpop.f32.mrb[0].mxu0
        %v2747 = vadd.f32 0.0, %v2746
        %v2748 = vpop.f32.mrb[0].mxu0
        %2749 = vmatprep.mubr.f32.mxu0 0.0
        %2750 = vmatmul.mubr.f32.gmra.mrb[0].mxu0 %v2573
        %v2751 = vpop.f32.mrb[0].mxu0
        %v2752 = vadd.f32 0.0, %v2751
        %v2753 = vpop.f32.mrb[0].mxu0
        %2754 = vmatprep.mubr.f32.mxu0 0.0
        %2755 = vmatmul.mubr.f32.gmra.mrb[0].mxu0 %v2576
        %v2756 = vpop.f32.mrb[0].mxu0
        %v2757 = vadd.f32 0.0, %v2756
        %v2758 = vpop.f32.mrb[0].mxu0
        %2759 = vmatprep.mubr.f32.mxu0 0.0
        %2760 = vmatmul.mubr.f32.gmra.mrb[0].mxu0 %v2579
        %v2761 = vpop.f32.mrb[0].mxu0
        %v2762 = vadd.f32 0.0, %v2761
        %v2763 = vpop.f32.mrb[0].mxu0
        %2764 = vmatprep.mubr.f32.mxu0 0.0
        %2765 = vmatmul.mubr.f32.gmra.mrb[0].mxu0 %v2582
        %v2766 = vpop.f32.mrb[0].mxu0
        %v2767 = vadd.f32 0.0, %v2766
        %v2768 = vpop.f32.mrb[0].mxu0
        %2769 = vmatprep.mubr.f32.mxu0 0.0
        %2770 = vmatmul.mubr.f32.gmra.mrb[0].mxu0 %v2585
        %v2771 = vpop.f32.mrb[0].mxu0
        %v2772 = vadd.f32 0.0, %v2771
        %v2773 = vpop.f32.mrb[0].mxu0
        %2774 = vmatprep.mubr.f32.mxu0 0.0
        %2775 = vmatmul.mubr.f32.gmra.mrb[0].mxu0 %v2588
        %v2776 = vpop.f32.mrb[0].mxu0
        %v2777 = vadd.f32 0.0, %v2776
        %v2778 = vpop.f32.mrb[0].mxu0
        %2779 = vmatprep.mubr.f32.mxu0 0.0
        %2780 = vmatmul.mubr.f32.gmra.mrb[0].mxu0 %v2591
        %v2781 = vpop.f32.mrb[0].mxu0
        %v2782 = vadd.f32 0.0, %v2781
        %v2783 = vpop.f32.mrb[0].mxu0
        %2784 = vmatprep.mubr.f32.mxu0 0.0
        %2785 = vmatmul.mubr.f32.gmra.mrb[0].mxu0 %v2594
        %v2786 = vpop.f32.mrb[0].mxu0
        %v2787 = vadd.f32 0.0, %v2786
        %v2788 = vpop.f32.mrb[0].mxu0
        %2789 = vmatprep.mubr.f32.mxu0 0.0
        %2790 = vmatmul.mubr.f32.gmra.mrb[0].mxu0 %v2597
        %v2791 = vpop.f32.mrb[0].mxu0
        %v2792 = vadd.f32 0.0, %v2791
        %v2793 = vpop.f32.mrb[0].mxu0
        %2794 = vmatprep.mubr.f32.mxu0 0.0
        %2795 = vmatmul.mubr.f32.gmra.mrb[0].mxu0 %v2600
        %v2796 = vpop.f32.mrb[0].mxu0
        %v2797 = vadd.f32 0.0, %v2796
        %v2798 = vpop.f32.mrb[0].mxu0
        %2799 = vmatprep.mubr.f32.mxu0 0.0
        %2800 = vmatmul.mubr.f32.gmra.mrb[0].mxu0 %v2603
        %v2801 = vpop.f32.mrb[0].mxu0
        %v2802 = vadd.f32 0.0, %v2801
        %v2803 = vpop.f32.mrb[0].mxu0
        %2804 = vmatprep.mubr.f32.mxu0 0.0
        %2805 = vmatmul.mubr.f32.gmra.mrb[0].mxu0 %v2606
        %v2806 = vpop.f32.mrb[0].mxu0
        %v2807 = vadd.f32 0.0, %v2806
        %v2808 = vpop.f32.mrb[0].mxu0
        %2809 = vmatprep.mubr.f32.mxu0 0.0
        %2810 = vmatmul.mubr.f32.gmra.mrb[0].mxu0 %v2609
        %v2811 = vpop.f32.mrb[0].mxu0
        %v2812 = vadd.f32 0.0, %v2811
        %v2813 = vpop.f32.mrb[0].mxu0
        %2814 = vmatprep.mubr.f32.mxu0 0.0
        %2815 = vmatmul.mubr.f32.gmra.mrb[0].mxu0 %v2612
        %v2816 = vpop.f32.mrb[0].mxu0
        %v2817 = vadd.f32 0.0, %v2816
        %v2818 = vpop.f32.mrb[0].mxu0
        %2819 = vmatprep.mubr.f32.mxu0 0.0
        %2820 = vmatmul.mubr.f32.gmra.mrb[0].mxu0 %v2615
        %v2821 = vpop.f32.mrb[0].mxu0
        %v2822 = vadd.f32 0.0, %v2821
        %v2823 = vpop.f32.mrb[0].mxu0
        %2824 = vmatprep.mubr.f32.mxu0 0.0
        %2825 = vmatmul.mubr.f32.gmra.mrb[0].mxu0 %v2618
        %v2826 = vpop.f32.mrb[0].mxu0
        %v2827 = vadd.f32 0.0, %v2826
        %v2828 = vpop.f32.mrb[0].mxu0
        %2829 = vmatprep.mubr.f32.mxu0 0.0
        %2830 = vmatmul.mubr.f32.gmra.mrb[0].mxu0 %v2621
        %v2831 = vpop.f32.mrb[0].mxu0
        %v2832 = vadd.f32 0.0, %v2831
        %v2833 = vpop.f32.mrb[0].mxu0
        %2834 = vmatprep.mubr.f32.mxu0 0.0
        %2835 = vmatmul.mubr.f32.gmra.mrb[0].mxu0 %v2624
        %v2836 = vpop.f32.mrb[0].mxu0
        %v2837 = vadd.f32 0.0, %v2836
        %v2838 = vpop.f32.mrb[0].mxu0
        %2839 = vmatprep.mubr.f32.mxu0 0.0
        %2840 = vmatmul.mubr.f32.gmra.mrb[0].mxu0 %v2627
        %v2841 = vpop.f32.mrb[0].mxu0
        %v2842 = vadd.f32 0.0, %v2841
        %v2843 = vpop.f32.mrb[0].mxu0
        %2844 = vmatprep.mubr.f32.mxu0 0.0
        %2845 = vmatmul.mubr.f32.gmra.mrb[0].mxu0 %v2630
        %v2846 = vpop.f32.mrb[0].mxu0
        %v2847 = vadd.f32 0.0, %v2846
        %v2848 = vpop.f32.mrb[0].mxu0
        %2849 = vmatprep.mubr.f32.mxu0 0.0
        %2850 = vmatmul.mubr.f32.gmra.mrb[0].mxu0 %v2633
        %v2851 = vpop.f32.mrb[0].mxu0
        %v2852 = vadd.f32 0.0, %v2851
        %v2853 = vpop.f32.mrb[0].mxu0
        %2854 = vmatprep.mubr.f32.mxu0 0.0
        %2855 = vmatmul.mubr.f32.gmra.mrb[0].mxu0 %v2636
        %v2856 = vpop.f32.mrb[0].mxu0
        %v2857 = vadd.f32 0.0, %v2856
        %v2858 = vpop.f32.mrb[0].mxu0
        %2859 = vmatprep.mubr.f32.mxu0 0.0
        %2860 = vmatmul.mubr.f32.gmra.mrb[0].mxu0 %v2639
        %v2861 = vpop.f32.mrb[0].mxu0
        %v2862 = vadd.f32 0.0, %v2861
        %v2863 = vpop.f32.mrb[0].mxu0
        %2864 = vmatprep.mubr.f32.mxu0 0.0
        %2865 = vmatmul.mubr.f32.gmra.mrb[0].mxu0 %v2642
        %v2866 = vpop.f32.mrb[0].mxu0
        %v2867 = vadd.f32 0.0, %v2866
        %v2868 = vpop.f32.mrb[0].mxu0
        %2869 = vmatprep.mubr.f32.mxu0 0.0
        %2870 = vmatmul.mubr.f32.gmra.mrb[0].mxu0 %v2645
        %v2871 = vpop.f32.mrb[0].mxu0
        %v2872 = vadd.f32 0.0, %v2871
        %v2873 = vpop.f32.mrb[0].mxu0
        %2874 = vdwg.mxu0
        %v2875 = vadd.f32 %v2482, %v2717
        %v2876 = vadd.f32 %v2483, %v2722
        %v2877 = vadd.f32 %v2484, %v2727
        %v2878 = vadd.f32 %v2485, %v2732
        %v2879 = vadd.f32 %v2486, %v2737
        %v2880 = vadd.f32 %v2487, %v2742
        %v2881 = vadd.f32 %v2488, %v2747
        %v2882 = vadd.f32 %v2489, %v2752
        %v2883 = vadd.f32 %v2490, %v2757
        %v2884 = vadd.f32 %v2491, %v2762
        %v2885 = vadd.f32 %v2492, %v2767
        %v2886 = vadd.f32 %v2493, %v2772
        %v2887 = vadd.f32 %v2494, %v2777
        %v2888 = vadd.f32 %v2495, %v2782
        %v2889 = vadd.f32 %v2496, %v2787
        %v2890 = vadd.f32 %v2497, %v2792
        %v2891 = vadd.f32 %v2498, %v2797
        %v2892 = vadd.f32 %v2499, %v2802
        %v2893 = vadd.f32 %v2500, %v2807
        %v2894 = vadd.f32 %v2501, %v2812
        %v2895 = vadd.f32 %v2502, %v2817
        %v2896 = vadd.f32 %v2503, %v2822
        %v2897 = vadd.f32 %v2504, %v2827
        %v2898 = vadd.f32 %v2505, %v2832
        %v2899 = vadd.f32 %v2506, %v2837
        %v2900 = vadd.f32 %v2507, %v2842
        %v2901 = vadd.f32 %v2508, %v2847
        %v2902 = vadd.f32 %v2509, %v2852
        %v2903 = vadd.f32 %v2510, %v2857
        %v2904 = vadd.f32 %v2511, %v2862
        %v2905 = vadd.f32 %v2512, %v2867
        %v2906 = vadd.f32 %v2513, %v2872
        %v2907 = vld [vmem:[%s2516 + $0x1] sm:$0xff]
        %v2908 = vld [vmem:[%s2516 + $0x9] sm:$0xff]
        %v2909 = vld [vmem:[%s2516 + $0x19] sm:$0xff]
        %v2910 = vld [vmem:[%s2516 + $0x21] sm:$0xff]
        %v2911 = vld [vmem:[%s2516 + $0x31] sm:$0xff]
        %v2912 = vld [vmem:[%s2516 + $0x39] sm:$0xff]
        %v2913 = vld [vmem:[%s2516 + $0x49] sm:$0xff]
        %v2914 = vld [vmem:[%s2516 + $0x51] sm:$0xff]
        %v2915 = vld [vmem:[%s2516 + $0x61] sm:$0xff]
        %v2916 = vld [vmem:[%s2516 + $0x69] sm:$0xff]
        %v2917 = vld [vmem:[%s2516 + $0x79] sm:$0xff]
        %v2918 = vld [vmem:[%s2516 + $0x81] sm:$0xff]
        %v2919 = vld [vmem:[%s2516 + $0x91] sm:$0xff]
        %v2920 = vld [vmem:[%s2516 + $0x99] sm:$0xff]
        %v2921 = vld [vmem:[%s2516 + $0xa9] sm:$0xff]
        %v2922 = vld [vmem:[%s2516 + $0xb1] sm:$0xff]
        %v2923 = vld [vmem:[%s2516 + $0xc1] sm:$0xff]
        %v2924 = vld [vmem:[%s2516 + $0xc9] sm:$0xff]
        %v2925 = vld [vmem:[%s2516 + $0xd9] sm:$0xff]
        %v2926 = vld [vmem:[%s2516 + $0xe1] sm:$0xff]
        %v2927 = vld [vmem:[%s2516 + $0xf1] sm:$0xff]
        %v2928 = vld [vmem:[%s2516 + $0xf9] sm:$0xff]
        %v2929 = vld [vmem:[%s2516 + $0x109] sm:$0xff]
        %v2930 = vld [vmem:[%s2516 + $0x111] sm:$0xff]
        %v2931 = vld [vmem:[%s2516 + $0x121] sm:$0xff]
        %v2932 = vld [vmem:[%s2516 + $0x129] sm:$0xff]
        %v2933 = vld [vmem:[%s2516 + $0x139] sm:$0xff]
        %v2934 = vld [vmem:[%s2516 + $0x141] sm:$0xff]
        %v2935 = vld [vmem:[%s2516 + $0x151] sm:$0xff]
        %v2936 = vld [vmem:[%s2516 + $0x159] sm:$0xff]
        %v2937 = vld [vmem:[%s2516 + $0x169] sm:$0xff]
        %v2938 = vld [vmem:[%s2516 + $0x171] sm:$0xff]
        %s2939 = scalar_lea.vmem %s1, 28
        %v2940 = vld [vmem:[%s2939] sm:$0xf]
        %v2942 = vsel %vm301, %v2907, 0
        %v2945 = vsel %vm301, %v2908, 0
        %v2948 = vsel %vm301, %v2909, 0
        %v2951 = vsel %vm301, %v2910, 0
        %v2954 = vsel %vm301, %v2911, 0
        %v2957 = vsel %vm301, %v2912, 0
        %v2960 = vsel %vm301, %v2913, 0
        %v2963 = vsel %vm301, %v2914, 0
        %v2966 = vsel %vm301, %v2915, 0
        %v2969 = vsel %vm301, %v2916, 0
        %v2972 = vsel %vm301, %v2917, 0
        %v2975 = vsel %vm301, %v2918, 0
        %v2978 = vsel %vm301, %v2919, 0
        %v2981 = vsel %vm301, %v2920, 0
        %v2984 = vsel %vm301, %v2921, 0
        %v2987 = vsel %vm301, %v2922, 0
        %v2990 = vsel %vm301, %v2923, 0
        %v2993 = vsel %vm301, %v2924, 0
        %v2996 = vsel %vm301, %v2925, 0
        %v2999 = vsel %vm301, %v2926, 0
        %v3002 = vsel %vm301, %v2927, 0
        %v3005 = vsel %vm301, %v2928, 0
        %v3008 = vsel %vm301, %v2929, 0
        %v3011 = vsel %vm301, %v2930, 0
        %v3014 = vsel %vm301, %v2931, 0
        %v3017 = vsel %vm301, %v2932, 0
        %v3020 = vsel %vm301, %v2933, 0
        %v3023 = vsel %vm301, %v2934, 0
        %v3026 = vsel %vm301, %v2935, 0
        %v3029 = vsel %vm301, %v2936, 0
        %v3032 = vsel %vm301, %v2937, 0
        %v3035 = vsel %vm301, %v2938, 0
        %v3038 = vsel %vm398, %v2940, 0
        %3040 = vmatprep.subr.mxu0 0.0
        %3041 = vmatpush1.msra.mxu0 %v3038
        %3042 = vmatprep.subr.mxu0 0.0
        %3043 = vmatpush1.msra.mxu0 0.0
        %3044 = vmatprep.subr.mxu0 0.0
        %3045 = vmatpush1.msra.mxu0 0.0
        %3046 = vmatprep.subr.mxu0 0.0
        %3047 = vmatpush1.msra.mxu0 0.0
        %3048 = vmatprep.subr.mxu0 0.0
        %3049 = vmatpush1.msra.mxu0 0.0
        %3050 = vmatprep.subr.mxu0 0.0
        %3051 = vmatpush1.msra.mxu0 0.0
        %3052 = vmatprep.subr.mxu0 0.0
        %3053 = vmatpush1.msra.mxu0 0.0
        %3054 = vmatprep.subr.mxu0 0.0
        %3055 = vmatpush1.msra.mxu0 0.0
        %3056 = vmatprep.subr.mxu0 0.0
        %3057 = vmatpush1.msra.mxu0 0.0
        %3058 = vmatprep.subr.mxu0 0.0
        %3059 = vmatpush1.msra.mxu0 0.0
        %3060 = vmatprep.subr.mxu0 0.0
        %3061 = vmatpush1.msra.mxu0 0.0
        %3062 = vmatprep.subr.mxu0 0.0
        %3063 = vmatpush1.msra.mxu0 0.0
        %3064 = vmatprep.subr.mxu0 0.0
        %3065 = vmatpush1.msra.mxu0 0.0
        %3066 = vmatprep.subr.mxu0 0.0
        %3067 = vmatpush1.msra.mxu0 0.0
        %3068 = vmatprep.subr.mxu0 0.0
        %3069 = vmatpush1.msra.mxu0 0.0
        %3070 = vmatprep.subr.mxu0 0.0
        %3071 = vmatpush1.msra.mxu0 0.0
        %3072 = vmatprep.subr.mxu0 0.0
        %3073 = vmatpush1.msra.mxu0 0.0
        %3074 = vmatprep.subr.mxu0 0.0
        %3075 = vmatpush1.msra.mxu0 0.0
        %3076 = vmatprep.subr.mxu0 0.0
        %3077 = vmatpush1.msra.mxu0 0.0
        %3078 = vmatprep.subr.mxu0 0.0
        %3079 = vmatpush1.msra.mxu0 0.0
        %3080 = vmatprep.subr.mxu0 0.0
        %3081 = vmatpush1.msra.mxu0 0.0
        %3082 = vmatprep.subr.mxu0 0.0
        %3083 = vmatpush1.msra.mxu0 0.0
        %3084 = vmatprep.subr.mxu0 0.0
        %3085 = vmatpush1.msra.mxu0 0.0
        %3086 = vmatprep.subr.mxu0 0.0
        %3087 = vmatpush1.msra.mxu0 0.0
        %3088 = vmatprep.subr.mxu0 0.0
        %3089 = vmatpush1.msra.mxu0 0.0
        %3090 = vmatprep.subr.mxu0 0.0
        %3091 = vmatpush1.msra.mxu0 0.0
        %3092 = vmatprep.subr.mxu0 0.0
        %3093 = vmatpush1.msra.mxu0 0.0
        %3094 = vmatprep.subr.mxu0 0.0
        %3095 = vmatpush1.msra.mxu0 0.0
        %3096 = vmatprep.subr.mxu0 0.0
        %3097 = vmatpush1.msra.mxu0 0.0
        %3098 = vmatprep.subr.mxu0 0.0
        %3099 = vmatpush1.msra.mxu0 0.0
        %3100 = vmatprep.subr.mxu0 0.0
        %3101 = vmatpush1.msra.mxu0 0.0
        %3102 = vmatprep.subr.mxu0 0.0
        %3103 = vmatpush1.msra.mxu0 0.0
        %3104 = vmatprep.mubr.f32.mxu0 0.0
        %3105 = vmatmul.mubr.f32.gmra.mrb[0].mxu0 %v2942
        %v3106 = vpop.f32.mrb[0].mxu0
        %v3107 = vadd.f32 0.0, %v3106
        %v3108 = vpop.f32.mrb[0].mxu0
        %3109 = vmatprep.mubr.f32.mxu0 0.0
        %3110 = vmatmul.mubr.f32.gmra.mrb[0].mxu0 %v2945
        %v3111 = vpop.f32.mrb[0].mxu0
        %v3112 = vadd.f32 0.0, %v3111
        %v3113 = vpop.f32.mrb[0].mxu0
        %3114 = vmatprep.mubr.f32.mxu0 0.0
        %3115 = vmatmul.mubr.f32.gmra.mrb[0].mxu0 %v2948
        %v3116 = vpop.f32.mrb[0].mxu0
        %v3117 = vadd.f32 0.0, %v3116
        %v3118 = vpop.f32.mrb[0].mxu0
        %3119 = vmatprep.mubr.f32.mxu0 0.0
        %3120 = vmatmul.mubr.f32.gmra.mrb[0].mxu0 %v2951
        %v3121 = vpop.f32.mrb[0].mxu0
        %v3122 = vadd.f32 0.0, %v3121
        %v3123 = vpop.f32.mrb[0].mxu0
        %3124 = vmatprep.mubr.f32.mxu0 0.0
        %3125 = vmatmul.mubr.f32.gmra.mrb[0].mxu0 %v2954
        %v3126 = vpop.f32.mrb[0].mxu0
        %v3127 = vadd.f32 0.0, %v3126
        %v3128 = vpop.f32.mrb[0].mxu0
        %3129 = vmatprep.mubr.f32.mxu0 0.0
        %3130 = vmatmul.mubr.f32.gmra.mrb[0].mxu0 %v2957
        %v3131 = vpop.f32.mrb[0].mxu0
        %v3132 = vadd.f32 0.0, %v3131
        %v3133 = vpop.f32.mrb[0].mxu0
        %3134 = vmatprep.mubr.f32.mxu0 0.0
        %3135 = vmatmul.mubr.f32.gmra.mrb[0].mxu0 %v2960
        %v3136 = vpop.f32.mrb[0].mxu0
        %v3137 = vadd.f32 0.0, %v3136
        %v3138 = vpop.f32.mrb[0].mxu0
        %3139 = vmatprep.mubr.f32.mxu0 0.0
        %3140 = vmatmul.mubr.f32.gmra.mrb[0].mxu0 %v2963
        %v3141 = vpop.f32.mrb[0].mxu0
        %v3142 = vadd.f32 0.0, %v3141
        %v3143 = vpop.f32.mrb[0].mxu0
        %3144 = vmatprep.mubr.f32.mxu0 0.0
        %3145 = vmatmul.mubr.f32.gmra.mrb[0].mxu0 %v2966
        %v3146 = vpop.f32.mrb[0].mxu0
        %v3147 = vadd.f32 0.0, %v3146
        %v3148 = vpop.f32.mrb[0].mxu0
        %3149 = vmatprep.mubr.f32.mxu0 0.0
        %3150 = vmatmul.mubr.f32.gmra.mrb[0].mxu0 %v2969
        %v3151 = vpop.f32.mrb[0].mxu0
        %v3152 = vadd.f32 0.0, %v3151
        %v3153 = vpop.f32.mrb[0].mxu0
        %3154 = vmatprep.mubr.f32.mxu0 0.0
        %3155 = vmatmul.mubr.f32.gmra.mrb[0].mxu0 %v2972
        %v3156 = vpop.f32.mrb[0].mxu0
        %v3157 = vadd.f32 0.0, %v3156
        %v3158 = vpop.f32.mrb[0].mxu0
        %3159 = vmatprep.mubr.f32.mxu0 0.0
        %3160 = vmatmul.mubr.f32.gmra.mrb[0].mxu0 %v2975
        %v3161 = vpop.f32.mrb[0].mxu0
        %v3162 = vadd.f32 0.0, %v3161
        %v3163 = vpop.f32.mrb[0].mxu0
        %3164 = vmatprep.mubr.f32.mxu0 0.0
        %3165 = vmatmul.mubr.f32.gmra.mrb[0].mxu0 %v2978
        %v3166 = vpop.f32.mrb[0].mxu0
        %v3167 = vadd.f32 0.0, %v3166
        %v3168 = vpop.f32.mrb[0].mxu0
        %3169 = vmatprep.mubr.f32.mxu0 0.0
        %3170 = vmatmul.mubr.f32.gmra.mrb[0].mxu0 %v2981
        %v3171 = vpop.f32.mrb[0].mxu0
        %v3172 = vadd.f32 0.0, %v3171
        %v3173 = vpop.f32.mrb[0].mxu0
        %3174 = vmatprep.mubr.f32.mxu0 0.0
        %3175 = vmatmul.mubr.f32.gmra.mrb[0].mxu0 %v2984
        %v3176 = vpop.f32.mrb[0].mxu0
        %v3177 = vadd.f32 0.0, %v3176
        %v3178 = vpop.f32.mrb[0].mxu0
        %3179 = vmatprep.mubr.f32.mxu0 0.0
        %3180 = vmatmul.mubr.f32.gmra.mrb[0].mxu0 %v2987
        %v3181 = vpop.f32.mrb[0].mxu0
        %v3182 = vadd.f32 0.0, %v3181
        %v3183 = vpop.f32.mrb[0].mxu0
        %3184 = vmatprep.mubr.f32.mxu0 0.0
        %3185 = vmatmul.mubr.f32.gmra.mrb[0].mxu0 %v2990
        %v3186 = vpop.f32.mrb[0].mxu0
        %v3187 = vadd.f32 0.0, %v3186
        %v3188 = vpop.f32.mrb[0].mxu0
        %3189 = vmatprep.mubr.f32.mxu0 0.0
        %3190 = vmatmul.mubr.f32.gmra.mrb[0].mxu0 %v2993
        %v3191 = vpop.f32.mrb[0].mxu0
        %v3192 = vadd.f32 0.0, %v3191
        %v3193 = vpop.f32.mrb[0].mxu0
        %3194 = vmatprep.mubr.f32.mxu0 0.0
        %3195 = vmatmul.mubr.f32.gmra.mrb[0].mxu0 %v2996
        %v3196 = vpop.f32.mrb[0].mxu0
        %v3197 = vadd.f32 0.0, %v3196
        %v3198 = vpop.f32.mrb[0].mxu0
        %3199 = vmatprep.mubr.f32.mxu0 0.0
        %3200 = vmatmul.mubr.f32.gmra.mrb[0].mxu0 %v2999
        %v3201 = vpop.f32.mrb[0].mxu0
        %v3202 = vadd.f32 0.0, %v3201
        %v3203 = vpop.f32.mrb[0].mxu0
        %3204 = vmatprep.mubr.f32.mxu0 0.0
        %3205 = vmatmul.mubr.f32.gmra.mrb[0].mxu0 %v3002
        %v3206 = vpop.f32.mrb[0].mxu0
        %v3207 = vadd.f32 0.0, %v3206
        %v3208 = vpop.f32.mrb[0].mxu0
        %3209 = vmatprep.mubr.f32.mxu0 0.0
        %3210 = vmatmul.mubr.f32.gmra.mrb[0].mxu0 %v3005
        %v3211 = vpop.f32.mrb[0].mxu0
        %v3212 = vadd.f32 0.0, %v3211
        %v3213 = vpop.f32.mrb[0].mxu0
        %3214 = vmatprep.mubr.f32.mxu0 0.0
        %3215 = vmatmul.mubr.f32.gmra.mrb[0].mxu0 %v3008
        %v3216 = vpop.f32.mrb[0].mxu0
        %v3217 = vadd.f32 0.0, %v3216
        %v3218 = vpop.f32.mrb[0].mxu0
        %3219 = vmatprep.mubr.f32.mxu0 0.0
        %3220 = vmatmul.mubr.f32.gmra.mrb[0].mxu0 %v3011
        %v3221 = vpop.f32.mrb[0].mxu0
        %v3222 = vadd.f32 0.0, %v3221
        %v3223 = vpop.f32.mrb[0].mxu0
        %3224 = vmatprep.mubr.f32.mxu0 0.0
        %3225 = vmatmul.mubr.f32.gmra.mrb[0].mxu0 %v3014
        %v3226 = vpop.f32.mrb[0].mxu0
        %v3227 = vadd.f32 0.0, %v3226
        %v3228 = vpop.f32.mrb[0].mxu0
        %3229 = vmatprep.mubr.f32.mxu0 0.0
        %3230 = vmatmul.mubr.f32.gmra.mrb[0].mxu0 %v3017
        %v3231 = vpop.f32.mrb[0].mxu0
        %v3232 = vadd.f32 0.0, %v3231
        %v3233 = vpop.f32.mrb[0].mxu0
        %3234 = vmatprep.mubr.f32.mxu0 0.0
        %3235 = vmatmul.mubr.f32.gmra.mrb[0].mxu0 %v3020
        %v3236 = vpop.f32.mrb[0].mxu0
        %v3237 = vadd.f32 0.0, %v3236
        %v3238 = vpop.f32.mrb[0].mxu0
        %3239 = vmatprep.mubr.f32.mxu0 0.0
        %3240 = vmatmul.mubr.f32.gmra.mrb[0].mxu0 %v3023
        %v3241 = vpop.f32.mrb[0].mxu0
        %v3242 = vadd.f32 0.0, %v3241
        %v3243 = vpop.f32.mrb[0].mxu0
        %3244 = vmatprep.mubr.f32.mxu0 0.0
        %3245 = vmatmul.mubr.f32.gmra.mrb[0].mxu0 %v3026
        %v3246 = vpop.f32.mrb[0].mxu0
        %v3247 = vadd.f32 0.0, %v3246
        %v3248 = vpop.f32.mrb[0].mxu0
        %3249 = vmatprep.mubr.f32.mxu0 0.0
        %3250 = vmatmul.mubr.f32.gmra.mrb[0].mxu0 %v3029
        %v3251 = vpop.f32.mrb[0].mxu0
        %v3252 = vadd.f32 0.0, %v3251
        %v3253 = vpop.f32.mrb[0].mxu0
        %3254 = vmatprep.mubr.f32.mxu0 0.0
        %3255 = vmatmul.mubr.f32.gmra.mrb[0].mxu0 %v3032
        %v3256 = vpop.f32.mrb[0].mxu0
        %v3257 = vadd.f32 0.0, %v3256
        %v3258 = vpop.f32.mrb[0].mxu0
        %3259 = vmatprep.mubr.f32.mxu0 0.0
        %3260 = vmatmul.mubr.f32.gmra.mrb[0].mxu0 %v3035
        %v3261 = vpop.f32.mrb[0].mxu0
        %v3262 = vadd.f32 0.0, %v3261
        %v3263 = vpop.f32.mrb[0].mxu0
        %3264 = vdwg.mxu0
        %v3265 = vadd.f32 %v2875, %v3107
        %v3266 = vadd.f32 %v2876, %v3112
        %v3267 = vadd.f32 %v2877, %v3117
        %v3268 = vadd.f32 %v2878, %v3122
        %v3269 = vadd.f32 %v2879, %v3127
        %v3270 = vadd.f32 %v2880, %v3132
        %v3271 = vadd.f32 %v2881, %v3137
        %v3272 = vadd.f32 %v2882, %v3142
        %v3273 = vadd.f32 %v2883, %v3147
        %v3274 = vadd.f32 %v2884, %v3152
        %v3275 = vadd.f32 %v2885, %v3157
        %v3276 = vadd.f32 %v2886, %v3162
        %v3277 = vadd.f32 %v2887, %v3167
        %v3278 = vadd.f32 %v2888, %v3172
        %v3279 = vadd.f32 %v2889, %v3177
        %v3280 = vadd.f32 %v2890, %v3182
        %v3281 = vadd.f32 %v2891, %v3187
        %v3282 = vadd.f32 %v2892, %v3192
        %v3283 = vadd.f32 %v2893, %v3197
        %v3284 = vadd.f32 %v2894, %v3202
        %v3285 = vadd.f32 %v2895, %v3207
        %v3286 = vadd.f32 %v2896, %v3212
        %v3287 = vadd.f32 %v2897, %v3217
        %v3288 = vadd.f32 %v2898, %v3222
        %v3289 = vadd.f32 %v2899, %v3227
        %v3290 = vadd.f32 %v2900, %v3232
        %v3291 = vadd.f32 %v2901, %v3237
        %v3292 = vadd.f32 %v2902, %v3242
        %v3293 = vadd.f32 %v2903, %v3247
        %v3294 = vadd.f32 %v2904, %v3252
        %v3295 = vadd.f32 %v2905, %v3257
        %v3296 = vadd.f32 %v2906, %v3262
        %v3297 = vld [vmem:[%s2516 + $0x2] sm:$0xff]
        %v3298 = vld [vmem:[%s2516 + $0xa] sm:$0xff]
        %v3299 = vld [vmem:[%s2516 + $0x1a] sm:$0xff]
        %v3300 = vld [vmem:[%s2516 + $0x22] sm:$0xff]
        %v3301 = vld [vmem:[%s2516 + $0x32] sm:$0xff]
        %v3302 = vld [vmem:[%s2516 + $0x3a] sm:$0xff]
        %v3303 = vld [vmem:[%s2516 + $0x4a] sm:$0xff]
        %v3304 = vld [vmem:[%s2516 + $0x52] sm:$0xff]
        %v3305 = vld [vmem:[%s2516 + $0x62] sm:$0xff]
        %v3306 = vld [vmem:[%s2516 + $0x6a] sm:$0xff]
        %v3307 = vld [vmem:[%s2516 + $0x7a] sm:$0xff]
        %v3308 = vld [vmem:[%s2516 + $0x82] sm:$0xff]
        %v3309 = vld [vmem:[%s2516 + $0x92] sm:$0xff]
        %v3310 = vld [vmem:[%s2516 + $0x9a] sm:$0xff]
        %v3311 = vld [vmem:[%s2516 + $0xaa] sm:$0xff]
        %v3312 = vld [vmem:[%s2516 + $0xb2] sm:$0xff]
        %v3313 = vld [vmem:[%s2516 + $0xc2] sm:$0xff]
        %v3314 = vld [vmem:[%s2516 + $0xca] sm:$0xff]
        %v3315 = vld [vmem:[%s2516 + $0xda] sm:$0xff]
        %v3316 = vld [vmem:[%s2516 + $0xe2] sm:$0xff]
        %v3317 = vld [vmem:[%s2516 + $0xf2] sm:$0xff]
        %v3318 = vld [vmem:[%s2516 + $0xfa] sm:$0xff]
        %v3319 = vld [vmem:[%s2516 + $0x10a] sm:$0xff]
        %v3320 = vld [vmem:[%s2516 + $0x112] sm:$0xff]
        %v3321 = vld [vmem:[%s2516 + $0x122] sm:$0xff]
        %v3322 = vld [vmem:[%s2516 + $0x12a] sm:$0xff]
        %v3323 = vld [vmem:[%s2516 + $0x13a] sm:$0xff]
        %v3324 = vld [vmem:[%s2516 + $0x142] sm:$0xff]
        %v3325 = vld [vmem:[%s2516 + $0x152] sm:$0xff]
        %v3326 = vld [vmem:[%s2516 + $0x15a] sm:$0xff]
        %v3327 = vld [vmem:[%s2516 + $0x16a] sm:$0xff]
        %v3328 = vld [vmem:[%s2516 + $0x172] sm:$0xff]
        %s3329 = scalar_lea.vmem %s1, 32
        %v3330 = vld [vmem:[%s3329] sm:$0xf]
        %v3332 = vsel %vm301, %v3297, 0
        %v3335 = vsel %vm301, %v3298, 0
        %v3338 = vsel %vm301, %v3299, 0
        %v3341 = vsel %vm301, %v3300, 0
        %v3344 = vsel %vm301, %v3301, 0
        %v3347 = vsel %vm301, %v3302, 0
        %v3350 = vsel %vm301, %v3303, 0
        %v3353 = vsel %vm301, %v3304, 0
        %v3356 = vsel %vm301, %v3305, 0
        %v3359 = vsel %vm301, %v3306, 0
        %v3362 = vsel %vm301, %v3307, 0
        %v3365 = vsel %vm301, %v3308, 0
        %v3368 = vsel %vm301, %v3309, 0
        %v3371 = vsel %vm301, %v3310, 0
        %v3374 = vsel %vm301, %v3311, 0
        %v3377 = vsel %vm301, %v3312, 0
        %v3380 = vsel %vm301, %v3313, 0
        %v3383 = vsel %vm301, %v3314, 0
        %v3386 = vsel %vm301, %v3315, 0
        %v3389 = vsel %vm301, %v3316, 0
        %v3392 = vsel %vm301, %v3317, 0
        %v3395 = vsel %vm301, %v3318, 0
        %v3398 = vsel %vm301, %v3319, 0
        %v3401 = vsel %vm301, %v3320, 0
        %v3404 = vsel %vm301, %v3321, 0
        %v3407 = vsel %vm301, %v3322, 0
        %v3410 = vsel %vm301, %v3323, 0
        %v3413 = vsel %vm301, %v3324, 0
        %v3416 = vsel %vm301, %v3325, 0
        %v3419 = vsel %vm301, %v3326, 0
        %v3422 = vsel %vm301, %v3327, 0
        %v3425 = vsel %vm301, %v3328, 0
        %v3428 = vsel %vm398, %v3330, 0
        %3430 = vmatprep.subr.mxu0 0.0
        %3431 = vmatpush1.msra.mxu0 %v3428
        %3432 = vmatprep.subr.mxu0 0.0
        %3433 = vmatpush1.msra.mxu0 0.0
        %3434 = vmatprep.subr.mxu0 0.0
        %3435 = vmatpush1.msra.mxu0 0.0
        %3436 = vmatprep.subr.mxu0 0.0
        %3437 = vmatpush1.msra.mxu0 0.0
        %3438 = vmatprep.subr.mxu0 0.0
        %3439 = vmatpush1.msra.mxu0 0.0
        %3440 = vmatprep.subr.mxu0 0.0
        %3441 = vmatpush1.msra.mxu0 0.0
        %3442 = vmatprep.subr.mxu0 0.0
        %3443 = vmatpush1.msra.mxu0 0.0
        %3444 = vmatprep.subr.mxu0 0.0
        %3445 = vmatpush1.msra.mxu0 0.0
        %3446 = vmatprep.subr.mxu0 0.0
        %3447 = vmatpush1.msra.mxu0 0.0
        %3448 = vmatprep.subr.mxu0 0.0
        %3449 = vmatpush1.msra.mxu0 0.0
        %3450 = vmatprep.subr.mxu0 0.0
        %3451 = vmatpush1.msra.mxu0 0.0
        %3452 = vmatprep.subr.mxu0 0.0
        %3453 = vmatpush1.msra.mxu0 0.0
        %3454 = vmatprep.subr.mxu0 0.0
        %3455 = vmatpush1.msra.mxu0 0.0
        %3456 = vmatprep.subr.mxu0 0.0
        %3457 = vmatpush1.msra.mxu0 0.0
        %3458 = vmatprep.subr.mxu0 0.0
        %3459 = vmatpush1.msra.mxu0 0.0
        %3460 = vmatprep.subr.mxu0 0.0
        %3461 = vmatpush1.msra.mxu0 0.0
        %3462 = vmatprep.subr.mxu0 0.0
        %3463 = vmatpush1.msra.mxu0 0.0
        %3464 = vmatprep.subr.mxu0 0.0
        %3465 = vmatpush1.msra.mxu0 0.0
        %3466 = vmatprep.subr.mxu0 0.0
        %3467 = vmatpush1.msra.mxu0 0.0
        %3468 = vmatprep.subr.mxu0 0.0
        %3469 = vmatpush1.msra.mxu0 0.0
        %3470 = vmatprep.subr.mxu0 0.0
        %3471 = vmatpush1.msra.mxu0 0.0
        %3472 = vmatprep.subr.mxu0 0.0
        %3473 = vmatpush1.msra.mxu0 0.0
        %3474 = vmatprep.subr.mxu0 0.0
        %3475 = vmatpush1.msra.mxu0 0.0
        %3476 = vmatprep.subr.mxu0 0.0
        %3477 = vmatpush1.msra.mxu0 0.0
        %3478 = vmatprep.subr.mxu0 0.0
        %3479 = vmatpush1.msra.mxu0 0.0
        %3480 = vmatprep.subr.mxu0 0.0
        %3481 = vmatpush1.msra.mxu0 0.0
        %3482 = vmatprep.subr.mxu0 0.0
        %3483 = vmatpush1.msra.mxu0 0.0
        %3484 = vmatprep.subr.mxu0 0.0
        %3485 = vmatpush1.msra.mxu0 0.0
        %3486 = vmatprep.subr.mxu0 0.0
        %3487 = vmatpush1.msra.mxu0 0.0
        %3488 = vmatprep.subr.mxu0 0.0
        %3489 = vmatpush1.msra.mxu0 0.0
        %3490 = vmatprep.subr.mxu0 0.0
        %3491 = vmatpush1.msra.mxu0 0.0
        %3492 = vmatprep.subr.mxu0 0.0
        %3493 = vmatpush1.msra.mxu0 0.0
        %3494 = vmatprep.mubr.f32.mxu0 0.0
        %3495 = vmatmul.mubr.f32.gmra.mrb[0].mxu0 %v3332
        %v3496 = vpop.f32.mrb[0].mxu0
        %v3497 = vadd.f32 0.0, %v3496
        %v3498 = vpop.f32.mrb[0].mxu0
        %3499 = vmatprep.mubr.f32.mxu0 0.0
        %3500 = vmatmul.mubr.f32.gmra.mrb[0].mxu0 %v3335
        %v3501 = vpop.f32.mrb[0].mxu0
        %v3502 = vadd.f32 0.0, %v3501
        %v3503 = vpop.f32.mrb[0].mxu0
        %3504 = vmatprep.mubr.f32.mxu0 0.0
        %3505 = vmatmul.mubr.f32.gmra.mrb[0].mxu0 %v3338
        %v3506 = vpop.f32.mrb[0].mxu0
        %v3507 = vadd.f32 0.0, %v3506
        %v3508 = vpop.f32.mrb[0].mxu0
        %3509 = vmatprep.mubr.f32.mxu0 0.0
        %3510 = vmatmul.mubr.f32.gmra.mrb[0].mxu0 %v3341
        %v3511 = vpop.f32.mrb[0].mxu0
        %v3512 = vadd.f32 0.0, %v3511
        %v3513 = vpop.f32.mrb[0].mxu0
        %3514 = vmatprep.mubr.f32.mxu0 0.0
        %3515 = vmatmul.mubr.f32.gmra.mrb[0].mxu0 %v3344
        %v3516 = vpop.f32.mrb[0].mxu0
        %v3517 = vadd.f32 0.0, %v3516
        %v3518 = vpop.f32.mrb[0].mxu0
        %3519 = vmatprep.mubr.f32.mxu0 0.0
        %3520 = vmatmul.mubr.f32.gmra.mrb[0].mxu0 %v3347
        %v3521 = vpop.f32.mrb[0].mxu0
        %v3522 = vadd.f32 0.0, %v3521
        %v3523 = vpop.f32.mrb[0].mxu0
        %3524 = vmatprep.mubr.f32.mxu0 0.0
        %3525 = vmatmul.mubr.f32.gmra.mrb[0].mxu0 %v3350
        %v3526 = vpop.f32.mrb[0].mxu0
        %v3527 = vadd.f32 0.0, %v3526
        %v3528 = vpop.f32.mrb[0].mxu0
        %3529 = vmatprep.mubr.f32.mxu0 0.0
        %3530 = vmatmul.mubr.f32.gmra.mrb[0].mxu0 %v3353
        %v3531 = vpop.f32.mrb[0].mxu0
        %v3532 = vadd.f32 0.0, %v3531
        %v3533 = vpop.f32.mrb[0].mxu0
        %3534 = vmatprep.mubr.f32.mxu0 0.0
        %3535 = vmatmul.mubr.f32.gmra.mrb[0].mxu0 %v3356
        %v3536 = vpop.f32.mrb[0].mxu0
        %v3537 = vadd.f32 0.0, %v3536
        %v3538 = vpop.f32.mrb[0].mxu0
        %3539 = vmatprep.mubr.f32.mxu0 0.0
        %3540 = vmatmul.mubr.f32.gmra.mrb[0].mxu0 %v3359
        %v3541 = vpop.f32.mrb[0].mxu0
        %v3542 = vadd.f32 0.0, %v3541
        %v3543 = vpop.f32.mrb[0].mxu0
        %3544 = vmatprep.mubr.f32.mxu0 0.0
        %3545 = vmatmul.mubr.f32.gmra.mrb[0].mxu0 %v3362
        %v3546 = vpop.f32.mrb[0].mxu0
        %v3547 = vadd.f32 0.0, %v3546
        %v3548 = vpop.f32.mrb[0].mxu0
        %3549 = vmatprep.mubr.f32.mxu0 0.0
        %3550 = vmatmul.mubr.f32.gmra.mrb[0].mxu0 %v3365
        %v3551 = vpop.f32.mrb[0].mxu0
        %v3552 = vadd.f32 0.0, %v3551
        %v3553 = vpop.f32.mrb[0].mxu0
        %3554 = vmatprep.mubr.f32.mxu0 0.0
        %3555 = vmatmul.mubr.f32.gmra.mrb[0].mxu0 %v3368
        %v3556 = vpop.f32.mrb[0].mxu0
        %v3557 = vadd.f32 0.0, %v3556
        %v3558 = vpop.f32.mrb[0].mxu0
        %3559 = vmatprep.mubr.f32.mxu0 0.0
        %3560 = vmatmul.mubr.f32.gmra.mrb[0].mxu0 %v3371
        %v3561 = vpop.f32.mrb[0].mxu0
        %v3562 = vadd.f32 0.0, %v3561
        %v3563 = vpop.f32.mrb[0].mxu0
        %3564 = vmatprep.mubr.f32.mxu0 0.0
        %3565 = vmatmul.mubr.f32.gmra.mrb[0].mxu0 %v3374
        %v3566 = vpop.f32.mrb[0].mxu0
        %v3567 = vadd.f32 0.0, %v3566
        %v3568 = vpop.f32.mrb[0].mxu0
        %3569 = vmatprep.mubr.f32.mxu0 0.0
        %3570 = vmatmul.mubr.f32.gmra.mrb[0].mxu0 %v3377
        %v3571 = vpop.f32.mrb[0].mxu0
        %v3572 = vadd.f32 0.0, %v3571
        %v3573 = vpop.f32.mrb[0].mxu0
        %3574 = vmatprep.mubr.f32.mxu0 0.0
        %3575 = vmatmul.mubr.f32.gmra.mrb[0].mxu0 %v3380
        %v3576 = vpop.f32.mrb[0].mxu0
        %v3577 = vadd.f32 0.0, %v3576
        %v3578 = vpop.f32.mrb[0].mxu0
        %3579 = vmatprep.mubr.f32.mxu0 0.0
        %3580 = vmatmul.mubr.f32.gmra.mrb[0].mxu0 %v3383
        %v3581 = vpop.f32.mrb[0].mxu0
        %v3582 = vadd.f32 0.0, %v3581
        %v3583 = vpop.f32.mrb[0].mxu0
        %3584 = vmatprep.mubr.f32.mxu0 0.0
        %3585 = vmatmul.mubr.f32.gmra.mrb[0].mxu0 %v3386
        %v3586 = vpop.f32.mrb[0].mxu0
        %v3587 = vadd.f32 0.0, %v3586
        %v3588 = vpop.f32.mrb[0].mxu0
        %3589 = vmatprep.mubr.f32.mxu0 0.0
        %3590 = vmatmul.mubr.f32.gmra.mrb[0].mxu0 %v3389
        %v3591 = vpop.f32.mrb[0].mxu0
        %v3592 = vadd.f32 0.0, %v3591
        %v3593 = vpop.f32.mrb[0].mxu0
        %3594 = vmatprep.mubr.f32.mxu0 0.0
        %3595 = vmatmul.mubr.f32.gmra.mrb[0].mxu0 %v3392
        %v3596 = vpop.f32.mrb[0].mxu0
        %v3597 = vadd.f32 0.0, %v3596
        %v3598 = vpop.f32.mrb[0].mxu0
        %3599 = vmatprep.mubr.f32.mxu0 0.0
        %3600 = vmatmul.mubr.f32.gmra.mrb[0].mxu0 %v3395
        %v3601 = vpop.f32.mrb[0].mxu0
        %v3602 = vadd.f32 0.0, %v3601
        %v3603 = vpop.f32.mrb[0].mxu0
        %3604 = vmatprep.mubr.f32.mxu0 0.0
        %3605 = vmatmul.mubr.f32.gmra.mrb[0].mxu0 %v3398
        %v3606 = vpop.f32.mrb[0].mxu0
        %v3607 = vadd.f32 0.0, %v3606
        %v3608 = vpop.f32.mrb[0].mxu0
        %3609 = vmatprep.mubr.f32.mxu0 0.0
        %3610 = vmatmul.mubr.f32.gmra.mrb[0].mxu0 %v3401
        %v3611 = vpop.f32.mrb[0].mxu0
        %v3612 = vadd.f32 0.0, %v3611
        %v3613 = vpop.f32.mrb[0].mxu0
        %3614 = vmatprep.mubr.f32.mxu0 0.0
        %3615 = vmatmul.mubr.f32.gmra.mrb[0].mxu0 %v3404
        %v3616 = vpop.f32.mrb[0].mxu0
        %v3617 = vadd.f32 0.0, %v3616
        %v3618 = vpop.f32.mrb[0].mxu0
        %3619 = vmatprep.mubr.f32.mxu0 0.0
        %3620 = vmatmul.mubr.f32.gmra.mrb[0].mxu0 %v3407
        %v3621 = vpop.f32.mrb[0].mxu0
        %v3622 = vadd.f32 0.0, %v3621
        %v3623 = vpop.f32.mrb[0].mxu0
        %3624 = vmatprep.mubr.f32.mxu0 0.0
        %3625 = vmatmul.mubr.f32.gmra.mrb[0].mxu0 %v3410
        %v3626 = vpop.f32.mrb[0].mxu0
        %v3627 = vadd.f32 0.0, %v3626
        %v3628 = vpop.f32.mrb[0].mxu0
        %3629 = vmatprep.mubr.f32.mxu0 0.0
        %3630 = vmatmul.mubr.f32.gmra.mrb[0].mxu0 %v3413
        %v3631 = vpop.f32.mrb[0].mxu0
        %v3632 = vadd.f32 0.0, %v3631
        %v3633 = vpop.f32.mrb[0].mxu0
        %3634 = vmatprep.mubr.f32.mxu0 0.0
        %3635 = vmatmul.mubr.f32.gmra.mrb[0].mxu0 %v3416
        %v3636 = vpop.f32.mrb[0].mxu0
        %v3637 = vadd.f32 0.0, %v3636
        %v3638 = vpop.f32.mrb[0].mxu0
        %3639 = vmatprep.mubr.f32.mxu0 0.0
        %3640 = vmatmul.mubr.f32.gmra.mrb[0].mxu0 %v3419
        %v3641 = vpop.f32.mrb[0].mxu0
        %v3642 = vadd.f32 0.0, %v3641
        %v3643 = vpop.f32.mrb[0].mxu0
        %3644 = vmatprep.mubr.f32.mxu0 0.0
        %3645 = vmatmul.mubr.f32.gmra.mrb[0].mxu0 %v3422
        %v3646 = vpop.f32.mrb[0].mxu0
        %v3647 = vadd.f32 0.0, %v3646
        %v3648 = vpop.f32.mrb[0].mxu0
        %3649 = vmatprep.mubr.f32.mxu0 0.0
        %3650 = vmatmul.mubr.f32.gmra.mrb[0].mxu0 %v3425
        %v3651 = vpop.f32.mrb[0].mxu0
        %v3652 = vadd.f32 0.0, %v3651
        %v3653 = vpop.f32.mrb[0].mxu0
        %3654 = vdwg.mxu0
        %v3655 = vadd.f32 %v3265, %v3497
        %v3656 = vadd.f32 %v3266, %v3502
        %v3657 = vadd.f32 %v3267, %v3507
        %v3658 = vadd.f32 %v3268, %v3512
        %v3659 = vadd.f32 %v3269, %v3517
        %v3660 = vadd.f32 %v3270, %v3522
        %v3661 = vadd.f32 %v3271, %v3527
        %v3662 = vadd.f32 %v3272, %v3532
        %v3663 = vadd.f32 %v3273, %v3537
        %v3664 = vadd.f32 %v3274, %v3542
        %v3665 = vadd.f32 %v3275, %v3547
        %v3666 = vadd.f32 %v3276, %v3552
        %v3667 = vadd.f32 %v3277, %v3557
        %v3668 = vadd.f32 %v3278, %v3562
        %v3669 = vadd.f32 %v3279, %v3567
        %v3670 = vadd.f32 %v3280, %v3572
        %v3671 = vadd.f32 %v3281, %v3577
        %v3672 = vadd.f32 %v3282, %v3582
        %v3673 = vadd.f32 %v3283, %v3587
        %v3674 = vadd.f32 %v3284, %v3592
        %v3675 = vadd.f32 %v3285, %v3597
        %v3676 = vadd.f32 %v3286, %v3602
        %v3677 = vadd.f32 %v3287, %v3607
        %v3678 = vadd.f32 %v3288, %v3612
        %v3679 = vadd.f32 %v3289, %v3617
        %v3680 = vadd.f32 %v3290, %v3622
        %v3681 = vadd.f32 %v3291, %v3627
        %v3682 = vadd.f32 %v3292, %v3632
        %v3683 = vadd.f32 %v3293, %v3637
        %v3684 = vadd.f32 %v3294, %v3642
        %v3685 = vadd.f32 %v3295, %v3647
        %v3686 = vadd.f32 %v3296, %v3652
        %3687 = vst [vmem:[%s212] sm:$0xff] %v3655
        %3688 = vst [vmem:[%s212 + $0x8] sm:$0xff] %v3656
        %3689 = vst [vmem:[%s212 + $0x10] sm:$0xff] %v3657
        %3690 = vst [vmem:[%s212 + $0x18] sm:$0xff] %v3658
        %3691 = vst [vmem:[%s212 + $0x20] sm:$0xff] %v3659
        %3692 = vst [vmem:[%s212 + $0x28] sm:$0xff] %v3660
        %3693 = vst [vmem:[%s212 + $0x30] sm:$0xff] %v3661
        %3694 = vst [vmem:[%s212 + $0x38] sm:$0xff] %v3662
        %3695 = vst [vmem:[%s212 + $0x40] sm:$0xff] %v3663
        %3696 = vst [vmem:[%s212 + $0x48] sm:$0xff] %v3664
        %3697 = vst [vmem:[%s212 + $0x50] sm:$0xff] %v3665
        %3698 = vst [vmem:[%s212 + $0x58] sm:$0xff] %v3666
        %3699 = vst [vmem:[%s212 + $0x60] sm:$0xff] %v3667
        %3700 = vst [vmem:[%s212 + $0x68] sm:$0xff] %v3668
        %3701 = vst [vmem:[%s212 + $0x70] sm:$0xff] %v3669
        %3702 = vst [vmem:[%s212 + $0x78] sm:$0xff] %v3670
        %3703 = vst [vmem:[%s212 + $0x80] sm:$0xff] %v3671
        %3704 = vst [vmem:[%s212 + $0x88] sm:$0xff] %v3672
        %3705 = vst [vmem:[%s212 + $0x90] sm:$0xff] %v3673
        %3706 = vst [vmem:[%s212 + $0x98] sm:$0xff] %v3674
        %3707 = vst [vmem:[%s212 + $0xa0] sm:$0xff] %v3675
        %3708 = vst [vmem:[%s212 + $0xa8] sm:$0xff] %v3676
        %3709 = vst [vmem:[%s212 + $0xb0] sm:$0xff] %v3677
        %3710 = vst [vmem:[%s212 + $0xb8] sm:$0xff] %v3678
        %3711 = vst [vmem:[%s212 + $0xc0] sm:$0xff] %v3679
        %3712 = vst [vmem:[%s212 + $0xc8] sm:$0xff] %v3680
        %3713 = vst [vmem:[%s212 + $0xd0] sm:$0xff] %v3681
        %3714 = vst [vmem:[%s212 + $0xd8] sm:$0xff] %v3682
        %3715 = vst [vmem:[%s212 + $0xe0] sm:$0xff] %v3683
        %3716 = vst [vmem:[%s212 + $0xe8] sm:$0xff] %v3684
        %3717 = vst [vmem:[%s212 + $0xf0] sm:$0xff] %v3685
        %3718 = vst [vmem:[%s212 + $0xf8] sm:$0xff] %v3686
        %v3719 = vadd.f32 %v3655, %v3656
        %v3720 = vadd.f32 %v3719, %v3657
        %v3721 = vadd.f32 %v3720, %v3658
        %v3722 = vadd.f32 %v3721, %v3659
        %v3723 = vadd.f32 %v3722, %v3660
        %v3724 = vadd.f32 %v3723, %v3661
        %v3725 = vadd.f32 %v3724, %v3662
        %v3726 = vadd.f32 %v3725, %v3663
        %v3727 = vadd.f32 %v3726, %v3664
        %v3728 = vadd.f32 %v3727, %v3665
        %v3729 = vadd.f32 %v3728, %v3666
        %v3730 = vadd.f32 %v3729, %v3667
        %v3731 = vadd.f32 %v3730, %v3668
        %v3732 = vadd.f32 %v3731, %v3669
        %v3733 = vadd.f32 %v3732, %v3670
        %v3734 = vadd.f32 %v3733, %v3671
        %v3735 = vadd.f32 %v3734, %v3672
        %v3736 = vadd.f32 %v3735, %v3673
        %v3737 = vadd.f32 %v3736, %v3674
        %v3738 = vadd.f32 %v3737, %v3675
        %v3739 = vadd.f32 %v3738, %v3676
        %v3740 = vadd.f32 %v3739, %v3677
        %v3741 = vadd.f32 %v3740, %v3678
        %v3742 = vadd.f32 %v3741, %v3679
        %v3743 = vadd.f32 %v3742, %v3680
        %v3744 = vadd.f32 %v3743, %v3681
        %v3745 = vadd.f32 %v3744, %v3682
        %v3746 = vadd.f32 %v3745, %v3683
        %v3747 = vadd.f32 %v3746, %v3684
        %v3748 = vadd.f32 %v3747, %v3685
        %v3749 = vadd.f32 %v3748, %v3686
        %v3750 = vrot.slane %v3749, 4
        %v3751 = vadd.f32 %v3749, %v3750
        %v3752 = vrot.slane %v3751, 2
        %v3753 = vadd.f32 %v3751, %v3752
        %v3754 = vrot.slane %v3753, 1
        %v3755 = vadd.f32 %v3753, %v3754
        %v3756 = vmul.f32 %v3755, 0.00390625
        %v3757 = vsub.f32 %v3655, %v3756
        %v3758 = vsub.f32 %v3656, %v3756
        %v3759 = vsub.f32 %v3657, %v3756
        %v3760 = vsub.f32 %v3658, %v3756
        %v3761 = vsub.f32 %v3659, %v3756
        %v3762 = vsub.f32 %v3660, %v3756
        %v3763 = vsub.f32 %v3661, %v3756
        %v3764 = vsub.f32 %v3662, %v3756
        %v3765 = vsub.f32 %v3663, %v3756
        %v3766 = vsub.f32 %v3664, %v3756
        %v3767 = vsub.f32 %v3665, %v3756
        %v3768 = vsub.f32 %v3666, %v3756
        %v3769 = vsub.f32 %v3667, %v3756
        %v3770 = vsub.f32 %v3668, %v3756
        %v3771 = vsub.f32 %v3669, %v3756
        %v3772 = vsub.f32 %v3670, %v3756
        %v3773 = vsub.f32 %v3671, %v3756
        %v3774 = vsub.f32 %v3672, %v3756
        %v3775 = vsub.f32 %v3673, %v3756
        %v3776 = vsub.f32 %v3674, %v3756
        %v3777 = vsub.f32 %v3675, %v3756
        %v3778 = vsub.f32 %v3676, %v3756
        %v3779 = vsub.f32 %v3677, %v3756
        %v3780 = vsub.f32 %v3678, %v3756
        %v3781 = vsub.f32 %v3679, %v3756
        %v3782 = vsub.f32 %v3680, %v3756
        %v3783 = vsub.f32 %v3681, %v3756
        %v3784 = vsub.f32 %v3682, %v3756
        %v3785 = vsub.f32 %v3683, %v3756
        %v3786 = vsub.f32 %v3684, %v3756
        %v3787 = vsub.f32 %v3685, %v3756
        %v3788 = vsub.f32 %v3686, %v3756
        %3789 = vst [vmem:[%s218] sm:$0x1] %v3755
        %v3790 = vmul.f32 %v3757, %v3757
        %v3791 = vmul.f32 %v3758, %v3758
        %v3792 = vmul.f32 %v3759, %v3759
        %v3793 = vmul.f32 %v3760, %v3760
        %v3794 = vmul.f32 %v3761, %v3761
        %v3795 = vmul.f32 %v3762, %v3762
        %v3796 = vmul.f32 %v3763, %v3763
        %v3797 = vmul.f32 %v3764, %v3764
        %v3798 = vmul.f32 %v3765, %v3765
        %v3799 = vmul.f32 %v3766, %v3766
        %v3800 = vmul.f32 %v3767, %v3767
        %v3801 = vmul.f32 %v3768, %v3768
        %v3802 = vmul.f32 %v3769, %v3769
        %v3803 = vmul.f32 %v3770, %v3770
        %v3804 = vmul.f32 %v3771, %v3771
        %v3805 = vmul.f32 %v3772, %v3772
        %v3806 = vmul.f32 %v3773, %v3773
        %v3807 = vmul.f32 %v3774, %v3774
        %v3808 = vmul.f32 %v3775, %v3775
        %v3809 = vmul.f32 %v3776, %v3776
        %v3810 = vmul.f32 %v3777, %v3777
        %v3811 = vmul.f32 %v3778, %v3778
        %v3812 = vmul.f32 %v3779, %v3779
        %v3813 = vmul.f32 %v3780, %v3780
        %v3814 = vmul.f32 %v3781, %v3781
        %v3815 = vmul.f32 %v3782, %v3782
        %v3816 = vmul.f32 %v3783, %v3783
        %v3817 = vmul.f32 %v3784, %v3784
        %v3818 = vmul.f32 %v3785, %v3785
        %v3819 = vmul.f32 %v3786, %v3786
        %v3820 = vmul.f32 %v3787, %v3787
        %v3821 = vmul.f32 %v3788, %v3788
        %v3822 = vadd.f32 %v3790, %v3791
        %v3823 = vadd.f32 %v3822, %v3792
        %v3824 = vadd.f32 %v3823, %v3793
        %v3825 = vadd.f32 %v3824, %v3794
        %v3826 = vadd.f32 %v3825, %v3795
        %v3827 = vadd.f32 %v3826, %v3796
        %v3828 = vadd.f32 %v3827, %v3797
        %v3829 = vadd.f32 %v3828, %v3798
        %v3830 = vadd.f32 %v3829, %v3799
        %v3831 = vadd.f32 %v3830, %v3800
        %v3832 = vadd.f32 %v3831, %v3801
        %v3833 = vadd.f32 %v3832, %v3802
        %v3834 = vadd.f32 %v3833, %v3803
        %v3835 = vadd.f32 %v3834, %v3804
        %v3836 = vadd.f32 %v3835, %v3805
        %v3837 = vadd.f32 %v3836, %v3806
        %v3838 = vadd.f32 %v3837, %v3807
        %v3839 = vadd.f32 %v3838, %v3808
        %v3840 = vadd.f32 %v3839, %v3809
        %v3841 = vadd.f32 %v3840, %v3810
        %v3842 = vadd.f32 %v3841, %v3811
        %v3843 = vadd.f32 %v3842, %v3812
        %v3844 = vadd.f32 %v3843, %v3813
        %v3845 = vadd.f32 %v3844, %v3814
        %v3846 = vadd.f32 %v3845, %v3815
        %v3847 = vadd.f32 %v3846, %v3816
        %v3848 = vadd.f32 %v3847, %v3817
        %v3849 = vadd.f32 %v3848, %v3818
        %v3850 = vadd.f32 %v3849, %v3819
        %v3851 = vadd.f32 %v3850, %v3820
        %v3852 = vadd.f32 %v3851, %v3821
        %v3853 = vrot.slane %v3852, 4
        %v3854 = vadd.f32 %v3852, %v3853
        %v3855 = vrot.slane %v3854, 2
        %v3856 = vadd.f32 %v3854, %v3855
        %v3857 = vrot.slane %v3856, 1
        %v3858 = vadd.f32 %v3856, %v3857
        %3859 = vst [vmem:[%s224] sm:$0x1] %v3858
        %s3860 = sand.u32 %s91, 1
        %s3861 = scalar_lea.sflag [#allocation3], %s3860
        %s3862 = sand.u32 %s91, 1
        %s3863 = smul.addr %s3862, 256
        %s3864 = scalar_lea.vmem [#allocation2], %s3863
        %s3865 = sand.u32 %s22, 1
        %s3866 = scalar_lea.sflag [#allocation5], %s3865
        %s3867 = sand.u32 %s119, 1
        %s3868 = scalar_lea.vmem [#allocation4], %s3867
        %s3869 = sand.u32 %s22, 1
        %s3870 = scalar_lea.sflag [#allocation5], %s3869
        %s3871 = sand.u32 %s147, 1
        %s3872 = scalar_lea.vmem [#allocation6], %s3871
        // Predicated region
        $region29: #{tpu_custom_call.1} parent=27 // pred_check
          %p3873 = pneg %p101
        $region30: #{tpu_custom_call.1} parent=27 // pred_check_branch
          %3875 = sbr.rel (%p3873) target = $region32
        $region31: #{tpu_custom_call.1} parent=27 // pred_region
          %s3876 = smul.u32 32, %s27
          %s3878 = ssub.s32 4096, 4096
          %3879 = vsyncadd %s3861, %s3878
          %s3880 = smul.addr %s26, 32
          %s3881 = sadd.s32 %s3876, %s3880
          %s3882 = smul.addr %s3881, 128
          %s3883 = scalar_lea.hbm %s2, %s3882
          %s3884 = sshll.u32 %s3864, 4
          %s3885 = int_to_ptr.vmem [resolvable:$true] %s3884
          %3890 = dma.vmem_to_hbm [thread:$0]  %s3885, 4096, %s3883, %s3861, 128, 128, 8
        $region32: #{tpu_custom_call.1} parent=27 // pred_fallthru
          _
        // Predicated region
        $region33: #{tpu_custom_call.1} parent=27 // pred_check
          %p3891 = pneg %p129
        $region34: #{tpu_custom_call.1} parent=27 // pred_check_branch
          %3893 = sbr.rel (%p3891) target = $region36
        $region35: #{tpu_custom_call.1} parent=27 // pred_region
          %s3895 = ssub.s32 16, 16
          %3896 = vsyncadd %s3866, %s3895
          %s3897 = sadd.s32 %s27, %s26
          %s3898 = smul.addr %s3897, 16
          %s3899 = scalar_lea.hbm %s3, %s3898
          %s3901 = sshll.u32 %s3868, 4
          %s3902 = int_to_ptr.vmem [resolvable:$true] %s3901
          %3904 = dma.vmem_to_hbm [thread:$0]  %s3902, 16, %s3899, %s3866
        $region36: #{tpu_custom_call.1} parent=27 // pred_fallthru
          _
        // Predicated region
        $region37: #{tpu_custom_call.1} parent=27 // pred_check
          %p3905 = pneg %p157
        $region38: #{tpu_custom_call.1} parent=27 // pred_check_branch
          %3907 = sbr.rel (%p3905) target = $region40
        $region39: #{tpu_custom_call.1} parent=27 // pred_region
          %s3909 = ssub.s32 16, 16
          %3910 = vsyncadd %s3870, %s3909
          %s3911 = sadd.s32 %s27, %s26
          %s3912 = smul.addr %s3911, 16
          %s3913 = scalar_lea.hbm %s4, %s3912
          %s3915 = sshll.u32 %s3872, 4
          %s3916 = int_to_ptr.vmem [resolvable:$true] %s3915
          %3918 = dma.vmem_to_hbm [thread:$0]  %s3916, 16, %s3913, %s3870
        $region40: #{tpu_custom_call.1} parent=27 // pred_fallthru
          _
      $region28: #{tpu_custom_call.1} parent=5 // pred_fallthru
        _
      %p3919 = scmp.le.s32.totalorder 2, %s17
      // Predicated region
      $region41: #{tpu_custom_call.1} parent=5 // pred_check
        %p3920 = pneg %p3919
      $region42: #{tpu_custom_call.1} parent=5 // pred_check_branch
        %3922 = sbr.rel (%p3920) target = $region44
      $region43: #{tpu_custom_call.1} parent=5 // pred_region
        %s3923 = ssub.s32 %s17, 2
        // Predicated region
        $region45: #{tpu_custom_call.1} parent=43 // pred_check
          %p3924 = pneg %p107
        $region46: #{tpu_custom_call.1} parent=43 // pred_check_branch
          %3926 = sbr.rel (%p3924) target = $region48
        $region47: #{tpu_custom_call.1} parent=43 // pred_region
          %s3927 = sand.u32 %s92, 1
          %s3928 = scalar_lea.sflag [#allocation3], %s3927
          %s3929 = sand.u32 %s92, 1
          %s3930 = smul.addr %s3929, 256
          %s3931 = scalar_lea.vmem [#allocation2], %s3930
          %3932 = dma.done %s3928, 4096
        $region48: #{tpu_custom_call.1} parent=43 // pred_fallthru
          _
        // Predicated region
        $region49: #{tpu_custom_call.1} parent=43 // pred_check
          %p3933 = pneg %p135
        $region50: #{tpu_custom_call.1} parent=43 // pred_check_branch
          %3935 = sbr.rel (%p3933) target = $region52
        $region51: #{tpu_custom_call.1} parent=43 // pred_region
          %s3936 = sand.u32 %s23, 1
          %s3937 = scalar_lea.sflag [#allocation5], %s3936
          %s3938 = sand.u32 %s120, 1
          %s3939 = scalar_lea.vmem [#allocation4], %s3938
          %3940 = dma.done %s3937, 16
        $region52: #{tpu_custom_call.1} parent=43 // pred_fallthru
          _
        // Predicated region
        $region53: #{tpu_custom_call.1} parent=43 // pred_check
          %p3941 = pneg %p163
        $region54: #{tpu_custom_call.1} parent=43 // pred_check_branch
          %3943 = sbr.rel (%p3941) target = $region56
        $region55: #{tpu_custom_call.1} parent=43 // pred_region
          %s3944 = sand.u32 %s23, 1
          %s3945 = scalar_lea.sflag [#allocation5], %s3944
          %s3946 = sand.u32 %s148, 1
          %s3947 = scalar_lea.vmem [#allocation6], %s3946
          %3948 = dma.done %s3945, 16
        $region56: #{tpu_custom_call.1} parent=43 // pred_fallthru
          _
      $region44: #{tpu_custom_call.1} parent=5 // pred_fallthru
        _
    $region6: #{tpu_custom_call.1} parent=1 // loop_footer
      %s21 = sadd.s32 1, %s17
    $region7: #{tpu_custom_call.1} parent=1 // loop_footer_branch
      %16 = sbr.rel target = $region3
    $region8: #{tpu_custom_call.1} parent=1 // loop_exit
      _
    %3949 = vsyncpa [#allocation3], 1
    %s3950 = scalar_lea.sflag [#allocation3], 1
    %3951 = vsyncpa %s3950, 1
    %3952 = vsyncpa [#allocation5], 1
    %s3953 = scalar_lea.sflag [#allocation5], 1
    %3954 = vsyncpa %s3953, 1

</llo_original>
